<compile_context>
chip_gen: v6e
topology: v6e:2x2x1
jax: 0.10.0
libtpu: 0.0.40
codegen_flags: <defaults>
</compile_context>

<pallas_src>
import functools

import numpy as np

import jax
import jax.numpy as jnp
from jax import lax
from jax.experimental import pallas as pl
from jax.experimental.pallas import tpu as pltpu


# ----------------------------------------------------------------------------
# Synthetic YOLOv3-style config (mirrors parse_cfg output structure exactly).
# Two detection scales, route / shortcut / upsample / conv(+bn,leaky) blocks.
# ----------------------------------------------------------------------------
CFG_BLOCKS = [
    {'type': 'net', 'height': '16', 'width': '16', 'channels': '3'},
    {'type': 'convolutional', 'batch_normalize': '1', 'filters': '8',
     'size': '3', 'stride': '1', 'pad': '1', 'activation': 'leaky'},          # 0
    {'type': 'convolutional', 'batch_normalize': '1', 'filters': '16',
     'size': '3', 'stride': '2', 'pad': '1', 'activation': 'leaky'},          # 1
    {'type': 'convolutional', 'batch_normalize': '1', 'filters': '8',
     'size': '1', 'stride': '1', 'pad': '1', 'activation': 'leaky'},          # 2
    {'type': 'convolutional', 'batch_normalize': '1', 'filters': '16',
     'size': '3', 'stride': '1', 'pad': '1', 'activation': 'leaky'},          # 3
    {'type': 'shortcut', 'from': '-3', 'activation': 'linear'},               # 4
    {'type': 'convolutional', 'batch_normalize': '1', 'filters': '32',
     'size': '3', 'stride': '2', 'pad': '1', 'activation': 'leaky'},          # 5
    {'type': 'convolutional', 'filters': '27', 'size': '1', 'stride': '1',
     'pad': '1', 'activation': 'linear'},                                     # 6
    {'type': 'yolo', 'mask': '0,1,2', 'classes': '4',
     'anchors': '2,3, 4,5, 6,8, 9,11, 12,14, 16,18'},                         # 7
    {'type': 'route', 'layers': '-4'},                                        # 8
    {'type': 'convolutional', 'batch_normalize': '1', 'filters': '8',
     'size': '1', 'stride': '1', 'pad': '1', 'activation': 'leaky'},          # 9
    {'type': 'upsample', 'stride': '2'},                                      # 10
    {'type': 'route', 'layers': '-1,-11'},                                    # 11
    {'type': 'convolutional', 'filters': '27', 'size': '1', 'stride': '1',
     'pad': '1', 'activation': 'linear'},                                     # 12
    {'type': 'yolo', 'mask': '3,4,5', 'classes': '4',
     'anchors': '2,3, 4,5, 6,8, 9,11, 12,14, 16,18'},                         # 13
]

_VMEM = pl.BlockSpec(memory_space=pltpu.MemorySpace.VMEM)
_LANE = 128


def _round_up(v, m):
    return (v + m - 1) // m * m


# ----------------------------------------------------------------------------
# In-kernel math helpers (traced inside the Pallas kernels)
# ----------------------------------------------------------------------------
def _bn_leaky(y, gamma, beta, slope, eps):
    """Training-mode batchnorm (biased variance, like torch BN) + LeakyReLU."""
    mean = jnp.mean(y, axis=0, keepdims=True)
    var = jnp.mean(y * y, axis=0, keepdims=True) - mean * mean   # single pass
    yn = (y - mean) * lax.rsqrt(var + eps) * gamma + beta
    return jnp.where(yn > 0, yn, slope * yn)


def _yolo_head_math(y, off, anch, m_xy, m_wh, det_stride):
    """predict_transform elementwise hot path on a (M, 128)-padded lane layout.

    m_xy / m_wh are {0,1} float column masks; anch holds anchor/stride in the
    w/h columns and 0 elsewhere, so the blend is pure branch-free VPU math.
    exp() only sees masked inputs (0 outside the w/h columns) -> always finite.
    """
    sig = jax.nn.sigmoid(y)
    box_xy = m_xy * (sig + off) * det_stride
    box_wh = jnp.exp(y * m_wh) * anch * det_stride
    rest = (1.0 - m_xy - m_wh) * sig
    return box_xy + box_wh + rest


# ----------------------------------------------------------------------------
# Pallas kernels
# ----------------------------------------------------------------------------
def _conv_bn_leaky_kernel(p_ref, w_ref, g_ref, b_ref, o_ref, *, slope, eps):
    y = jnp.dot(p_ref[...], w_ref[...], preferred_element_type=jnp.float32)
    o_ref[...] = _bn_leaky(y, g_ref[...], b_ref[...], slope, eps)


def _conv_bn_leaky_add_kernel(p_ref, w_ref, g_ref, b_ref, r_ref, o_ref, *,
                              slope, eps):
    """Conv + BN + LeakyReLU with the shortcut residual fused into the epilogue."""
    y = jnp.dot(p_ref[...], w_ref[...], preferred_element_type=jnp.float32)
    o_ref[...] = _bn_leaky(y, g_ref[...], b_ref[...], slope, eps) + r_ref[...]


def _conv_bias_kernel(p_ref, w_ref, b_ref, o_ref, *, slope):
    y = jnp.dot(p_ref[...], w_ref[...], preferred_element_type=jnp.float32)
    y = y + b_ref[...]
    if slope != 1.0:                       # linear activation: skip the select
        y = jnp.where(y > 0, y, slope * y)
    o_ref[...] = y


def _conv_yolo_kernel(p_ref, w_ref, b_ref, off_ref, anch_ref, mxy_ref, mwh_ref,
                      o_ref, *, det_stride):
    """Linear conv + bias with the YOLO detection head fused into the epilogue."""
    y = jnp.dot(p_ref[...], w_ref[...], preferred_element_type=jnp.float32)
    y = y + b_ref[...]
    o_ref[...] = _yolo_head_math(y, off_ref[...], anch_ref[...],
                                 mxy_ref[...], mwh_ref[...], det_stride)


def _yolo_head_kernel(y_ref, off_ref, anch_ref, mxy_ref, mwh_ref, o_ref, *,
                      det_stride):
    o_ref[...] = _yolo_head_math(y_ref[...], off_ref[...], anch_ref[...],
                                 mxy_ref[...], mwh_ref[...], det_stride)


def _add_kernel(a_ref, b_ref, o_ref):
    o_ref[...] = a_ref[...] + b_ref[...]


# ----------------------------------------------------------------------------
# Glue (plain JAX): im2col, layer wrappers, parameter init, forward loop
# ----------------------------------------------------------------------------
def _im2col(x_nhwc, k, stride, pad):
    """x: (B,H,W,C) -> bf16 patches (B*Ho*Wo, round_up(k*k*C,128)), plus (Ho,Wo)."""
    if pad:
        x_nhwc = jnp.pad(x_nhwc, ((0, 0), (pad, pad), (pad, pad), (0, 0)))
    B, H, W, C = x_nhwc.shape
    Ho = (H - k) // stride + 1
    Wo = (W - k) // stride + 1
    cols = []
    for di in range(k):
        for dj in range(k):
            cols.append(x_nhwc[:, di:di + stride * (Ho - 1) + 1:stride,
                               dj:dj + stride * (Wo - 1) + 1:stride, :])
    p = jnp.stack(cols, axis=3).reshape(B * Ho * Wo, k * k * C)
    K = k * k * C
    Kp = _round_up(K, _LANE)
    p = jnp.pad(p, ((0, 0), (0, Kp - K))).astype(jnp.bfloat16)   # zero-pad K, bf16 MXU
    return p, Ho, Wo


def _conv_layer(x, p, block, residual=None):
    """Conv (+BN+LeakyReLU fused, + optional fused shortcut residual)."""
    k = int(block['size'])
    stride = int(block['stride'])
    pad = (k - 1) // 2 if int(block['pad']) else 0
    bn = 'batch_normalize' in block
    slope = 0.1 if block['activation'] == 'leaky' else 1.0
    Cout = int(block['filters'])

    B = x.shape[0]
    patches, Ho, Wo = _im2col(jnp.transpose(x, (0, 2, 3, 1)), k, stride, pad)
    w = p['w']                                        # (Kp, Np) bf16, zero-padded
    M, Np = patches.shape[0], w.shape[1]

    if bn:
        if residual is not None:
            r = jnp.transpose(residual, (0, 2, 3, 1)).reshape(M, Cout)
            r = jnp.pad(r, ((0, 0), (0, Np - Cout)))
            out = pl.pallas_call(
                functools.partial(_conv_bn_leaky_add_kernel, slope=slope, eps=1e-5),
                out_shape=jax.ShapeDtypeStruct((M, Np), jnp.float32),
                in_specs=[_VMEM] * 5, out_specs=_VMEM,
            )(patches, w, p['gamma'], p['beta'], r)
        else:
            out = pl.pallas_call(
                functools.partial(_conv_bn_leaky_kernel, slope=slope, eps=1e-5),
                out_shape=jax.ShapeDtypeStruct((M, Np), jnp.float32),
                in_specs=[_VMEM] * 4, out_specs=_VMEM,
            )(patches, w, p['gamma'], p['beta'])
    else:
        out = pl.pallas_call(
            functools.partial(_conv_bias_kernel, slope=slope),
            out_shape=jax.ShapeDtypeStruct((M, Np), jnp.float32),
            in_specs=[_VMEM] * 3, out_specs=_VMEM,
        )(patches, w, p['bias'])

    return out[:, :Cout].reshape(B, Ho, Wo, Cout).transpose(0, 3, 1, 2)  # NCHW


def _yolo_aux(B, G, A, attrs, Np, anchors, det_stride):
    """Column-role masks, anchor row and per-cell grid offsets for the head."""
    m_xy = np.zeros((1, Np), np.float32)
    m_wh = np.zeros((1, Np), np.float32)
    anch = np.zeros((1, Np), np.float32)
    for a in range(A):
        base = a * attrs
        m_xy[0, base + 0] = 1.0
        m_xy[0, base + 1] = 1.0
        m_wh[0, base + 2] = 1.0
        m_wh[0, base + 3] = 1.0
        anch[0, base + 2] = anchors[a][0] / det_stride
        anch[0, base + 3] = anchors[a][1] / det_stride
    gy, gx = np.meshgrid(np.arange(G), np.arange(G), indexing='ij')
    off_cell = np.zeros((G * G, Np), np.float32)
    for a in range(A):
        off_cell[:, a * attrs + 0] = gx.reshape(-1)
        off_cell[:, a * attrs + 1] = gy.reshape(-1)
    off = np.tile(off_cell, (B, 1))                   # rows ordered (b, gy, gx)
    return (jnp.asarray(off), jnp.asarray(anch),
            jnp.asarray(m_xy), jnp.asarray(m_wh))


def _conv_yolo_layer(x, p, block, inp_dim, anchors, num_classes):
    """Fused (linear) conv + YOLO detection head; output (B, G*G*A, attrs)."""
    k = int(block['size'])
    cstride = int(block['stride'])
    pad = (k - 1) // 2 if int(block['pad']) else 0
    B = x.shape[0]
    patches, Ho, Wo = _im2col(jnp.transpose(x, (0, 2, 3, 1)), k, cstride, pad)
    w, bias = p['w'], p['bias']
    M, Np = patches.shape[0], w.shape[1]

    G = Ho
    A = len(anchors)
    attrs = 5 + num_classes
    det_stride = inp_dim // G
    off, anch, m_xy, m_wh = _yolo_aux(B, G, A, attrs, Np, anchors, det_stride)

    out = pl.pallas_call(
        functools.partial(_conv_yolo_kernel, det_stride=float(det_stride)),
        out_shape=jax.ShapeDtypeStruct((M, Np), jnp.float32),
        in_specs=[_VMEM] * 7, out_specs=_VMEM,
    )(patches, w, bias, off, anch, m_xy, m_wh)

    return out[:, :A * attrs].reshape(B, G * G * A, attrs)


def _predict_transform(x, inp_dim, anchors, num_classes):
    """Standalone (unfused) YOLO head fallback, lane-dense 128-wide layout."""
    B, C, G, _ = x.shape
    A = len(anchors)
    attrs = 5 + num_classes
    det_stride = inp_dim // G
    Np = _round_up(A * attrs, _LANE)
    y = jnp.transpose(x, (0, 2, 3, 1)).reshape(B * G * G, A * attrs)
    y = jnp.pad(y, ((0, 0), (0, Np - A * attrs)))
    off, anch, m_xy, m_wh = _yolo_aux(B, G, A, attrs, Np, anchors, det_stride)
    out = pl.pallas_call(
        functools.partial(_yolo_head_kernel, det_stride=float(det_stride)),
        out_shape=jax.ShapeDtypeStruct((B * G * G, Np), jnp.float32),
        in_specs=[_VMEM] * 5, out_specs=_VMEM,
    )(y, off, anch, m_xy, m_wh)
    return out[:, :A * attrs].reshape(B, G * G * A, attrs)


def _shortcut_add(a, b):
    """Standalone (unfused) shortcut add fallback on a lane-dense (-1,128) view."""
    shp = a.shape
    total = int(np.prod(shp))
    pad = (-total) % _LANE
    af = jnp.pad(a.reshape(-1), (0, pad)).reshape(-1, _LANE)
    bf = jnp.pad(b.reshape(-1), (0, pad)).reshape(-1, _LANE)
    out = pl.pallas_call(
        _add_kernel, out_shape=jax.ShapeDtypeStruct(af.shape, a.dtype),
        in_specs=[_VMEM, _VMEM], out_specs=_VMEM,
    )(af, bf)
    return out.reshape(-1)[:total].reshape(shp)


def _referenced_outputs(modules):
    """Layer indices whose outputs are read by route layers / shortcut 'from'."""
    refs = set()
    for j, m in enumerate(modules):
        if m['type'] == 'route':
            for l in (int(v) for v in m['layers'].split(',')):
                refs.add(l if l > 0 else j + l)
        elif m['type'] == 'shortcut':
            refs.add(j + int(m['from']))
    return refs


def init_params(blocks, key):
    """Deterministic synthetic parameters (shapes follow create_modules),
    pre-padded to MXU-friendly (Kp, Np) = multiples of 128, weights in bf16."""
    net_info = blocks[0]
    prev_filters = int(net_info.get('channels', 3))
    output_filters = []
    params = {}
    filters = prev_filters
    for index, block in enumerate(blocks[1:]):
        t = block['type']
        if t == 'convolutional':
            bn = 'batch_normalize' in block
            filters = int(block['filters'])
            k = int(block['size'])
            key, k1, k2, k3 = jax.random.split(key, 4)
            K = k * k * prev_filters
            Kp = _round_up(K, _LANE)
            Np = _round_up(filters, _LANE)
            w = 0.1 * jax.random.normal(k1, (k, k, prev_filters, filters), jnp.float32)
            w = w.reshape(K, filters)
            w = jnp.pad(w, ((0, Kp - K), (0, Np - filters))).astype(jnp.bfloat16)
            p = {'w': w}
            if bn:
                gamma = 1.0 + 0.1 * jax.random.normal(k2, (filters,), jnp.float32)
                beta = 0.1 * jax.random.normal(k3, (filters,), jnp.float32)
                p['gamma'] = jnp.pad(gamma, (0, Np - filters)).reshape(1, Np)
                p['beta'] = jnp.pad(beta, (0, Np - filters)).reshape(1, Np)
            else:
                bias = 0.1 * jax.random.normal(k2, (filters,), jnp.float32)
                p['bias'] = jnp.pad(bias, (0, Np - filters)).reshape(1, Np)
            params[index] = p
        elif t == 'route':
            layers = [int(l) for l in block['layers'].split(',')]
            start = layers[0]
            end = layers[1] if len(layers) > 1 else 0
            if start > 0:
                start -= index
            if end > 0:
                end -= index
            if end < 0:
                filters = output_filters[index + start] + output_filters[index + end]
            else:
                filters = output_filters[index + start]
        # shortcut / upsample / yolo: no params; `filters` carries over
        output_filters.append(filters)
        prev_filters = filters
    return params


def yolov3_forward(params, blocks, x):
    net_info = blocks[0]
    modules = blocks[1:]
    referenced = _referenced_outputs(modules)
    anchors_all = list(map(int, blocks[-1]['anchors'].split(',')))
    anchors_all = [(anchors_all[j], anchors_all[j + 1])
                   for j in range(0, len(anchors_all), 2)]
    inp_dim = int(net_info['height'])

    outputs = {}
    detections = None
    i, n = 0, len(modules)
    while i < n:
        module = modules[i]
        t = module['type']
        if t == 'convolutional':
            nxt = modules[i + 1] if i + 1 < n else None
            # Fusion is only applied when the conv-only intermediate is never
            # read by any other layer, so reference semantics are preserved.
            fuse_ok = nxt is not None and i not in referenced
            if (fuse_ok and nxt['type'] == 'shortcut'
                    and 'batch_normalize' in module):
                residual = outputs[i + 1 + int(nxt['from'])]
                x = _conv_layer(x, params[i], module, residual=residual)
                outputs[i] = x
                outputs[i + 1] = x
                i += 2
                continue
            if (fuse_ok and nxt['type'] == 'yolo'
                    and 'batch_normalize' not in module
                    and module['activation'] == 'linear'):
                mask = [int(m) for m in nxt['mask'].split(',')]
                anchors = [anchors_all[m] for m in mask]
                x = _conv_yolo_layer(x, params[i], module, inp_dim, anchors,
                                     int(nxt['classes']))
                outputs[i] = x
                outputs[i + 1] = x
                detections = x if detections is None else jnp.concatenate(
                    [detections, x], axis=1)
                i += 2
                continue
            x = _conv_layer(x, params[i], module)
        elif t == 'upsample':
            x = jnp.repeat(jnp.repeat(x, 2, axis=2), 2, axis=3)   # nearest 2x, NCHW
        elif t == 'route':
            layers = [int(l) for l in module['layers'].split(',')]
            if layers[0] > 0:
                layers[0] -= i
            if len(layers) == 1:
                x = outputs[i + layers[0]]
            else:
                if layers[1] > 0:
                    layers[1] -= i
                x = jnp.concatenate([outputs[i + layers[0]],
                                     outputs[i + layers[1]]], axis=1)
        elif t == 'shortcut':
            x = _shortcut_add(outputs[i - 1], outputs[i + int(module['from'])])
        elif t == 'yolo':
            mask = [int(m) for m in module['mask'].split(',')]
            anchors = [anchors_all[m] for m in mask]
            x = _predict_transform(x, inp_dim, anchors, int(module['classes']))
            detections = x if detections is None else jnp.concatenate(
                [detections, x], axis=1)
        outputs[i] = x
        i += 1
    return detections


if __name__ == "__main__":
    key = jax.random.PRNGKey(0)
    key, pkey, xkey = jax.random.split(key, 3)
    params = init_params(CFG_BLOCKS, pkey)
    # Input matches net_info: batch=2, channels=3, H=W=16 (NCHW, like torch).
    x = jax.random.normal(xkey, (2, 3, 16, 16), dtype=jnp.float32)

    forward = jax.jit(lambda p, inp: yolov3_forward(p, CFG_BLOCKS, inp))
    det = jax.block_until_ready(forward(params, x))

    # Two yolo scales: grid 4 (3*4*4=48 boxes) + grid 16 (3*16*16=768 boxes), 9 attrs.
    assert det.shape == (2, 816, 9), det.shape
    assert bool(jnp.all(jnp.isfinite(det)))
    print("KERNEL_OK")
</pallas_src>

<mosaic_0001>
module attributes {stable_mosaic.version = 11 : i64} {
  func.func @_conv_bn_leaky_kernel(%arg0: memref<512x128xbf16, #tpu.memory_space<vmem>>, %arg1: memref<128x128xbf16, #tpu.memory_space<vmem>>, %arg2: memref<1x128xf32, #tpu.memory_space<vmem>>, %arg3: memref<1x128xf32, #tpu.memory_space<vmem>>, %arg4: memref<512x128xf32, #tpu.memory_space<vmem>>) attributes {dimension_semantics = [], scalar_prefetch = 0 : i64, scratch_operands = 0 : i64, tpu.core_type = #tpu.core_type<tc>} {
    %c0 = arith.constant 0 : index
    %c0_0 = arith.constant 0 : index
    %0 = vector.load %arg0[%c0, %c0_0] : memref<512x128xbf16, #tpu.memory_space<vmem>>, vector<512x128xbf16>
    %c0_1 = arith.constant 0 : index
    %c0_2 = arith.constant 0 : index
    %1 = vector.load %arg1[%c0_1, %c0_2] : memref<128x128xbf16, #tpu.memory_space<vmem>>, vector<128x128xbf16>
    %cst = arith.constant dense<0.000000e+00> : vector<512x128xf32>
    %2 = tpu.matmul %0, %1, %cst {dimension_numbers = #tpu.dot_dimension_numbers<[1], [0], [0], [1], [0, 0, 1, 1], [], []>} : vector<512x128xbf16>, vector<128x128xbf16>, vector<512x128xf32> -> vector<512x128xf32>
    %c0_3 = arith.constant 0 : index
    %c0_4 = arith.constant 0 : index
    %3 = vector.load %arg2[%c0_3, %c0_4] : memref<1x128xf32, #tpu.memory_space<vmem>>, vector<1x128xf32>
    %c0_5 = arith.constant 0 : index
    %c0_6 = arith.constant 0 : index
    %4 = vector.load %arg3[%c0_5, %c0_6] : memref<1x128xf32, #tpu.memory_space<vmem>>, vector<1x128xf32>
    %cst_7 = arith.constant dense<0.000000e+00> : vector<128xf32>
    %5 = vector.multi_reduction <add>, %2, %cst_7 [0] : vector<512x128xf32> to vector<128xf32>
    %6 = vector.shape_cast %5 : vector<128xf32> to vector<1x128xf32>
    %cst_8 = arith.constant 5.120000e+02 : f32
    %7 = vector.broadcast %cst_8 : f32 to vector<1x128xf32>
    %8 = arith.divf %6, %7 : vector<1x128xf32>
    %9 = arith.mulf %2, %2 : vector<512x128xf32>
    %cst_9 = arith.constant dense<0.000000e+00> : vector<128xf32>
    %10 = vector.multi_reduction <add>, %9, %cst_9 [0] : vector<512x128xf32> to vector<128xf32>
    %11 = vector.shape_cast %10 : vector<128xf32> to vector<1x128xf32>
    %cst_10 = arith.constant 5.120000e+02 : f32
    %12 = vector.broadcast %cst_10 : f32 to vector<1x128xf32>
    %13 = arith.divf %11, %12 : vector<1x128xf32>
    %14 = arith.mulf %8, %8 : vector<1x128xf32>
    %15 = arith.subf %13, %14 : vector<1x128xf32>
    %16 = vector.broadcast %8 : vector<1x128xf32> to vector<512x128xf32>
    %17 = arith.subf %2, %16 : vector<512x128xf32>
    %cst_11 = arith.constant 9.99999974E-6 : f32
    %18 = vector.broadcast %cst_11 : f32 to vector<1x128xf32>
    %19 = arith.addf %15, %18 : vector<1x128xf32>
    %20 = math.rsqrt %19 : vector<1x128xf32>
    %21 = vector.broadcast %20 : vector<1x128xf32> to vector<512x128xf32>
    %22 = arith.mulf %17, %21 : vector<512x128xf32>
    %23 = vector.broadcast %3 : vector<1x128xf32> to vector<512x128xf32>
    %24 = arith.mulf %22, %23 : vector<512x128xf32>
    %25 = vector.broadcast %4 : vector<1x128xf32> to vector<512x128xf32>
    %26 = arith.addf %24, %25 : vector<512x128xf32>
    %cst_12 = arith.constant 0.000000e+00 : f32
    %27 = vector.broadcast %cst_12 : f32 to vector<512x128xf32>
    %28 = arith.cmpf ogt, %26, %27 : vector<512x128xf32>
    %cst_13 = arith.constant 1.000000e-01 : f32
    %29 = vector.broadcast %cst_13 : f32 to vector<512x128xf32>
    %30 = arith.mulf %29, %26 : vector<512x128xf32>
    %31 = arith.select %28, %26, %30 : vector<512x128xi1>, vector<512x128xf32>
    %c0_14 = arith.constant 0 : index
    %c0_15 = arith.constant 0 : index
    %32 = vector.load %arg4[%c0_14, %c0_15] : memref<512x128xf32, #tpu.memory_space<vmem>>, vector<512x128xf32>
    tpu.vector_store %arg4[%c0_14, %c0_15], %31 {strides = array<i32>} : memref<512x128xf32, #tpu.memory_space<vmem>>, vector<512x128xf32>,
    return
  }
}

module attributes {stable_mosaic.version = 11 : i64} {
  func.func @_conv_bn_leaky_kernel(%arg0: memref<128x128xbf16, #tpu.memory_space<vmem>>, %arg1: memref<128x128xbf16, #tpu.memory_space<vmem>>, %arg2: memref<1x128xf32, #tpu.memory_space<vmem>>, %arg3: memref<1x128xf32, #tpu.memory_space<vmem>>, %arg4: memref<128x128xf32, #tpu.memory_space<vmem>>) attributes {dimension_semantics = [], scalar_prefetch = 0 : i64, scratch_operands = 0 : i64, tpu.core_type = #tpu.core_type<tc>} {
    %c0 = arith.constant 0 : index
    %c0_0 = arith.constant 0 : index
    %0 = vector.load %arg0[%c0, %c0_0] : memref<128x128xbf16, #tpu.memory_space<vmem>>, vector<128x128xbf16>
    %c0_1 = arith.constant 0 : index
    %c0_2 = arith.constant 0 : index
    %1 = vector.load %arg1[%c0_1, %c0_2] : memref<128x128xbf16, #tpu.memory_space<vmem>>, vector<128x128xbf16>
    %cst = arith.constant dense<0.000000e+00> : vector<128x128xf32>
    %2 = tpu.matmul %0, %1, %cst {dimension_numbers = #tpu.dot_dimension_numbers<[1], [0], [0], [1], [0, 0, 1, 1], [], []>} : vector<128x128xbf16>, vector<128x128xbf16>, vector<128x128xf32> -> vector<128x128xf32>
    %c0_3 = arith.constant 0 : index
    %c0_4 = arith.constant 0 : index
    %3 = vector.load %arg2[%c0_3, %c0_4] : memref<1x128xf32, #tpu.memory_space<vmem>>, vector<1x128xf32>
    %c0_5 = arith.constant 0 : index
    %c0_6 = arith.constant 0 : index
    %4 = vector.load %arg3[%c0_5, %c0_6] : memref<1x128xf32, #tpu.memory_space<vmem>>, vector<1x128xf32>
    %cst_7 = arith.constant dense<0.000000e+00> : vector<128xf32>
    %5 = vector.multi_reduction <add>, %2, %cst_7 [0] : vector<128x128xf32> to vector<128xf32>
    %6 = vector.shape_cast %5 : vector<128xf32> to vector<1x128xf32>
    %cst_8 = arith.constant 1.280000e+02 : f32
    %7 = vector.broadcast %cst_8 : f32 to vector<1x128xf32>
    %8 = arith.divf %6, %7 : vector<1x128xf32>
    %9 = arith.mulf %2, %2 : vector<128x128xf32>
    %cst_9 = arith.constant dense<0.000000e+00> : vector<128xf32>
    %10 = vector.multi_reduction <add>, %9, %cst_9 [0] : vector<128x128xf32> to vector<128xf32>
    %11 = vector.shape_cast %10 : vector<128xf32> to vector<1x128xf32>
    %cst_10 = arith.constant 1.280000e+02 : f32
    %12 = vector.broadcast %cst_10 : f32 to vector<1x128xf32>
    %13 = arith.divf %11, %12 : vector<1x128xf32>
    %14 = arith.mulf %8, %8 : vector<1x128xf32>
    %15 = arith.subf %13, %14 : vector<1x128xf32>
    %16 = vector.broadcast %8 : vector<1x128xf32> to vector<128x128xf32>
    %17 = arith.subf %2, %16 : vector<128x128xf32>
    %cst_11 = arith.constant 9.99999974E-6 : f32
    %18 = vector.broadcast %cst_11 : f32 to vector<1x128xf32>
    %19 = arith.addf %15, %18 : vector<1x128xf32>
    %20 = math.rsqrt %19 : vector<1x128xf32>
    %21 = vector.broadcast %20 : vector<1x128xf32> to vector<128x128xf32>
    %22 = arith.mulf %17, %21 : vector<128x128xf32>
    %23 = vector.broadcast %3 : vector<1x128xf32> to vector<128x128xf32>
    %24 = arith.mulf %22, %23 : vector<128x128xf32>
    %25 = vector.broadcast %4 : vector<1x128xf32> to vector<128x128xf32>
    %26 = arith.addf %24, %25 : vector<128x128xf32>
    %cst_12 = arith.constant 0.000000e+00 : f32
    %27 = vector.broadcast %cst_12 : f32 to vector<128x128xf32>
    %28 = arith.cmpf ogt, %26, %27 : vector<128x128xf32>
    %cst_13 = arith.constant 1.000000e-01 : f32
    %29 = vector.broadcast %cst_13 : f32 to vector<128x128xf32>
    %30 = arith.mulf %29, %26 : vector<128x128xf32>
    %31 = arith.select %28, %26, %30 : vector<128x128xi1>, vector<128x128xf32>
    %c0_14 = arith.constant 0 : index
    %c0_15 = arith.constant 0 : index
    %32 = vector.load %arg4[%c0_14, %c0_15] : memref<128x128xf32, #tpu.memory_space<vmem>>, vector<128x128xf32>
    tpu.vector_store %arg4[%c0_14, %c0_15], %31 {strides = array<i32>} : memref<128x128xf32, #tpu.memory_space<vmem>>, vector<128x128xf32>,
    return
  }
}

module attributes {stable_mosaic.version = 11 : i64} {
  func.func @_conv_bn_leaky_add_kernel(%arg0: memref<128x128xbf16, #tpu.memory_space<vmem>>, %arg1: memref<128x128xbf16, #tpu.memory_space<vmem>>, %arg2: memref<1x128xf32, #tpu.memory_space<vmem>>, %arg3: memref<1x128xf32, #tpu.memory_space<vmem>>, %arg4: memref<128x128xf32, #tpu.memory_space<vmem>>, %arg5: memref<128x128xf32, #tpu.memory_space<vmem>>) attributes {dimension_semantics = [], scalar_prefetch = 0 : i64, scratch_operands = 0 : i64, tpu.core_type = #tpu.core_type<tc>} {
    %c0 = arith.constant 0 : index
    %c0_0 = arith.constant 0 : index
    %0 = vector.load %arg0[%c0, %c0_0] : memref<128x128xbf16, #tpu.memory_space<vmem>>, vector<128x128xbf16>
    %c0_1 = arith.constant 0 : index
    %c0_2 = arith.constant 0 : index
    %1 = vector.load %arg1[%c0_1, %c0_2] : memref<128x128xbf16, #tpu.memory_space<vmem>>, vector<128x128xbf16>
    %cst = arith.constant dense<0.000000e+00> : vector<128x128xf32>
    %2 = tpu.matmul %0, %1, %cst {dimension_numbers = #tpu.dot_dimension_numbers<[1], [0], [0], [1], [0, 0, 1, 1], [], []>} : vector<128x128xbf16>, vector<128x128xbf16>, vector<128x128xf32> -> vector<128x128xf32>
    %c0_3 = arith.constant 0 : index
    %c0_4 = arith.constant 0 : index
    %3 = vector.load %arg2[%c0_3, %c0_4] : memref<1x128xf32, #tpu.memory_space<vmem>>, vector<1x128xf32>
    %c0_5 = arith.constant 0 : index
    %c0_6 = arith.constant 0 : index
    %4 = vector.load %arg3[%c0_5, %c0_6] : memref<1x128xf32, #tpu.memory_space<vmem>>, vector<1x128xf32>
    %cst_7 = arith.constant dense<0.000000e+00> : vector<128xf32>
    %5 = vector.multi_reduction <add>, %2, %cst_7 [0] : vector<128x128xf32> to vector<128xf32>
    %6 = vector.shape_cast %5 : vector<128xf32> to vector<1x128xf32>
    %cst_8 = arith.constant 1.280000e+02 : f32
    %7 = vector.broadcast %cst_8 : f32 to vector<1x128xf32>
    %8 = arith.divf %6, %7 : vector<1x128xf32>
    %9 = arith.mulf %2, %2 : vector<128x128xf32>
    %cst_9 = arith.constant dense<0.000000e+00> : vector<128xf32>
    %10 = vector.multi_reduction <add>, %9, %cst_9 [0] : vector<128x128xf32> to vector<128xf32>
    %11 = vector.shape_cast %10 : vector<128xf32> to vector<1x128xf32>
    %cst_10 = arith.constant 1.280000e+02 : f32
    %12 = vector.broadcast %cst_10 : f32 to vector<1x128xf32>
    %13 = arith.divf %11, %12 : vector<1x128xf32>
    %14 = arith.mulf %8, %8 : vector<1x128xf32>
    %15 = arith.subf %13, %14 : vector<1x128xf32>
    %16 = vector.broadcast %8 : vector<1x128xf32> to vector<128x128xf32>
    %17 = arith.subf %2, %16 : vector<128x128xf32>
    %cst_11 = arith.constant 9.99999974E-6 : f32
    %18 = vector.broadcast %cst_11 : f32 to vector<1x128xf32>
    %19 = arith.addf %15, %18 : vector<1x128xf32>
    %20 = math.rsqrt %19 : vector<1x128xf32>
    %21 = vector.broadcast %20 : vector<1x128xf32> to vector<128x128xf32>
    %22 = arith.mulf %17, %21 : vector<128x128xf32>
    %23 = vector.broadcast %3 : vector<1x128xf32> to vector<128x128xf32>
    %24 = arith.mulf %22, %23 : vector<128x128xf32>
    %25 = vector.broadcast %4 : vector<1x128xf32> to vector<128x128xf32>
    %26 = arith.addf %24, %25 : vector<128x128xf32>
    %cst_12 = arith.constant 0.000000e+00 : f32
    %27 = vector.broadcast %cst_12 : f32 to vector<128x128xf32>
    %28 = arith.cmpf ogt, %26, %27 : vector<128x128xf32>
    %cst_13 = arith.constant 1.000000e-01 : f32
    %29 = vector.broadcast %cst_13 : f32 to vector<128x128xf32>
    %30 = arith.mulf %29, %26 : vector<128x128xf32>
    %31 = arith.select %28, %26, %30 : vector<128x128xi1>, vector<128x128xf32>
    %c0_14 = arith.constant 0 : index
    %c0_15 = arith.constant 0 : index
    %32 = vector.load %arg4[%c0_14, %c0_15] : memref<128x128xf32, #tpu.memory_space<vmem>>, vector<128x128xf32>
    %33 = arith.addf %31, %32 : vector<128x128xf32>
    %c0_16 = arith.constant 0 : index
    %c0_17 = arith.constant 0 : index
    %34 = vector.load %arg5[%c0_16, %c0_17] : memref<128x128xf32, #tpu.memory_space<vmem>>, vector<128x128xf32>
    tpu.vector_store %arg5[%c0_16, %c0_17], %33 {strides = array<i32>} : memref<128x128xf32, #tpu.memory_space<vmem>>, vector<128x128xf32>,
    return
  }
}

module attributes {stable_mosaic.version = 11 : i64} {
  func.func @_conv_bn_leaky_kernel(%arg0: memref<32x256xbf16, #tpu.memory_space<vmem>>, %arg1: memref<256x128xbf16, #tpu.memory_space<vmem>>, %arg2: memref<1x128xf32, #tpu.memory_space<vmem>>, %arg3: memref<1x128xf32, #tpu.memory_space<vmem>>, %arg4: memref<32x128xf32, #tpu.memory_space<vmem>>) attributes {dimension_semantics = [], scalar_prefetch = 0 : i64, scratch_operands = 0 : i64, tpu.core_type = #tpu.core_type<tc>} {
    %c0 = arith.constant 0 : index
    %c0_0 = arith.constant 0 : index
    %0 = vector.load %arg0[%c0, %c0_0] : memref<32x256xbf16, #tpu.memory_space<vmem>>, vector<32x256xbf16>
    %c0_1 = arith.constant 0 : index
    %c0_2 = arith.constant 0 : index
    %1 = vector.load %arg1[%c0_1, %c0_2] : memref<256x128xbf16, #tpu.memory_space<vmem>>, vector<256x128xbf16>
    %cst = arith.constant dense<0.000000e+00> : vector<32x128xf32>
    %2 = tpu.matmul %0, %1, %cst {dimension_numbers = #tpu.dot_dimension_numbers<[1], [0], [0], [1], [0, 0, 1, 1], [], []>} : vector<32x256xbf16>, vector<256x128xbf16>, vector<32x128xf32> -> vector<32x128xf32>
    %c0_3 = arith.constant 0 : index
    %c0_4 = arith.constant 0 : index
    %3 = vector.load %arg2[%c0_3, %c0_4] : memref<1x128xf32, #tpu.memory_space<vmem>>, vector<1x128xf32>
    %c0_5 = arith.constant 0 : index
    %c0_6 = arith.constant 0 : index
    %4 = vector.load %arg3[%c0_5, %c0_6] : memref<1x128xf32, #tpu.memory_space<vmem>>, vector<1x128xf32>
    %cst_7 = arith.constant dense<0.000000e+00> : vector<128xf32>
    %5 = vector.multi_reduction <add>, %2, %cst_7 [0] : vector<32x128xf32> to vector<128xf32>
    %6 = vector.shape_cast %5 : vector<128xf32> to vector<1x128xf32>
    %cst_8 = arith.constant 3.200000e+01 : f32
    %7 = vector.broadcast %cst_8 : f32 to vector<1x128xf32>
    %8 = arith.divf %6, %7 : vector<1x128xf32>
    %9 = arith.mulf %2, %2 : vector<32x128xf32>
    %cst_9 = arith.constant dense<0.000000e+00> : vector<128xf32>
    %10 = vector.multi_reduction <add>, %9, %cst_9 [0] : vector<32x128xf32> to vector<128xf32>
    %11 = vector.shape_cast %10 : vector<128xf32> to vector<1x128xf32>
    %cst_10 = arith.constant 3.200000e+01 : f32
    %12 = vector.broadcast %cst_10 : f32 to vector<1x128xf32>
    %13 = arith.divf %11, %12 : vector<1x128xf32>
    %14 = arith.mulf %8, %8 : vector<1x128xf32>
    %15 = arith.subf %13, %14 : vector<1x128xf32>
    %16 = vector.broadcast %8 : vector<1x128xf32> to vector<32x128xf32>
    %17 = arith.subf %2, %16 : vector<32x128xf32>
    %cst_11 = arith.constant 9.99999974E-6 : f32
    %18 = vector.broadcast %cst_11 : f32 to vector<1x128xf32>
    %19 = arith.addf %15, %18 : vector<1x128xf32>
    %20 = math.rsqrt %19 : vector<1x128xf32>
    %21 = vector.broadcast %20 : vector<1x128xf32> to vector<32x128xf32>
    %22 = arith.mulf %17, %21 : vector<32x128xf32>
    %23 = vector.broadcast %3 : vector<1x128xf32> to vector<32x128xf32>
    %24 = arith.mulf %22, %23 : vector<32x128xf32>
    %25 = vector.broadcast %4 : vector<1x128xf32> to vector<32x128xf32>
    %26 = arith.addf %24, %25 : vector<32x128xf32>
    %cst_12 = arith.constant 0.000000e+00 : f32
    %27 = vector.broadcast %cst_12 : f32 to vector<32x128xf32>
    %28 = arith.cmpf ogt, %26, %27 : vector<32x128xf32>
    %cst_13 = arith.constant 1.000000e-01 : f32
    %29 = vector.broadcast %cst_13 : f32 to vector<32x128xf32>
    %30 = arith.mulf %29, %26 : vector<32x128xf32>
    %31 = arith.select %28, %26, %30 : vector<32x128xi1>, vector<32x128xf32>
    %c0_14 = arith.constant 0 : index
    %c0_15 = arith.constant 0 : index
    %32 = vector.load %arg4[%c0_14, %c0_15] : memref<32x128xf32, #tpu.memory_space<vmem>>, vector<32x128xf32>
    tpu.vector_store %arg4[%c0_14, %c0_15], %31 {strides = array<i32>} : memref<32x128xf32, #tpu.memory_space<vmem>>, vector<32x128xf32>,
    return
  }
}

module attributes {stable_mosaic.version = 11 : i64} {
  func.func @_conv_yolo_kernel(%arg0: memref<32x128xbf16, #tpu.memory_space<vmem>>, %arg1: memref<128x128xbf16, #tpu.memory_space<vmem>>, %arg2: memref<1x128xf32, #tpu.memory_space<vmem>>, %arg3: memref<32x128xf32, #tpu.memory_space<vmem>>, %arg4: memref<1x128xf32, #tpu.memory_space<vmem>>, %arg5: memref<1x128xf32, #tpu.memory_space<vmem>>, %arg6: memref<1x128xf32, #tpu.memory_space<vmem>>, %arg7: memref<32x128xf32, #tpu.memory_space<vmem>>) attributes {dimension_semantics = [], scalar_prefetch = 0 : i64, scratch_operands = 0 : i64, tpu.core_type = #tpu.core_type<tc>} {
    %c0 = arith.constant 0 : index
    %c0_0 = arith.constant 0 : index
    %0 = vector.load %arg0[%c0, %c0_0] : memref<32x128xbf16, #tpu.memory_space<vmem>>, vector<32x128xbf16>
    %c0_1 = arith.constant 0 : index
    %c0_2 = arith.constant 0 : index
    %1 = vector.load %arg1[%c0_1, %c0_2] : memref<128x128xbf16, #tpu.memory_space<vmem>>, vector<128x128xbf16>
    %cst = arith.constant dense<0.000000e+00> : vector<32x128xf32>
    %2 = tpu.matmul %0, %1, %cst {dimension_numbers = #tpu.dot_dimension_numbers<[1], [0], [0], [1], [0, 0, 1, 1], [], []>} : vector<32x128xbf16>, vector<128x128xbf16>, vector<32x128xf32> -> vector<32x128xf32>
    %c0_3 = arith.constant 0 : index
    %c0_4 = arith.constant 0 : index
    %3 = vector.load %arg2[%c0_3, %c0_4] : memref<1x128xf32, #tpu.memory_space<vmem>>, vector<1x128xf32>
    %4 = vector.broadcast %3 : vector<1x128xf32> to vector<32x128xf32>
    %5 = arith.addf %2, %4 : vector<32x128xf32>
    %c0_5 = arith.constant 0 : index
    %c0_6 = arith.constant 0 : index
    %6 = vector.load %arg3[%c0_5, %c0_6] : memref<32x128xf32, #tpu.memory_space<vmem>>, vector<32x128xf32>
    %c0_7 = arith.constant 0 : index
    %c0_8 = arith.constant 0 : index
    %7 = vector.load %arg4[%c0_7, %c0_8] : memref<1x128xf32, #tpu.memory_space<vmem>>, vector<1x128xf32>
    %c0_9 = arith.constant 0 : index
    %c0_10 = arith.constant 0 : index
    %8 = vector.load %arg5[%c0_9, %c0_10] : memref<1x128xf32, #tpu.memory_space<vmem>>, vector<1x128xf32>
    %c0_11 = arith.constant 0 : index
    %c0_12 = arith.constant 0 : index
    %9 = vector.load %arg6[%c0_11, %c0_12] : memref<1x128xf32, #tpu.memory_space<vmem>>, vector<1x128xf32>
    %10 = arith.negf %5 : vector<32x128xf32>
    %11 = math.exp %10 : vector<32x128xf32>
    %cst_13 = arith.constant 1.000000e+00 : f32
    %12 = vector.broadcast %cst_13 : f32 to vector<32x128xf32>
    %13 = arith.addf %12, %11 : vector<32x128xf32>
    %14 = arith.divf %12, %13 : vector<32x128xf32>
    %15 = arith.addf %14, %6 : vector<32x128xf32>
    %16 = vector.broadcast %8 : vector<1x128xf32> to vector<32x128xf32>
    %17 = arith.mulf %16, %15 : vector<32x128xf32>
    %cst_14 = arith.constant 4.000000e+00 : f32
    %18 = vector.broadcast %cst_14 : f32 to vector<32x128xf32>
    %19 = arith.mulf %17, %18 : vector<32x128xf32>
    %20 = vector.broadcast %9 : vector<1x128xf32> to vector<32x128xf32>
    %21 = arith.mulf %5, %20 : vector<32x128xf32>
    %22 = math.exp %21 : vector<32x128xf32>
    %23 = vector.broadcast %7 : vector<1x128xf32> to vector<32x128xf32>
    %24 = arith.mulf %22, %23 : vector<32x128xf32>
    %cst_15 = arith.constant 4.000000e+00 : f32
    %25 = vector.broadcast %cst_15 : f32 to vector<32x128xf32>
    %26 = arith.mulf %24, %25 : vector<32x128xf32>
    %cst_16 = arith.constant 1.000000e+00 : f32
    %27 = vector.broadcast %cst_16 : f32 to vector<1x128xf32>
    %28 = arith.subf %27, %8 : vector<1x128xf32>
    %29 = arith.subf %28, %9 : vector<1x128xf32>
    %30 = vector.broadcast %29 : vector<1x128xf32> to vector<32x128xf32>
    %31 = arith.mulf %30, %14 : vector<32x128xf32>
    %32 = arith.addf %19, %26 : vector<32x128xf32>
    %33 = arith.addf %32, %31 : vector<32x128xf32>
    %c0_17 = arith.constant 0 : index
    %c0_18 = arith.constant 0 : index
    %34 = vector.load %arg7[%c0_17, %c0_18] : memref<32x128xf32, #tpu.memory_space<vmem>>, vector<32x128xf32>
    tpu.vector_store %arg7[%c0_17, %c0_18], %33 {strides = array<i32>} : memref<32x128xf32, #tpu.memory_space<vmem>>, vector<32x128xf32>,
    return
  }
}

module attributes {stable_mosaic.version = 11 : i64} {
  func.func @_conv_yolo_kernel(%arg0: memref<512x128xbf16, #tpu.memory_space<vmem>>, %arg1: memref<128x128xbf16, #tpu.memory_space<vmem>>, %arg2: memref<1x128xf32, #tpu.memory_space<vmem>>, %arg3: memref<512x128xf32, #tpu.memory_space<vmem>>, %arg4: memref<1x128xf32, #tpu.memory_space<vmem>>, %arg5: memref<1x128xf32, #tpu.memory_space<vmem>>, %arg6: memref<1x128xf32, #tpu.memory_space<vmem>>, %arg7: memref<512x128xf32, #tpu.memory_space<vmem>>) attributes {dimension_semantics = [], scalar_prefetch = 0 : i64, scratch_operands = 0 : i64, tpu.core_type = #tpu.core_type<tc>} {
    %c0 = arith.constant 0 : index
    %c0_0 = arith.constant 0 : index
    %0 = vector.load %arg0[%c0, %c0_0] : memref<512x128xbf16, #tpu.memory_space<vmem>>, vector<512x128xbf16>
    %c0_1 = arith.constant 0 : index
    %c0_2 = arith.constant 0 : index
    %1 = vector.load %arg1[%c0_1, %c0_2] : memref<128x128xbf16, #tpu.memory_space<vmem>>, vector<128x128xbf16>
    %cst = arith.constant dense<0.000000e+00> : vector<512x128xf32>
    %2 = tpu.matmul %0, %1, %cst {dimension_numbers = #tpu.dot_dimension_numbers<[1], [0], [0], [1], [0, 0, 1, 1], [], []>} : vector<512x128xbf16>, vector<128x128xbf16>, vector<512x128xf32> -> vector<512x128xf32>
    %c0_3 = arith.constant 0 : index
    %c0_4 = arith.constant 0 : index
    %3 = vector.load %arg2[%c0_3, %c0_4] : memref<1x128xf32, #tpu.memory_space<vmem>>, vector<1x128xf32>
    %4 = vector.broadcast %3 : vector<1x128xf32> to vector<512x128xf32>
    %5 = arith.addf %2, %4 : vector<512x128xf32>
    %c0_5 = arith.constant 0 : index
    %c0_6 = arith.constant 0 : index
    %6 = vector.load %arg3[%c0_5, %c0_6] : memref<512x128xf32, #tpu.memory_space<vmem>>, vector<512x128xf32>
    %c0_7 = arith.constant 0 : index
    %c0_8 = arith.constant 0 : index
    %7 = vector.load %arg4[%c0_7, %c0_8] : memref<1x128xf32, #tpu.memory_space<vmem>>, vector<1x128xf32>
    %c0_9 = arith.constant 0 : index
    %c0_10 = arith.constant 0 : index
    %8 = vector.load %arg5[%c0_9, %c0_10] : memref<1x128xf32, #tpu.memory_space<vmem>>, vector<1x128xf32>
    %c0_11 = arith.constant 0 : index
    %c0_12 = arith.constant 0 : index
    %9 = vector.load %arg6[%c0_11, %c0_12] : memref<1x128xf32, #tpu.memory_space<vmem>>, vector<1x128xf32>
    %10 = arith.negf %5 : vector<512x128xf32>
    %11 = math.exp %10 : vector<512x128xf32>
    %cst_13 = arith.constant 1.000000e+00 : f32
    %12 = vector.broadcast %cst_13 : f32 to vector<512x128xf32>
    %13 = arith.addf %12, %11 : vector<512x128xf32>
    %14 = arith.divf %12, %13 : vector<512x128xf32>
    %15 = arith.addf %14, %6 : vector<512x128xf32>
    %16 = vector.broadcast %8 : vector<1x128xf32> to vector<512x128xf32>
    %17 = arith.mulf %16, %15 : vector<512x128xf32>
    %cst_14 = arith.constant 1.000000e+00 : f32
    %18 = vector.broadcast %cst_14 : f32 to vector<512x128xf32>
    %19 = arith.mulf %17, %18 : vector<512x128xf32>
    %20 = vector.broadcast %9 : vector<1x128xf32> to vector<512x128xf32>
    %21 = arith.mulf %5, %20 : vector<512x128xf32>
    %22 = math.exp %21 : vector<512x128xf32>
    %23 = vector.broadcast %7 : vector<1x128xf32> to vector<512x128xf32>
    %24 = arith.mulf %22, %23 : vector<512x128xf32>
    %cst_15 = arith.constant 1.000000e+00 : f32
    %25 = vector.broadcast %cst_15 : f32 to vector<512x128xf32>
    %26 = arith.mulf %24, %25 : vector<512x128xf32>
    %cst_16 = arith.constant 1.000000e+00 : f32
    %27 = vector.broadcast %cst_16 : f32 to vector<1x128xf32>
    %28 = arith.subf %27, %8 : vector<1x128xf32>
    %29 = arith.subf %28, %9 : vector<1x128xf32>
    %30 = vector.broadcast %29 : vector<1x128xf32> to vector<512x128xf32>
    %31 = arith.mulf %30, %14 : vector<512x128xf32>
    %32 = arith.addf %19, %26 : vector<512x128xf32>
    %33 = arith.addf %32, %31 : vector<512x128xf32>
    %c0_17 = arith.constant 0 : index
    %c0_18 = arith.constant 0 : index
    %34 = vector.load %arg7[%c0_17, %c0_18] : memref<512x128xf32, #tpu.memory_space<vmem>>, vector<512x128xf32>
    tpu.vector_store %arg7[%c0_17, %c0_18], %33 {strides = array<i32>} : memref<512x128xf32, #tpu.memory_space<vmem>>, vector<512x128xf32>,
    return
  }
}

</mosaic_0001>

<llo_original>
// kernel: _lambda_.8
$region0: #{_lambda_.8}
  #allocation0 [shape = 'u32[]', space=smem, size = 0x4, offset = 0x4, fixed_abs, tag = 'smem constant byte address 0x4 - core index']
  #allocation1 [shape = 'u32[144,128]{1,0:T(1,128)}', space=vmem, size = 0x12000, scoped, tag = 'internal scratch']
  %s0 = inlined_call_operand.vmem [shape: bf16[512,128], index: 0, kind: input, shape index: {}]
  %s1 = inlined_call_operand.vmem [shape: bf16[128,128], index: 1, kind: input, shape index: {}]
  %s2 = inlined_call_operand.vmem [shape: f32[1,128], index: 2, kind: input, shape index: {}]
  %s3 = inlined_call_operand.vmem [shape: f32[1,128], index: 3, kind: input, shape index: {}]
  %s4 = inlined_call_operand.vmem [shape: f32[512,128], index: 4, kind: output, shape index: {}]
  %s5 = sld [smem:[#allocation0]]
  $region26: #{_lambda_.8} parent=0
    _
  %s7 = ssub.s32 1, %s5
  %s8 = scalar_select 0, %s7, %s5
  // Predicated region
  $region2: #{_lambda_.8} parent=0 // pred_check
    _
  $region3: #{_lambda_.8} parent=0 // pred_check_branch
    %10 = sbr.rel (0) target = $region5
  $region4: #{_lambda_.8} parent=0 // pred_region
    _
  $region5: #{_lambda_.8} parent=0 // pred_fallthru
    _
  // Predicated region
  $region6: #{_lambda_.8} parent=0 // pred_check
    _
  $region7: #{_lambda_.8} parent=0 // pred_check_branch
    %12 = sbr.rel (0) target = $region9
  $region8: #{_lambda_.8} parent=0 // pred_region
    _
  $region9: #{_lambda_.8} parent=0 // pred_fallthru
    _
  // Predicated region
  $region10: #{_lambda_.8} parent=0 // pred_check
    _
  $region11: #{_lambda_.8} parent=0 // pred_check_branch
    %14 = sbr.rel (0) target = $region13
  $region12: #{_lambda_.8} parent=0 // pred_region
    _
  $region13: #{_lambda_.8} parent=0 // pred_fallthru
    _
  // Predicated region
  $region14: #{_lambda_.8} parent=0 // pred_check
    _
  $region15: #{_lambda_.8} parent=0 // pred_check_branch
    %16 = sbr.rel (0) target = $region17
  $region16: #{_lambda_.8} parent=0 // pred_region
    _
  $region17: #{_lambda_.8} parent=0 // pred_fallthru
    _
  %v18 = vld [vmem:[%s0] sm:$0xf]
  %v19 = vld [vmem:[%s0 + $0x4] sm:$0xf]
  %v20 = vld [vmem:[%s0 + $0x8] sm:$0xf]
  %v21 = vld [vmem:[%s0 + $0xc] sm:$0xf]
  %v22 = vld [vmem:[%s0 + $0x10] sm:$0xf]
  %v23 = vld [vmem:[%s0 + $0x14] sm:$0xf]
  %v24 = vld [vmem:[%s0 + $0x18] sm:$0xf]
  %v25 = vld [vmem:[%s0 + $0x1c] sm:$0xf]
  %v26 = vld [vmem:[%s0 + $0x20] sm:$0xf]
  %v27 = vld [vmem:[%s0 + $0x24] sm:$0xf]
  %v28 = vld [vmem:[%s0 + $0x28] sm:$0xf]
  %v29 = vld [vmem:[%s0 + $0x2c] sm:$0xf]
  %v30 = vld [vmem:[%s0 + $0x30] sm:$0xf]
  %v31 = vld [vmem:[%s0 + $0x34] sm:$0xf]
  %v32 = vld [vmem:[%s0 + $0x38] sm:$0xf]
  %v33 = vld [vmem:[%s0 + $0x3c] sm:$0xf]
  %v34 = vld [vmem:[%s0 + $0x40] sm:$0xf]
  %v35 = vld [vmem:[%s0 + $0x44] sm:$0xf]
  %v36 = vld [vmem:[%s0 + $0x48] sm:$0xf]
  %v37 = vld [vmem:[%s0 + $0x4c] sm:$0xf]
  %v38 = vld [vmem:[%s0 + $0x50] sm:$0xf]
  %v39 = vld [vmem:[%s0 + $0x54] sm:$0xf]
  %v40 = vld [vmem:[%s0 + $0x58] sm:$0xf]
  %v41 = vld [vmem:[%s0 + $0x5c] sm:$0xf]
  %v42 = vld [vmem:[%s0 + $0x60] sm:$0xf]
  %v43 = vld [vmem:[%s0 + $0x64] sm:$0xf]
  %v44 = vld [vmem:[%s0 + $0x68] sm:$0xf]
  %v45 = vld [vmem:[%s0 + $0x6c] sm:$0xf]
  %v46 = vld [vmem:[%s0 + $0x70] sm:$0xf]
  %v47 = vld [vmem:[%s0 + $0x74] sm:$0xf]
  %v48 = vld [vmem:[%s0 + $0x78] sm:$0xf]
  %v49 = vld [vmem:[%s0 + $0x7c] sm:$0xf]
  %v50 = vld [vmem:[%s0 + $0x80] sm:$0xf]
  %v51 = vld [vmem:[%s0 + $0x84] sm:$0xf]
  %v52 = vld [vmem:[%s0 + $0x88] sm:$0xf]
  %v53 = vld [vmem:[%s0 + $0x8c] sm:$0xf]
  %v54 = vld [vmem:[%s0 + $0x90] sm:$0xf]
  %v55 = vld [vmem:[%s0 + $0x94] sm:$0xf]
  %v56 = vld [vmem:[%s0 + $0x98] sm:$0xf]
  %v57 = vld [vmem:[%s0 + $0x9c] sm:$0xf]
  %v58 = vld [vmem:[%s0 + $0xa0] sm:$0xf]
  %v59 = vld [vmem:[%s0 + $0xa4] sm:$0xf]
  %v60 = vld [vmem:[%s0 + $0xa8] sm:$0xf]
  %v61 = vld [vmem:[%s0 + $0xac] sm:$0xf]
  %v62 = vld [vmem:[%s0 + $0xb0] sm:$0xf]
  %v63 = vld [vmem:[%s0 + $0xb4] sm:$0xf]
  %v64 = vld [vmem:[%s0 + $0xb8] sm:$0xf]
  %v65 = vld [vmem:[%s0 + $0xbc] sm:$0xf]
  %v66 = vld [vmem:[%s0 + $0xc0] sm:$0xf]
  %v67 = vld [vmem:[%s0 + $0xc4] sm:$0xf]
  %v68 = vld [vmem:[%s0 + $0xc8] sm:$0xf]
  %v69 = vld [vmem:[%s0 + $0xcc] sm:$0xf]
  %v70 = vld [vmem:[%s0 + $0xd0] sm:$0xf]
  %v71 = vld [vmem:[%s0 + $0xd4] sm:$0xf]
  %v72 = vld [vmem:[%s0 + $0xd8] sm:$0xf]
  %v73 = vld [vmem:[%s0 + $0xdc] sm:$0xf]
  %v74 = vld [vmem:[%s0 + $0xe0] sm:$0xf]
  %v75 = vld [vmem:[%s0 + $0xe4] sm:$0xf]
  %v76 = vld [vmem:[%s0 + $0xe8] sm:$0xf]
  %v77 = vld [vmem:[%s0 + $0xec] sm:$0xf]
  %v78 = vld [vmem:[%s0 + $0xf0] sm:$0xf]
  %v79 = vld [vmem:[%s0 + $0xf4] sm:$0xf]
  %v80 = vld [vmem:[%s0 + $0xf8] sm:$0xf]
  %v81 = vld [vmem:[%s0 + $0xfc] sm:$0xf]
  %v82 = vld [vmem:[%s1] sm:$0xf]
  %v83 = vld [vmem:[%s1 + $0x4] sm:$0xf]
  %v84 = vld [vmem:[%s1 + $0x8] sm:$0xf]
  %v85 = vld [vmem:[%s1 + $0xc] sm:$0xf]
  %v86 = vld [vmem:[%s1 + $0x10] sm:$0xf]
  %v87 = vld [vmem:[%s1 + $0x14] sm:$0xf]
  %v88 = vld [vmem:[%s1 + $0x18] sm:$0xf]
  %v89 = vld [vmem:[%s1 + $0x1c] sm:$0xf]
  %v90 = vld [vmem:[%s1 + $0x20] sm:$0xf]
  %v91 = vld [vmem:[%s1 + $0x24] sm:$0xf]
  %v92 = vld [vmem:[%s1 + $0x28] sm:$0xf]
  %v93 = vld [vmem:[%s1 + $0x2c] sm:$0xf]
  %v94 = vld [vmem:[%s1 + $0x30] sm:$0xf]
  %v95 = vld [vmem:[%s1 + $0x34] sm:$0xf]
  %v96 = vld [vmem:[%s1 + $0x38] sm:$0xf]
  %v97 = vld [vmem:[%s1 + $0x3c] sm:$0xf]
  %v162 = vunpack.c.l.b16 %v18
  %v163 = vunpack.c.l.b16 %v19
  %v164 = vunpack.c.l.b16 %v20
  %v165 = vunpack.c.l.b16 %v21
  %v166 = vunpack.c.l.b16 %v22
  %v167 = vunpack.c.l.b16 %v23
  %v168 = vunpack.c.l.b16 %v24
  %v169 = vunpack.c.l.b16 %v25
  %v170 = vunpack.c.l.b16 %v26
  %v171 = vunpack.c.l.b16 %v27
  %v172 = vunpack.c.l.b16 %v28
  %v173 = vunpack.c.l.b16 %v29
  %v174 = vunpack.c.l.b16 %v30
  %v175 = vunpack.c.l.b16 %v31
  %v176 = vunpack.c.l.b16 %v32
  %v177 = vunpack.c.l.b16 %v33
  %v178 = vunpack.c.l.b16 %v34
  %v179 = vunpack.c.l.b16 %v35
  %v180 = vunpack.c.l.b16 %v36
  %v181 = vunpack.c.l.b16 %v37
  %v182 = vunpack.c.l.b16 %v38
  %v183 = vunpack.c.l.b16 %v39
  %v184 = vunpack.c.l.b16 %v40
  %v185 = vunpack.c.l.b16 %v41
  %v186 = vunpack.c.l.b16 %v42
  %v187 = vunpack.c.l.b16 %v43
  %v188 = vunpack.c.l.b16 %v44
  %v189 = vunpack.c.l.b16 %v45
  %v190 = vunpack.c.l.b16 %v46
  %v191 = vunpack.c.l.b16 %v47
  %v192 = vunpack.c.l.b16 %v48
  %v193 = vunpack.c.l.b16 %v49
  %v194 = vunpack.c.l.b16 %v50
  %v195 = vunpack.c.l.b16 %v51
  %v196 = vunpack.c.l.b16 %v52
  %v197 = vunpack.c.l.b16 %v53
  %v198 = vunpack.c.l.b16 %v54
  %v199 = vunpack.c.l.b16 %v55
  %v200 = vunpack.c.l.b16 %v56
  %v201 = vunpack.c.l.b16 %v57
  %v202 = vunpack.c.l.b16 %v58
  %v203 = vunpack.c.l.b16 %v59
  %v204 = vunpack.c.l.b16 %v60
  %v205 = vunpack.c.l.b16 %v61
  %v206 = vunpack.c.l.b16 %v62
  %v207 = vunpack.c.l.b16 %v63
  %v208 = vunpack.c.l.b16 %v64
  %v209 = vunpack.c.l.b16 %v65
  %v210 = vunpack.c.l.b16 %v66
  %v211 = vunpack.c.l.b16 %v67
  %v212 = vunpack.c.l.b16 %v68
  %v213 = vunpack.c.l.b16 %v69
  %v214 = vunpack.c.l.b16 %v70
  %v215 = vunpack.c.l.b16 %v71
  %v216 = vunpack.c.l.b16 %v72
  %v217 = vunpack.c.l.b16 %v73
  %v218 = vunpack.c.l.b16 %v74
  %v219 = vunpack.c.l.b16 %v75
  %v220 = vunpack.c.l.b16 %v76
  %v221 = vunpack.c.l.b16 %v77
  %v222 = vunpack.c.l.b16 %v78
  %v223 = vunpack.c.l.b16 %v79
  %v224 = vunpack.c.l.b16 %v80
  %v225 = vunpack.c.l.b16 %v81
  %v226 = vpack.c.b16 %v163, %v162
  %v227 = vpack.c.b16 %v165, %v164
  %v228 = vpack.c.b16 %v167, %v166
  %v229 = vpack.c.b16 %v169, %v168
  %v230 = vpack.c.b16 %v171, %v170
  %v231 = vpack.c.b16 %v173, %v172
  %v232 = vpack.c.b16 %v175, %v174
  %v233 = vpack.c.b16 %v177, %v176
  %v234 = vpack.c.b16 %v179, %v178
  %v235 = vpack.c.b16 %v181, %v180
  %v236 = vpack.c.b16 %v183, %v182
  %v237 = vpack.c.b16 %v185, %v184
  %v238 = vpack.c.b16 %v187, %v186
  %v239 = vpack.c.b16 %v189, %v188
  %v240 = vpack.c.b16 %v191, %v190
  %v241 = vpack.c.b16 %v193, %v192
  %v242 = vpack.c.b16 %v195, %v194
  %v243 = vpack.c.b16 %v197, %v196
  %v244 = vpack.c.b16 %v199, %v198
  %v245 = vpack.c.b16 %v201, %v200
  %v246 = vpack.c.b16 %v203, %v202
  %v247 = vpack.c.b16 %v205, %v204
  %v248 = vpack.c.b16 %v207, %v206
  %v249 = vpack.c.b16 %v209, %v208
  %v250 = vpack.c.b16 %v211, %v210
  %v251 = vpack.c.b16 %v213, %v212
  %v252 = vpack.c.b16 %v215, %v214
  %v253 = vpack.c.b16 %v217, %v216
  %v254 = vpack.c.b16 %v219, %v218
  %v255 = vpack.c.b16 %v221, %v220
  %v256 = vpack.c.b16 %v223, %v222
  %v257 = vpack.c.b16 %v225, %v224
  %v306 = vunpack.c.l.b16 %v82
  %v307 = vunpack.c.l.b16 %v83
  %v308 = vunpack.c.l.b16 %v84
  %v309 = vunpack.c.l.b16 %v85
  %v310 = vunpack.c.l.b16 %v86
  %v311 = vunpack.c.l.b16 %v87
  %v312 = vunpack.c.l.b16 %v88
  %v313 = vunpack.c.l.b16 %v89
  %v314 = vunpack.c.l.b16 %v90
  %v315 = vunpack.c.l.b16 %v91
  %v316 = vunpack.c.l.b16 %v92
  %v317 = vunpack.c.l.b16 %v93
  %v318 = vunpack.c.l.b16 %v94
  %v319 = vunpack.c.l.b16 %v95
  %v320 = vunpack.c.l.b16 %v96
  %v321 = vunpack.c.l.b16 %v97
  %v322 = vpack.c.b16 %v307, %v306
  %v323 = vpack.c.b16 %v309, %v308
  %v324 = vpack.c.b16 %v311, %v310
  %v325 = vpack.c.b16 %v313, %v312
  %v326 = vpack.c.b16 %v315, %v314
  %v327 = vpack.c.b16 %v317, %v316
  %v328 = vpack.c.b16 %v319, %v318
  %v329 = vpack.c.b16 %v321, %v320
  %338 = vmatprep.subr.bf16.mxu0 0
  %339 = vmatpush1.bf16.msra.mxu0 %v329
  %340 = vmatprep.subr.bf16.mxu0 0
  %341 = vmatpush1.bf16.msra.mxu0 %v328
  %342 = vmatprep.subr.bf16.mxu0 0
  %343 = vmatpush1.bf16.msra.mxu0 %v327
  %344 = vmatprep.subr.bf16.mxu0 0
  %345 = vmatpush1.bf16.msra.mxu0 %v326
  %346 = vmatprep.subr.bf16.mxu0 0
  %347 = vmatpush1.bf16.msra.mxu0 %v325
  %348 = vmatprep.subr.bf16.mxu0 0
  %349 = vmatpush1.bf16.msra.mxu0 %v324
  %350 = vmatprep.subr.bf16.mxu0 0
  %351 = vmatpush1.bf16.msra.mxu0 %v323
  %352 = vmatprep.subr.bf16.mxu0 0
  %353 = vmatpush1.bf16.msra.mxu0 %v322
  %354 = vmatprep.subr.bf16.mxu0 0
  %355 = vmatpush2.bf16.msra.mxu0 0
  %356 = vmatprep.subr.bf16.mxu0 0
  %357 = vmatpush2.bf16.msra.mxu0 0
  %358 = vmatprep.subr.bf16.mxu0 0
  %359 = vmatpush2.bf16.msra.mxu0 0
  %360 = vmatprep.subr.bf16.mxu0 0
  %361 = vmatpush2.bf16.msra.mxu0 0
  %362 = vmatprep.subr.bf16.mxu0 0
  %363 = vmatpush2.bf16.msra.mxu0 0
  %364 = vmatprep.subr.bf16.mxu0 0
  %365 = vmatpush2.bf16.msra.mxu0 0
  %366 = vmatprep.subr.bf16.mxu0 0
  %367 = vmatpush2.bf16.msra.mxu0 0
  %368 = vmatprep.subr.bf16.mxu0 0
  %369 = vmatpush2.bf16.msra.mxu0 0
  %370 = vmatprep.mubr.bf16.mxu0 0
  %371 = vmatmul.mubr.bf16.gmra.mxu0 %v226
  %v372 = vpop.f32.mrf.mxu0
  %v373 = vadd.f32 0.0, %v372
  %v374 = vpop.f32.mrf.mxu0
  %v375 = vpop.f32.mrf.mxu0
  %v376 = vadd.f32 0.0, %v375
  %v377 = vpop.f32.mrf.mxu0
  %378 = vmatprep.mubr.bf16.mxu0 0
  %379 = vmatmul.mubr.bf16.gmra.mxu0 %v227
  %v380 = vpop.f32.mrf.mxu0
  %v381 = vadd.f32 0.0, %v380
  %v382 = vpop.f32.mrf.mxu0
  %v383 = vpop.f32.mrf.mxu0
  %v384 = vadd.f32 0.0, %v383
  %v385 = vpop.f32.mrf.mxu0
  %386 = vmatprep.mubr.bf16.mxu0 0
  %387 = vmatmul.mubr.bf16.gmra.mxu0 %v228
  %v388 = vpop.f32.mrf.mxu0
  %v389 = vadd.f32 0.0, %v388
  %v390 = vpop.f32.mrf.mxu0
  %v391 = vpop.f32.mrf.mxu0
  %v392 = vadd.f32 0.0, %v391
  %v393 = vpop.f32.mrf.mxu0
  %394 = vmatprep.mubr.bf16.mxu0 0
  %395 = vmatmul.mubr.bf16.gmra.mxu0 %v229
  %v396 = vpop.f32.mrf.mxu0
  %v397 = vadd.f32 0.0, %v396
  %v398 = vpop.f32.mrf.mxu0
  %v399 = vpop.f32.mrf.mxu0
  %v400 = vadd.f32 0.0, %v399
  %v401 = vpop.f32.mrf.mxu0
  %402 = vmatprep.mubr.bf16.mxu0 0
  %403 = vmatmul.mubr.bf16.gmra.mxu0 %v230
  %v404 = vpop.f32.mrf.mxu0
  %v405 = vadd.f32 0.0, %v404
  %v406 = vpop.f32.mrf.mxu0
  %v407 = vpop.f32.mrf.mxu0
  %v408 = vadd.f32 0.0, %v407
  %v409 = vpop.f32.mrf.mxu0
  %410 = vmatprep.mubr.bf16.mxu0 0
  %411 = vmatmul.mubr.bf16.gmra.mxu0 %v231
  %v412 = vpop.f32.mrf.mxu0
  %v413 = vadd.f32 0.0, %v412
  %v414 = vpop.f32.mrf.mxu0
  %v415 = vpop.f32.mrf.mxu0
  %v416 = vadd.f32 0.0, %v415
  %v417 = vpop.f32.mrf.mxu0
  %418 = vmatprep.mubr.bf16.mxu0 0
  %419 = vmatmul.mubr.bf16.gmra.mxu0 %v232
  %v420 = vpop.f32.mrf.mxu0
  %v421 = vadd.f32 0.0, %v420
  %v422 = vpop.f32.mrf.mxu0
  %v423 = vpop.f32.mrf.mxu0
  %v424 = vadd.f32 0.0, %v423
  %v425 = vpop.f32.mrf.mxu0
  %426 = vmatprep.mubr.bf16.mxu0 0
  %427 = vmatmul.mubr.bf16.gmra.mxu0 %v233
  %v428 = vpop.f32.mrf.mxu0
  %v429 = vadd.f32 0.0, %v428
  %v430 = vpop.f32.mrf.mxu0
  %v431 = vpop.f32.mrf.mxu0
  %v432 = vadd.f32 0.0, %v431
  %v433 = vpop.f32.mrf.mxu0
  %434 = vmatprep.mubr.bf16.mxu0 0
  %435 = vmatmul.mubr.bf16.gmra.mxu0 %v234
  %v436 = vpop.f32.mrf.mxu0
  %v437 = vadd.f32 0.0, %v436
  %v438 = vpop.f32.mrf.mxu0
  %v439 = vpop.f32.mrf.mxu0
  %v440 = vadd.f32 0.0, %v439
  %v441 = vpop.f32.mrf.mxu0
  %442 = vmatprep.mubr.bf16.mxu0 0
  %443 = vmatmul.mubr.bf16.gmra.mxu0 %v235
  %v444 = vpop.f32.mrf.mxu0
  %v445 = vadd.f32 0.0, %v444
  %v446 = vpop.f32.mrf.mxu0
  %v447 = vpop.f32.mrf.mxu0
  %v448 = vadd.f32 0.0, %v447
  %v449 = vpop.f32.mrf.mxu0
  %450 = vmatprep.mubr.bf16.mxu0 0
  %451 = vmatmul.mubr.bf16.gmra.mxu0 %v236
  %v452 = vpop.f32.mrf.mxu0
  %v453 = vadd.f32 0.0, %v452
  %v454 = vpop.f32.mrf.mxu0
  %v455 = vpop.f32.mrf.mxu0
  %v456 = vadd.f32 0.0, %v455
  %v457 = vpop.f32.mrf.mxu0
  %458 = vmatprep.mubr.bf16.mxu0 0
  %459 = vmatmul.mubr.bf16.gmra.mxu0 %v237
  %v460 = vpop.f32.mrf.mxu0
  %v461 = vadd.f32 0.0, %v460
  %v462 = vpop.f32.mrf.mxu0
  %v463 = vpop.f32.mrf.mxu0
  %v464 = vadd.f32 0.0, %v463
  %v465 = vpop.f32.mrf.mxu0
  %466 = vmatprep.mubr.bf16.mxu0 0
  %467 = vmatmul.mubr.bf16.gmra.mxu0 %v238
  %v468 = vpop.f32.mrf.mxu0
  %v469 = vadd.f32 0.0, %v468
  %v470 = vpop.f32.mrf.mxu0
  %v471 = vpop.f32.mrf.mxu0
  %v472 = vadd.f32 0.0, %v471
  %v473 = vpop.f32.mrf.mxu0
  %474 = vmatprep.mubr.bf16.mxu0 0
  %475 = vmatmul.mubr.bf16.gmra.mxu0 %v239
  %v476 = vpop.f32.mrf.mxu0
  %v477 = vadd.f32 0.0, %v476
  %v478 = vpop.f32.mrf.mxu0
  %v479 = vpop.f32.mrf.mxu0
  %v480 = vadd.f32 0.0, %v479
  %v481 = vpop.f32.mrf.mxu0
  %482 = vmatprep.mubr.bf16.mxu0 0
  %483 = vmatmul.mubr.bf16.gmra.mxu0 %v240
  %v484 = vpop.f32.mrf.mxu0
  %v485 = vadd.f32 0.0, %v484
  %v486 = vpop.f32.mrf.mxu0
  %v487 = vpop.f32.mrf.mxu0
  %v488 = vadd.f32 0.0, %v487
  %v489 = vpop.f32.mrf.mxu0
  %490 = vmatprep.mubr.bf16.mxu0 0
  %491 = vmatmul.mubr.bf16.gmra.mxu0 %v241
  %v492 = vpop.f32.mrf.mxu0
  %v493 = vadd.f32 0.0, %v492
  %v494 = vpop.f32.mrf.mxu0
  %v495 = vpop.f32.mrf.mxu0
  %v496 = vadd.f32 0.0, %v495
  %v497 = vpop.f32.mrf.mxu0
  %498 = vmatprep.mubr.bf16.mxu0 0
  %499 = vmatmul.mubr.bf16.gmra.mxu0 %v242
  %v500 = vpop.f32.mrf.mxu0
  %v501 = vadd.f32 0.0, %v500
  %v502 = vpop.f32.mrf.mxu0
  %v503 = vpop.f32.mrf.mxu0
  %v504 = vadd.f32 0.0, %v503
  %v505 = vpop.f32.mrf.mxu0
  %506 = vmatprep.mubr.bf16.mxu0 0
  %507 = vmatmul.mubr.bf16.gmra.mxu0 %v243
  %v508 = vpop.f32.mrf.mxu0
  %v509 = vadd.f32 0.0, %v508
  %v510 = vpop.f32.mrf.mxu0
  %v511 = vpop.f32.mrf.mxu0
  %v512 = vadd.f32 0.0, %v511
  %v513 = vpop.f32.mrf.mxu0
  %514 = vmatprep.mubr.bf16.mxu0 0
  %515 = vmatmul.mubr.bf16.gmra.mxu0 %v244
  %v516 = vpop.f32.mrf.mxu0
  %v517 = vadd.f32 0.0, %v516
  %v518 = vpop.f32.mrf.mxu0
  %v519 = vpop.f32.mrf.mxu0
  %v520 = vadd.f32 0.0, %v519
  %v521 = vpop.f32.mrf.mxu0
  %522 = vmatprep.mubr.bf16.mxu0 0
  %523 = vmatmul.mubr.bf16.gmra.mxu0 %v245
  %v524 = vpop.f32.mrf.mxu0
  %v525 = vadd.f32 0.0, %v524
  %v526 = vpop.f32.mrf.mxu0
  %v527 = vpop.f32.mrf.mxu0
  %v528 = vadd.f32 0.0, %v527
  %v529 = vpop.f32.mrf.mxu0
  %530 = vmatprep.mubr.bf16.mxu0 0
  %531 = vmatmul.mubr.bf16.gmra.mxu0 %v246
  %v532 = vpop.f32.mrf.mxu0
  %v533 = vadd.f32 0.0, %v532
  %v534 = vpop.f32.mrf.mxu0
  %v535 = vpop.f32.mrf.mxu0
  %v536 = vadd.f32 0.0, %v535
  %v537 = vpop.f32.mrf.mxu0
  %538 = vmatprep.mubr.bf16.mxu0 0
  %539 = vmatmul.mubr.bf16.gmra.mxu0 %v247
  %v540 = vpop.f32.mrf.mxu0
  %v541 = vadd.f32 0.0, %v540
  %v542 = vpop.f32.mrf.mxu0
  %v543 = vpop.f32.mrf.mxu0
  %v544 = vadd.f32 0.0, %v543
  %v545 = vpop.f32.mrf.mxu0
  %546 = vmatprep.mubr.bf16.mxu0 0
  %547 = vmatmul.mubr.bf16.gmra.mxu0 %v248
  %v548 = vpop.f32.mrf.mxu0
  %v549 = vadd.f32 0.0, %v548
  %v550 = vpop.f32.mrf.mxu0
  %v551 = vpop.f32.mrf.mxu0
  %v552 = vadd.f32 0.0, %v551
  %v553 = vpop.f32.mrf.mxu0
  %554 = vmatprep.mubr.bf16.mxu0 0
  %555 = vmatmul.mubr.bf16.gmra.mxu0 %v249
  %v556 = vpop.f32.mrf.mxu0
  %v557 = vadd.f32 0.0, %v556
  %v558 = vpop.f32.mrf.mxu0
  %v559 = vpop.f32.mrf.mxu0
  %v560 = vadd.f32 0.0, %v559
  %v561 = vpop.f32.mrf.mxu0
  %562 = vmatprep.mubr.bf16.mxu0 0
  %563 = vmatmul.mubr.bf16.gmra.mxu0 %v250
  %v564 = vpop.f32.mrf.mxu0
  %v565 = vadd.f32 0.0, %v564
  %v566 = vpop.f32.mrf.mxu0
  %v567 = vpop.f32.mrf.mxu0
  %v568 = vadd.f32 0.0, %v567
  %v569 = vpop.f32.mrf.mxu0
  %570 = vmatprep.mubr.bf16.mxu0 0
  %571 = vmatmul.mubr.bf16.gmra.mxu0 %v251
  %v572 = vpop.f32.mrf.mxu0
  %v573 = vadd.f32 0.0, %v572
  %v574 = vpop.f32.mrf.mxu0
  %v575 = vpop.f32.mrf.mxu0
  %v576 = vadd.f32 0.0, %v575
  %v577 = vpop.f32.mrf.mxu0
  %578 = vmatprep.mubr.bf16.mxu0 0
  %579 = vmatmul.mubr.bf16.gmra.mxu0 %v252
  %v580 = vpop.f32.mrf.mxu0
  %v581 = vadd.f32 0.0, %v580
  %v582 = vpop.f32.mrf.mxu0
  %v583 = vpop.f32.mrf.mxu0
  %v584 = vadd.f32 0.0, %v583
  %v585 = vpop.f32.mrf.mxu0
  %586 = vmatprep.mubr.bf16.mxu0 0
  %587 = vmatmul.mubr.bf16.gmra.mxu0 %v253
  %v588 = vpop.f32.mrf.mxu0
  %v589 = vadd.f32 0.0, %v588
  %v590 = vpop.f32.mrf.mxu0
  %v591 = vpop.f32.mrf.mxu0
  %v592 = vadd.f32 0.0, %v591
  %v593 = vpop.f32.mrf.mxu0
  %594 = vmatprep.mubr.bf16.mxu0 0
  %595 = vmatmul.mubr.bf16.gmra.mxu0 %v254
  %v596 = vpop.f32.mrf.mxu0
  %v597 = vadd.f32 0.0, %v596
  %v598 = vpop.f32.mrf.mxu0
  %v599 = vpop.f32.mrf.mxu0
  %v600 = vadd.f32 0.0, %v599
  %v601 = vpop.f32.mrf.mxu0
  %602 = vmatprep.mubr.bf16.mxu0 0
  %603 = vmatmul.mubr.bf16.gmra.mxu0 %v255
  %v604 = vpop.f32.mrf.mxu0
  %v605 = vadd.f32 0.0, %v604
  %v606 = vpop.f32.mrf.mxu0
  %v607 = vpop.f32.mrf.mxu0
  %v608 = vadd.f32 0.0, %v607
  %v609 = vpop.f32.mrf.mxu0
  %610 = vmatprep.mubr.bf16.mxu0 0
  %611 = vmatmul.mubr.bf16.gmra.mxu0 %v256
  %v612 = vpop.f32.mrf.mxu0
  %v613 = vadd.f32 0.0, %v612
  %v614 = vpop.f32.mrf.mxu0
  %v615 = vpop.f32.mrf.mxu0
  %v616 = vadd.f32 0.0, %v615
  %v617 = vpop.f32.mrf.mxu0
  %618 = vmatprep.mubr.bf16.mxu0 0
  %619 = vmatmul.mubr.bf16.gmra.mxu0 %v257
  %v620 = vpop.f32.mrf.mxu0
  %v621 = vadd.f32 0.0, %v620
  %v622 = vpop.f32.mrf.mxu0
  %v623 = vpop.f32.mrf.mxu0
  %v624 = vadd.f32 0.0, %v623
  %v625 = vpop.f32.mrf.mxu0
  %626 = vdwg.mxu0
  %v627 = vld [vmem:[%s2] sm:$0x1]
  %v628 = vld [vmem:[%s3] sm:$0x1]
  %v629 = vadd.f32 %v373, %v376
  %v630 = vadd.f32 %v629, %v381
  %v631 = vadd.f32 %v630, %v384
  %v632 = vadd.f32 %v631, %v389
  %v633 = vadd.f32 %v632, %v392
  %v634 = vadd.f32 %v633, %v397
  %v635 = vadd.f32 %v634, %v400
  %v636 = vadd.f32 %v635, %v405
  %v637 = vadd.f32 %v636, %v408
  %v638 = vadd.f32 %v637, %v413
  %v639 = vadd.f32 %v638, %v416
  %v640 = vadd.f32 %v639, %v421
  %v641 = vadd.f32 %v640, %v424
  %v642 = vadd.f32 %v641, %v429
  %v643 = vadd.f32 %v642, %v432
  %v644 = vadd.f32 %v643, %v437
  %v645 = vadd.f32 %v644, %v440
  %v646 = vadd.f32 %v645, %v445
  %v647 = vadd.f32 %v646, %v448
  %v648 = vadd.f32 %v647, %v453
  %v649 = vadd.f32 %v648, %v456
  %v650 = vadd.f32 %v649, %v461
  %v651 = vadd.f32 %v650, %v464
  %v652 = vadd.f32 %v651, %v469
  %v653 = vadd.f32 %v652, %v472
  %v654 = vadd.f32 %v653, %v477
  %v655 = vadd.f32 %v654, %v480
  %v656 = vadd.f32 %v655, %v485
  %v657 = vadd.f32 %v656, %v488
  %v658 = vadd.f32 %v657, %v493
  %v659 = vadd.f32 %v658, %v496
  %v660 = vadd.f32 %v659, %v501
  %v661 = vadd.f32 %v660, %v504
  %v662 = vadd.f32 %v661, %v509
  %v663 = vadd.f32 %v662, %v512
  %v664 = vadd.f32 %v663, %v517
  %v665 = vadd.f32 %v664, %v520
  %v666 = vadd.f32 %v665, %v525
  %v667 = vadd.f32 %v666, %v528
  %v668 = vadd.f32 %v667, %v533
  %v669 = vadd.f32 %v668, %v536
  %v670 = vadd.f32 %v669, %v541
  %v671 = vadd.f32 %v670, %v544
  %v672 = vadd.f32 %v671, %v549
  %v673 = vadd.f32 %v672, %v552
  %v674 = vadd.f32 %v673, %v557
  %v675 = vadd.f32 %v674, %v560
  %v676 = vadd.f32 %v675, %v565
  %v677 = vadd.f32 %v676, %v568
  %v678 = vadd.f32 %v677, %v573
  %v679 = vadd.f32 %v678, %v576
  %v680 = vadd.f32 %v679, %v581
  %v681 = vadd.f32 %v680, %v584
  %v682 = vadd.f32 %v681, %v589
  %v683 = vadd.f32 %v682, %v592
  %v684 = vadd.f32 %v683, %v597
  %v685 = vadd.f32 %v684, %v600
  %v686 = vadd.f32 %v685, %v605
  %v687 = vadd.f32 %v686, %v608
  %v688 = vadd.f32 %v687, %v613
  %v689 = vadd.f32 %v688, %v616
  %v690 = vadd.f32 %v689, %v621
  %v691 = vadd.f32 %v690, %v624
  %v692 = vrot.slane %v691, 4
  %v693 = vadd.f32 %v691, %v692
  %v694 = vrot.slane %v693, 2
  %v695 = vadd.f32 %v693, %v694
  %v696 = vrot.slane %v695, 1
  %v697 = vadd.f32 %v695, %v696
  %v698 = vrcp.pop 512.0
  %v699 = vmul.f32 %v697, %v698
  %v700 = vmul.f32 %v373, %v373
  %v701 = vmul.f32 %v376, %v376
  %v702 = vmul.f32 %v381, %v381
  %v703 = vmul.f32 %v384, %v384
  %v704 = vmul.f32 %v389, %v389
  %v705 = vmul.f32 %v392, %v392
  %v706 = vmul.f32 %v397, %v397
  %v707 = vmul.f32 %v400, %v400
  %v708 = vmul.f32 %v405, %v405
  %v709 = vmul.f32 %v408, %v408
  %v710 = vmul.f32 %v413, %v413
  %v711 = vmul.f32 %v416, %v416
  %v712 = vmul.f32 %v421, %v421
  %v713 = vmul.f32 %v424, %v424
  %v714 = vmul.f32 %v429, %v429
  %v715 = vmul.f32 %v432, %v432
  %v716 = vmul.f32 %v437, %v437
  %v717 = vmul.f32 %v440, %v440
  %v718 = vmul.f32 %v445, %v445
  %v719 = vmul.f32 %v448, %v448
  %v720 = vmul.f32 %v453, %v453
  %v721 = vmul.f32 %v456, %v456
  %v722 = vmul.f32 %v461, %v461
  %v723 = vmul.f32 %v464, %v464
  %v724 = vmul.f32 %v469, %v469
  %v725 = vmul.f32 %v472, %v472
  %v726 = vmul.f32 %v477, %v477
  %v727 = vmul.f32 %v480, %v480
  %v728 = vmul.f32 %v485, %v485
  %v729 = vmul.f32 %v488, %v488
  %v730 = vmul.f32 %v493, %v493
  %v731 = vmul.f32 %v496, %v496
  %v732 = vmul.f32 %v501, %v501
  %v733 = vmul.f32 %v504, %v504
  %v734 = vmul.f32 %v509, %v509
  %v735 = vmul.f32 %v512, %v512
  %v736 = vmul.f32 %v517, %v517
  %v737 = vmul.f32 %v520, %v520
  %v738 = vmul.f32 %v525, %v525
  %v739 = vmul.f32 %v528, %v528
  %v740 = vmul.f32 %v533, %v533
  %v741 = vmul.f32 %v536, %v536
  %v742 = vmul.f32 %v541, %v541
  %v743 = vmul.f32 %v544, %v544
  %v744 = vmul.f32 %v549, %v549
  %v745 = vmul.f32 %v552, %v552
  %v746 = vmul.f32 %v557, %v557
  %v747 = vmul.f32 %v560, %v560
  %v748 = vmul.f32 %v565, %v565
  %v749 = vmul.f32 %v568, %v568
  %v750 = vmul.f32 %v573, %v573
  %v751 = vmul.f32 %v576, %v576
  %v752 = vmul.f32 %v581, %v581
  %v753 = vmul.f32 %v584, %v584
  %v754 = vmul.f32 %v589, %v589
  %v755 = vmul.f32 %v592, %v592
  %v756 = vmul.f32 %v597, %v597
  %v757 = vmul.f32 %v600, %v600
  %v758 = vmul.f32 %v605, %v605
  %v759 = vmul.f32 %v608, %v608
  %v760 = vmul.f32 %v613, %v613
  %v761 = vmul.f32 %v616, %v616
  %v762 = vmul.f32 %v621, %v621
  %v763 = vmul.f32 %v624, %v624
  %v764 = vadd.f32 %v700, %v701
  %v765 = vadd.f32 %v764, %v702
  %v766 = vadd.f32 %v765, %v703
  %v767 = vadd.f32 %v766, %v704
  %v768 = vadd.f32 %v767, %v705
  %v769 = vadd.f32 %v768, %v706
  %v770 = vadd.f32 %v769, %v707
  %v771 = vadd.f32 %v770, %v708
  %v772 = vadd.f32 %v771, %v709
  %v773 = vadd.f32 %v772, %v710
  %v774 = vadd.f32 %v773, %v711
  %v775 = vadd.f32 %v774, %v712
  %v776 = vadd.f32 %v775, %v713
  %v777 = vadd.f32 %v776, %v714
  %v778 = vadd.f32 %v777, %v715
  %v779 = vadd.f32 %v778, %v716
  %v780 = vadd.f32 %v779, %v717
  %v781 = vadd.f32 %v780, %v718
  %v782 = vadd.f32 %v781, %v719
  %v783 = vadd.f32 %v782, %v720
  %v784 = vadd.f32 %v783, %v721
  %v785 = vadd.f32 %v784, %v722
  %v786 = vadd.f32 %v785, %v723
  %v787 = vadd.f32 %v786, %v724
  %v788 = vadd.f32 %v787, %v725
  %v789 = vadd.f32 %v788, %v726
  %v790 = vadd.f32 %v789, %v727
  %v791 = vadd.f32 %v790, %v728
  %v792 = vadd.f32 %v791, %v729
  %v793 = vadd.f32 %v792, %v730
  %v794 = vadd.f32 %v793, %v731
  %v795 = vadd.f32 %v794, %v732
  %v796 = vadd.f32 %v795, %v733
  %v797 = vadd.f32 %v796, %v734
  %v798 = vadd.f32 %v797, %v735
  %v799 = vadd.f32 %v798, %v736
  %v800 = vadd.f32 %v799, %v737
  %v801 = vadd.f32 %v800, %v738
  %v802 = vadd.f32 %v801, %v739
  %v803 = vadd.f32 %v802, %v740
  %v804 = vadd.f32 %v803, %v741
  %v805 = vadd.f32 %v804, %v742
  %v806 = vadd.f32 %v805, %v743
  %v807 = vadd.f32 %v806, %v744
  %v808 = vadd.f32 %v807, %v745
  %v809 = vadd.f32 %v808, %v746
  %v810 = vadd.f32 %v809, %v747
  %v811 = vadd.f32 %v810, %v748
  %v812 = vadd.f32 %v811, %v749
  %v813 = vadd.f32 %v812, %v750
  %v814 = vadd.f32 %v813, %v751
  %v815 = vadd.f32 %v814, %v752
  %v816 = vadd.f32 %v815, %v753
  %v817 = vadd.f32 %v816, %v754
  %v818 = vadd.f32 %v817, %v755
  %v819 = vadd.f32 %v818, %v756
  %v820 = vadd.f32 %v819, %v757
  %v821 = vadd.f32 %v820, %v758
  %v822 = vadd.f32 %v821, %v759
  %v823 = vadd.f32 %v822, %v760
  %v824 = vadd.f32 %v823, %v761
  %v825 = vadd.f32 %v824, %v762
  %v826 = vadd.f32 %v825, %v763
  %v827 = vrot.slane %v826, 4
  %v828 = vadd.f32 %v826, %v827
  %v829 = vrot.slane %v828, 2
  %v830 = vadd.f32 %v828, %v829
  %v831 = vrot.slane %v830, 1
  %v832 = vadd.f32 %v830, %v831
  %v833 = vmul.f32 %v832, %v698
  %v834 = vmul.f32 %v699, %v699
  %v835 = vsub.f32 %v833, %v834
  %v836 = vsub.f32 %v373, %v699
  %v837 = vsub.f32 %v376, %v699
  %v838 = vsub.f32 %v381, %v699
  %v839 = vsub.f32 %v384, %v699
  %v840 = vsub.f32 %v389, %v699
  %v841 = vsub.f32 %v392, %v699
  %v842 = vsub.f32 %v397, %v699
  %v843 = vsub.f32 %v400, %v699
  %v844 = vsub.f32 %v405, %v699
  %v845 = vsub.f32 %v408, %v699
  %v846 = vsub.f32 %v413, %v699
  %v847 = vsub.f32 %v416, %v699
  %v848 = vsub.f32 %v421, %v699
  %v849 = vsub.f32 %v424, %v699
  %v850 = vsub.f32 %v429, %v699
  %v851 = vsub.f32 %v432, %v699
  %v852 = vsub.f32 %v437, %v699
  %v853 = vsub.f32 %v440, %v699
  %v854 = vsub.f32 %v445, %v699
  %v855 = vsub.f32 %v448, %v699
  %v856 = vsub.f32 %v453, %v699
  %v857 = vsub.f32 %v456, %v699
  %v858 = vsub.f32 %v461, %v699
  %v859 = vsub.f32 %v464, %v699
  %v860 = vsub.f32 %v469, %v699
  %v861 = vsub.f32 %v472, %v699
  %v862 = vsub.f32 %v477, %v699
  %v863 = vsub.f32 %v480, %v699
  %v864 = vsub.f32 %v485, %v699
  %v865 = vsub.f32 %v488, %v699
  %v866 = vsub.f32 %v493, %v699
  %v867 = vsub.f32 %v496, %v699
  %v868 = vsub.f32 %v501, %v699
  %v869 = vsub.f32 %v504, %v699
  %v870 = vsub.f32 %v509, %v699
  %v871 = vsub.f32 %v512, %v699
  %v872 = vsub.f32 %v517, %v699
  %v873 = vsub.f32 %v520, %v699
  %v874 = vsub.f32 %v525, %v699
  %v875 = vsub.f32 %v528, %v699
  %v876 = vsub.f32 %v533, %v699
  %v877 = vsub.f32 %v536, %v699
  %v878 = vsub.f32 %v541, %v699
  %v879 = vsub.f32 %v544, %v699
  %v880 = vsub.f32 %v549, %v699
  %v881 = vsub.f32 %v552, %v699
  %v882 = vsub.f32 %v557, %v699
  %v883 = vsub.f32 %v560, %v699
  %v884 = vsub.f32 %v565, %v699
  %v885 = vsub.f32 %v568, %v699
  %v886 = vsub.f32 %v573, %v699
  %v887 = vsub.f32 %v576, %v699
  %v888 = vsub.f32 %v581, %v699
  %v889 = vsub.f32 %v584, %v699
  %v890 = vsub.f32 %v589, %v699
  %v891 = vsub.f32 %v592, %v699
  %v892 = vsub.f32 %v597, %v699
  %v893 = vsub.f32 %v600, %v699
  %v894 = vsub.f32 %v605, %v699
  %v895 = vsub.f32 %v608, %v699
  %v896 = vsub.f32 %v613, %v699
  %v897 = vsub.f32 %v616, %v699
  %v898 = vsub.f32 %v621, %v699
  %v899 = vsub.f32 %v624, %v699
  %v900 = vadd.f32 %v835, 1e-05
  %v901 = vrsqrt.pop %v900
  %v902 = vmul.f32 %v836, %v901
  %v903 = vmul.f32 %v837, %v901
  %v904 = vmul.f32 %v838, %v901
  %v905 = vmul.f32 %v839, %v901
  %v906 = vmul.f32 %v840, %v901
  %v907 = vmul.f32 %v841, %v901
  %v908 = vmul.f32 %v842, %v901
  %v909 = vmul.f32 %v843, %v901
  %v910 = vmul.f32 %v844, %v901
  %v911 = vmul.f32 %v845, %v901
  %v912 = vmul.f32 %v846, %v901
  %v913 = vmul.f32 %v847, %v901
  %v914 = vmul.f32 %v848, %v901
  %v915 = vmul.f32 %v849, %v901
  %v916 = vmul.f32 %v850, %v901
  %v917 = vmul.f32 %v851, %v901
  %v918 = vmul.f32 %v852, %v901
  %v919 = vmul.f32 %v853, %v901
  %v920 = vmul.f32 %v854, %v901
  %v921 = vmul.f32 %v855, %v901
  %v922 = vmul.f32 %v856, %v901
  %v923 = vmul.f32 %v857, %v901
  %v924 = vmul.f32 %v858, %v901
  %v925 = vmul.f32 %v859, %v901
  %v926 = vmul.f32 %v860, %v901
  %v927 = vmul.f32 %v861, %v901
  %v928 = vmul.f32 %v862, %v901
  %v929 = vmul.f32 %v863, %v901
  %v930 = vmul.f32 %v864, %v901
  %v931 = vmul.f32 %v865, %v901
  %v932 = vmul.f32 %v866, %v901
  %v933 = vmul.f32 %v867, %v901
  %v934 = vmul.f32 %v868, %v901
  %v935 = vmul.f32 %v869, %v901
  %v936 = vmul.f32 %v870, %v901
  %v937 = vmul.f32 %v871, %v901
  %v938 = vmul.f32 %v872, %v901
  %v939 = vmul.f32 %v873, %v901
  %v940 = vmul.f32 %v874, %v901
  %v941 = vmul.f32 %v875, %v901
  %v942 = vmul.f32 %v876, %v901
  %v943 = vmul.f32 %v877, %v901
  %v944 = vmul.f32 %v878, %v901
  %v945 = vmul.f32 %v879, %v901
  %v946 = vmul.f32 %v880, %v901
  %v947 = vmul.f32 %v881, %v901
  %v948 = vmul.f32 %v882, %v901
  %v949 = vmul.f32 %v883, %v901
  %v950 = vmul.f32 %v884, %v901
  %v951 = vmul.f32 %v885, %v901
  %v952 = vmul.f32 %v886, %v901
  %v953 = vmul.f32 %v887, %v901
  %v954 = vmul.f32 %v888, %v901
  %v955 = vmul.f32 %v889, %v901
  %v956 = vmul.f32 %v890, %v901
  %v957 = vmul.f32 %v891, %v901
  %v958 = vmul.f32 %v892, %v901
  %v959 = vmul.f32 %v893, %v901
  %v960 = vmul.f32 %v894, %v901
  %v961 = vmul.f32 %v895, %v901
  %v962 = vmul.f32 %v896, %v901
  %v963 = vmul.f32 %v897, %v901
  %v964 = vmul.f32 %v898, %v901
  %v965 = vmul.f32 %v899, %v901
  %v967 = vlaneseq
  %v968 = vshrl.u32 %v967, 7
  %v969 = vsub.s32 0, %v968
  %v970 = vrot.slane %v627, %v969
  %v972 = vmul.f32 %v902, %v970
  %v973 = vmul.f32 %v903, %v970
  %v974 = vmul.f32 %v904, %v970
  %v975 = vmul.f32 %v905, %v970
  %v976 = vmul.f32 %v906, %v970
  %v977 = vmul.f32 %v907, %v970
  %v978 = vmul.f32 %v908, %v970
  %v979 = vmul.f32 %v909, %v970
  %v980 = vmul.f32 %v910, %v970
  %v981 = vmul.f32 %v911, %v970
  %v982 = vmul.f32 %v912, %v970
  %v983 = vmul.f32 %v913, %v970
  %v984 = vmul.f32 %v914, %v970
  %v985 = vmul.f32 %v915, %v970
  %v986 = vmul.f32 %v916, %v970
  %v987 = vmul.f32 %v917, %v970
  %v988 = vmul.f32 %v918, %v970
  %v989 = vmul.f32 %v919, %v970
  %v990 = vmul.f32 %v920, %v970
  %v991 = vmul.f32 %v921, %v970
  %v992 = vmul.f32 %v922, %v970
  %v993 = vmul.f32 %v923, %v970
  %v994 = vmul.f32 %v924, %v970
  %v995 = vmul.f32 %v925, %v970
  %v996 = vmul.f32 %v926, %v970
  %v997 = vmul.f32 %v927, %v970
  %v998 = vmul.f32 %v928, %v970
  %v999 = vmul.f32 %v929, %v970
  %v1000 = vmul.f32 %v930, %v970
  %v1001 = vmul.f32 %v931, %v970
  %v1002 = vmul.f32 %v932, %v970
  %v1003 = vmul.f32 %v933, %v970
  %v1004 = vmul.f32 %v934, %v970
  %v1005 = vmul.f32 %v935, %v970
  %v1006 = vmul.f32 %v936, %v970
  %v1007 = vmul.f32 %v937, %v970
  %v1008 = vmul.f32 %v938, %v970
  %v1009 = vmul.f32 %v939, %v970
  %v1010 = vmul.f32 %v940, %v970
  %v1011 = vmul.f32 %v941, %v970
  %v1012 = vmul.f32 %v942, %v970
  %v1013 = vmul.f32 %v943, %v970
  %v1014 = vmul.f32 %v944, %v970
  %v1015 = vmul.f32 %v945, %v970
  %v1016 = vmul.f32 %v946, %v970
  %v1017 = vmul.f32 %v947, %v970
  %v1018 = vmul.f32 %v948, %v970
  %v1019 = vmul.f32 %v949, %v970
  %v1020 = vmul.f32 %v950, %v970
  %v1021 = vmul.f32 %v951, %v970
  %v1022 = vmul.f32 %v952, %v970
  %v1023 = vmul.f32 %v953, %v970
  %v1024 = vmul.f32 %v954, %v970
  %v1025 = vmul.f32 %v955, %v970
  %v1026 = vmul.f32 %v956, %v970
  %v1027 = vmul.f32 %v957, %v970
  %v1028 = vmul.f32 %v958, %v970
  %v1029 = vmul.f32 %v959, %v970
  %v1030 = vmul.f32 %v960, %v970
  %v1031 = vmul.f32 %v961, %v970
  %v1032 = vmul.f32 %v962, %v970
  %v1033 = vmul.f32 %v963, %v970
  %v1034 = vmul.f32 %v964, %v970
  %v1035 = vmul.f32 %v965, %v970
  %v1037 = vlaneseq
  %v1038 = vshrl.u32 %v1037, 7
  %v1039 = vsub.s32 0, %v1038
  %v1040 = vrot.slane %v628, %v1039
  %v1042 = vadd.f32 %v972, %v1040
  %v1043 = vadd.f32 %v973, %v1040
  %v1044 = vadd.f32 %v974, %v1040
  %v1045 = vadd.f32 %v975, %v1040
  %v1046 = vadd.f32 %v976, %v1040
  %v1047 = vadd.f32 %v977, %v1040
  %v1048 = vadd.f32 %v978, %v1040
  %v1049 = vadd.f32 %v979, %v1040
  %v1050 = vadd.f32 %v980, %v1040
  %v1051 = vadd.f32 %v981, %v1040
  %v1052 = vadd.f32 %v982, %v1040
  %v1053 = vadd.f32 %v983, %v1040
  %v1054 = vadd.f32 %v984, %v1040
  %v1055 = vadd.f32 %v985, %v1040
  %v1056 = vadd.f32 %v986, %v1040
  %v1057 = vadd.f32 %v987, %v1040
  %v1058 = vadd.f32 %v988, %v1040
  %v1059 = vadd.f32 %v989, %v1040
  %v1060 = vadd.f32 %v990, %v1040
  %v1061 = vadd.f32 %v991, %v1040
  %v1062 = vadd.f32 %v992, %v1040
  %v1063 = vadd.f32 %v993, %v1040
  %v1064 = vadd.f32 %v994, %v1040
  %v1065 = vadd.f32 %v995, %v1040
  %v1066 = vadd.f32 %v996, %v1040
  %v1067 = vadd.f32 %v997, %v1040
  %v1068 = vadd.f32 %v998, %v1040
  %v1069 = vadd.f32 %v999, %v1040
  %v1070 = vadd.f32 %v1000, %v1040
  %v1071 = vadd.f32 %v1001, %v1040
  %v1072 = vadd.f32 %v1002, %v1040
  %v1073 = vadd.f32 %v1003, %v1040
  %v1074 = vadd.f32 %v1004, %v1040
  %v1075 = vadd.f32 %v1005, %v1040
  %v1076 = vadd.f32 %v1006, %v1040
  %v1077 = vadd.f32 %v1007, %v1040
  %v1078 = vadd.f32 %v1008, %v1040
  %v1079 = vadd.f32 %v1009, %v1040
  %v1080 = vadd.f32 %v1010, %v1040
  %v1081 = vadd.f32 %v1011, %v1040
  %v1082 = vadd.f32 %v1012, %v1040
  %v1083 = vadd.f32 %v1013, %v1040
  %v1084 = vadd.f32 %v1014, %v1040
  %v1085 = vadd.f32 %v1015, %v1040
  %v1086 = vadd.f32 %v1016, %v1040
  %v1087 = vadd.f32 %v1017, %v1040
  %v1088 = vadd.f32 %v1018, %v1040
  %v1089 = vadd.f32 %v1019, %v1040
  %v1090 = vadd.f32 %v1020, %v1040
  %v1091 = vadd.f32 %v1021, %v1040
  %v1092 = vadd.f32 %v1022, %v1040
  %v1093 = vadd.f32 %v1023, %v1040
  %v1094 = vadd.f32 %v1024, %v1040
  %v1095 = vadd.f32 %v1025, %v1040
  %v1096 = vadd.f32 %v1026, %v1040
  %v1097 = vadd.f32 %v1027, %v1040
  %v1098 = vadd.f32 %v1028, %v1040
  %v1099 = vadd.f32 %v1029, %v1040
  %v1100 = vadd.f32 %v1030, %v1040
  %v1101 = vadd.f32 %v1031, %v1040
  %v1102 = vadd.f32 %v1032, %v1040
  %v1103 = vadd.f32 %v1033, %v1040
  %v1104 = vadd.f32 %v1034, %v1040
  %v1105 = vadd.f32 %v1035, %v1040
  %vm1106 = vcmp.gt.f32.partialorder %v1042, 0.0
  %vm1107 = vcmp.gt.f32.partialorder %v1043, 0.0
  %vm1108 = vcmp.gt.f32.partialorder %v1044, 0.0
  %vm1109 = vcmp.gt.f32.partialorder %v1045, 0.0
  %vm1110 = vcmp.gt.f32.partialorder %v1046, 0.0
  %vm1111 = vcmp.gt.f32.partialorder %v1047, 0.0
  %vm1112 = vcmp.gt.f32.partialorder %v1048, 0.0
  %vm1113 = vcmp.gt.f32.partialorder %v1049, 0.0
  %vm1114 = vcmp.gt.f32.partialorder %v1050, 0.0
  %vm1115 = vcmp.gt.f32.partialorder %v1051, 0.0
  %vm1116 = vcmp.gt.f32.partialorder %v1052, 0.0
  %vm1117 = vcmp.gt.f32.partialorder %v1053, 0.0
  %vm1118 = vcmp.gt.f32.partialorder %v1054, 0.0
  %vm1119 = vcmp.gt.f32.partialorder %v1055, 0.0
  %vm1120 = vcmp.gt.f32.partialorder %v1056, 0.0
  %vm1121 = vcmp.gt.f32.partialorder %v1057, 0.0
  %vm1122 = vcmp.gt.f32.partialorder %v1058, 0.0
  %vm1123 = vcmp.gt.f32.partialorder %v1059, 0.0
  %vm1124 = vcmp.gt.f32.partialorder %v1060, 0.0
  %vm1125 = vcmp.gt.f32.partialorder %v1061, 0.0
  %vm1126 = vcmp.gt.f32.partialorder %v1062, 0.0
  %vm1127 = vcmp.gt.f32.partialorder %v1063, 0.0
  %vm1128 = vcmp.gt.f32.partialorder %v1064, 0.0
  %vm1129 = vcmp.gt.f32.partialorder %v1065, 0.0
  %vm1130 = vcmp.gt.f32.partialorder %v1066, 0.0
  %vm1131 = vcmp.gt.f32.partialorder %v1067, 0.0
  %vm1132 = vcmp.gt.f32.partialorder %v1068, 0.0
  %vm1133 = vcmp.gt.f32.partialorder %v1069, 0.0
  %vm1134 = vcmp.gt.f32.partialorder %v1070, 0.0
  %vm1135 = vcmp.gt.f32.partialorder %v1071, 0.0
  %vm1136 = vcmp.gt.f32.partialorder %v1072, 0.0
  %vm1137 = vcmp.gt.f32.partialorder %v1073, 0.0
  %vm1138 = vcmp.gt.f32.partialorder %v1074, 0.0
  %vm1139 = vcmp.gt.f32.partialorder %v1075, 0.0
  %vm1140 = vcmp.gt.f32.partialorder %v1076, 0.0
  %vm1141 = vcmp.gt.f32.partialorder %v1077, 0.0
  %vm1142 = vcmp.gt.f32.partialorder %v1078, 0.0
  %vm1143 = vcmp.gt.f32.partialorder %v1079, 0.0
  %vm1144 = vcmp.gt.f32.partialorder %v1080, 0.0
  %vm1145 = vcmp.gt.f32.partialorder %v1081, 0.0
  %vm1146 = vcmp.gt.f32.partialorder %v1082, 0.0
  %vm1147 = vcmp.gt.f32.partialorder %v1083, 0.0
  %vm1148 = vcmp.gt.f32.partialorder %v1084, 0.0
  %vm1149 = vcmp.gt.f32.partialorder %v1085, 0.0
  %vm1150 = vcmp.gt.f32.partialorder %v1086, 0.0
  %vm1151 = vcmp.gt.f32.partialorder %v1087, 0.0
  %vm1152 = vcmp.gt.f32.partialorder %v1088, 0.0
  %vm1153 = vcmp.gt.f32.partialorder %v1089, 0.0
  %vm1154 = vcmp.gt.f32.partialorder %v1090, 0.0
  %vm1155 = vcmp.gt.f32.partialorder %v1091, 0.0
  %vm1156 = vcmp.gt.f32.partialorder %v1092, 0.0
  %vm1157 = vcmp.gt.f32.partialorder %v1093, 0.0
  %vm1158 = vcmp.gt.f32.partialorder %v1094, 0.0
  %vm1159 = vcmp.gt.f32.partialorder %v1095, 0.0
  %vm1160 = vcmp.gt.f32.partialorder %v1096, 0.0
  %vm1161 = vcmp.gt.f32.partialorder %v1097, 0.0
  %vm1162 = vcmp.gt.f32.partialorder %v1098, 0.0
  %vm1163 = vcmp.gt.f32.partialorder %v1099, 0.0
  %vm1164 = vcmp.gt.f32.partialorder %v1100, 0.0
  %vm1165 = vcmp.gt.f32.partialorder %v1101, 0.0
  %vm1166 = vcmp.gt.f32.partialorder %v1102, 0.0
  %vm1167 = vcmp.gt.f32.partialorder %v1103, 0.0
  %vm1168 = vcmp.gt.f32.partialorder %v1104, 0.0
  %vm1169 = vcmp.gt.f32.partialorder %v1105, 0.0
  %v1170 = vmul.f32 %v1042, 0.1
  %v1171 = vmul.f32 %v1043, 0.1
  %v1172 = vmul.f32 %v1044, 0.1
  %v1173 = vmul.f32 %v1045, 0.1
  %v1174 = vmul.f32 %v1046, 0.1
  %v1175 = vmul.f32 %v1047, 0.1
  %v1176 = vmul.f32 %v1048, 0.1
  %v1177 = vmul.f32 %v1049, 0.1
  %v1178 = vmul.f32 %v1050, 0.1
  %v1179 = vmul.f32 %v1051, 0.1
  %v1180 = vmul.f32 %v1052, 0.1
  %v1181 = vmul.f32 %v1053, 0.1
  %v1182 = vmul.f32 %v1054, 0.1
  %v1183 = vmul.f32 %v1055, 0.1
  %v1184 = vmul.f32 %v1056, 0.1
  %v1185 = vmul.f32 %v1057, 0.1
  %v1186 = vmul.f32 %v1058, 0.1
  %v1187 = vmul.f32 %v1059, 0.1
  %v1188 = vmul.f32 %v1060, 0.1
  %v1189 = vmul.f32 %v1061, 0.1
  %v1190 = vmul.f32 %v1062, 0.1
  %v1191 = vmul.f32 %v1063, 0.1
  %v1192 = vmul.f32 %v1064, 0.1
  %v1193 = vmul.f32 %v1065, 0.1
  %v1194 = vmul.f32 %v1066, 0.1
  %v1195 = vmul.f32 %v1067, 0.1
  %v1196 = vmul.f32 %v1068, 0.1
  %v1197 = vmul.f32 %v1069, 0.1
  %v1198 = vmul.f32 %v1070, 0.1
  %v1199 = vmul.f32 %v1071, 0.1
  %v1200 = vmul.f32 %v1072, 0.1
  %v1201 = vmul.f32 %v1073, 0.1
  %v1202 = vmul.f32 %v1074, 0.1
  %v1203 = vmul.f32 %v1075, 0.1
  %v1204 = vmul.f32 %v1076, 0.1
  %v1205 = vmul.f32 %v1077, 0.1
  %v1206 = vmul.f32 %v1078, 0.1
  %v1207 = vmul.f32 %v1079, 0.1
  %v1208 = vmul.f32 %v1080, 0.1
  %v1209 = vmul.f32 %v1081, 0.1
  %v1210 = vmul.f32 %v1082, 0.1
  %v1211 = vmul.f32 %v1083, 0.1
  %v1212 = vmul.f32 %v1084, 0.1
  %v1213 = vmul.f32 %v1085, 0.1
  %v1214 = vmul.f32 %v1086, 0.1
  %v1215 = vmul.f32 %v1087, 0.1
  %v1216 = vmul.f32 %v1088, 0.1
  %v1217 = vmul.f32 %v1089, 0.1
  %v1218 = vmul.f32 %v1090, 0.1
  %v1219 = vmul.f32 %v1091, 0.1
  %v1220 = vmul.f32 %v1092, 0.1
  %v1221 = vmul.f32 %v1093, 0.1
  %v1222 = vmul.f32 %v1094, 0.1
  %v1223 = vmul.f32 %v1095, 0.1
  %v1224 = vmul.f32 %v1096, 0.1
  %v1225 = vmul.f32 %v1097, 0.1
  %v1226 = vmul.f32 %v1098, 0.1
  %v1227 = vmul.f32 %v1099, 0.1
  %v1228 = vmul.f32 %v1100, 0.1
  %v1229 = vmul.f32 %v1101, 0.1
  %v1230 = vmul.f32 %v1102, 0.1
  %v1231 = vmul.f32 %v1103, 0.1
  %v1232 = vmul.f32 %v1104, 0.1
  %v1233 = vmul.f32 %v1105, 0.1
  %v1234 = vsel %vm1106, %v1042, %v1170
  %v1235 = vsel %vm1107, %v1043, %v1171
  %v1236 = vsel %vm1108, %v1044, %v1172
  %v1237 = vsel %vm1109, %v1045, %v1173
  %v1238 = vsel %vm1110, %v1046, %v1174
  %v1239 = vsel %vm1111, %v1047, %v1175
  %v1240 = vsel %vm1112, %v1048, %v1176
  %v1241 = vsel %vm1113, %v1049, %v1177
  %v1242 = vsel %vm1114, %v1050, %v1178
  %v1243 = vsel %vm1115, %v1051, %v1179
  %v1244 = vsel %vm1116, %v1052, %v1180
  %v1245 = vsel %vm1117, %v1053, %v1181
  %v1246 = vsel %vm1118, %v1054, %v1182
  %v1247 = vsel %vm1119, %v1055, %v1183
  %v1248 = vsel %vm1120, %v1056, %v1184
  %v1249 = vsel %vm1121, %v1057, %v1185
  %v1250 = vsel %vm1122, %v1058, %v1186
  %v1251 = vsel %vm1123, %v1059, %v1187
  %v1252 = vsel %vm1124, %v1060, %v1188
  %v1253 = vsel %vm1125, %v1061, %v1189
  %v1254 = vsel %vm1126, %v1062, %v1190
  %v1255 = vsel %vm1127, %v1063, %v1191
  %v1256 = vsel %vm1128, %v1064, %v1192
  %v1257 = vsel %vm1129, %v1065, %v1193
  %v1258 = vsel %vm1130, %v1066, %v1194
  %v1259 = vsel %vm1131, %v1067, %v1195
  %v1260 = vsel %vm1132, %v1068, %v1196
  %v1261 = vsel %vm1133, %v1069, %v1197
  %v1262 = vsel %vm1134, %v1070, %v1198
  %v1263 = vsel %vm1135, %v1071, %v1199
  %v1264 = vsel %vm1136, %v1072, %v1200
  %v1265 = vsel %vm1137, %v1073, %v1201
  %v1266 = vsel %vm1138, %v1074, %v1202
  %v1267 = vsel %vm1139, %v1075, %v1203
  %v1268 = vsel %vm1140, %v1076, %v1204
  %v1269 = vsel %vm1141, %v1077, %v1205
  %v1270 = vsel %vm1142, %v1078, %v1206
  %v1271 = vsel %vm1143, %v1079, %v1207
  %v1272 = vsel %vm1144, %v1080, %v1208
  %v1273 = vsel %vm1145, %v1081, %v1209
  %v1274 = vsel %vm1146, %v1082, %v1210
  %v1275 = vsel %vm1147, %v1083, %v1211
  %v1276 = vsel %vm1148, %v1084, %v1212
  %v1277 = vsel %vm1149, %v1085, %v1213
  %v1278 = vsel %vm1150, %v1086, %v1214
  %v1279 = vsel %vm1151, %v1087, %v1215
  %v1280 = vsel %vm1152, %v1088, %v1216
  %v1281 = vsel %vm1153, %v1089, %v1217
  %v1282 = vsel %vm1154, %v1090, %v1218
  %v1283 = vsel %vm1155, %v1091, %v1219
  %v1284 = vsel %vm1156, %v1092, %v1220
  %v1285 = vsel %vm1157, %v1093, %v1221
  %v1286 = vsel %vm1158, %v1094, %v1222
  %v1287 = vsel %vm1159, %v1095, %v1223
  %v1288 = vsel %vm1160, %v1096, %v1224
  %v1289 = vsel %vm1161, %v1097, %v1225
  %v1290 = vsel %vm1162, %v1098, %v1226
  %v1291 = vsel %vm1163, %v1099, %v1227
  %v1292 = vsel %vm1164, %v1100, %v1228
  %v1293 = vsel %vm1165, %v1101, %v1229
  %v1294 = vsel %vm1166, %v1102, %v1230
  %v1295 = vsel %vm1167, %v1103, %v1231
  %v1296 = vsel %vm1168, %v1104, %v1232
  %v1297 = vsel %vm1169, %v1105, %v1233
  %1298 = vst [vmem:[%s4] sm:$0xff] %v1234
  %1299 = vst [vmem:[%s4 + $0x8] sm:$0xff] %v1235
  %1300 = vst [vmem:[%s4 + $0x10] sm:$0xff] %v1236
  %1301 = vst [vmem:[%s4 + $0x18] sm:$0xff] %v1237
  %1302 = vst [vmem:[%s4 + $0x20] sm:$0xff] %v1238
  %1303 = vst [vmem:[%s4 + $0x28] sm:$0xff] %v1239
  %1304 = vst [vmem:[%s4 + $0x30] sm:$0xff] %v1240
  %1305 = vst [vmem:[%s4 + $0x38] sm:$0xff] %v1241
  %1306 = vst [vmem:[%s4 + $0x40] sm:$0xff] %v1242
  %1307 = vst [vmem:[%s4 + $0x48] sm:$0xff] %v1243
  %1308 = vst [vmem:[%s4 + $0x50] sm:$0xff] %v1244
  %1309 = vst [vmem:[%s4 + $0x58] sm:$0xff] %v1245
  %1310 = vst [vmem:[%s4 + $0x60] sm:$0xff] %v1246
  %1311 = vst [vmem:[%s4 + $0x68] sm:$0xff] %v1247
  %1312 = vst [vmem:[%s4 + $0x70] sm:$0xff] %v1248
  %1313 = vst [vmem:[%s4 + $0x78] sm:$0xff] %v1249
  %1314 = vst [vmem:[%s4 + $0x80] sm:$0xff] %v1250
  %1315 = vst [vmem:[%s4 + $0x88] sm:$0xff] %v1251
  %1316 = vst [vmem:[%s4 + $0x90] sm:$0xff] %v1252
  %1317 = vst [vmem:[%s4 + $0x98] sm:$0xff] %v1253
  %1318 = vst [vmem:[%s4 + $0xa0] sm:$0xff] %v1254
  %1319 = vst [vmem:[%s4 + $0xa8] sm:$0xff] %v1255
  %1320 = vst [vmem:[%s4 + $0xb0] sm:$0xff] %v1256
  %1321 = vst [vmem:[%s4 + $0xb8] sm:$0xff] %v1257
  %1322 = vst [vmem:[%s4 + $0xc0] sm:$0xff] %v1258
  %1323 = vst [vmem:[%s4 + $0xc8] sm:$0xff] %v1259
  %1324 = vst [vmem:[%s4 + $0xd0] sm:$0xff] %v1260
  %1325 = vst [vmem:[%s4 + $0xd8] sm:$0xff] %v1261
  %1326 = vst [vmem:[%s4 + $0xe0] sm:$0xff] %v1262
  %1327 = vst [vmem:[%s4 + $0xe8] sm:$0xff] %v1263
  %1328 = vst [vmem:[%s4 + $0xf0] sm:$0xff] %v1264
  %1329 = vst [vmem:[%s4 + $0xf8] sm:$0xff] %v1265
  %1330 = vst [vmem:[%s4 + $0x100] sm:$0xff] %v1266
  %1331 = vst [vmem:[%s4 + $0x108] sm:$0xff] %v1267
  %1332 = vst [vmem:[%s4 + $0x110] sm:$0xff] %v1268
  %1333 = vst [vmem:[%s4 + $0x118] sm:$0xff] %v1269
  %1334 = vst [vmem:[%s4 + $0x120] sm:$0xff] %v1270
  %1335 = vst [vmem:[%s4 + $0x128] sm:$0xff] %v1271
  %1336 = vst [vmem:[%s4 + $0x130] sm:$0xff] %v1272
  %1337 = vst [vmem:[%s4 + $0x138] sm:$0xff] %v1273
  %1338 = vst [vmem:[%s4 + $0x140] sm:$0xff] %v1274
  %1339 = vst [vmem:[%s4 + $0x148] sm:$0xff] %v1275
  %1340 = vst [vmem:[%s4 + $0x150] sm:$0xff] %v1276
  %1341 = vst [vmem:[%s4 + $0x158] sm:$0xff] %v1277
  %1342 = vst [vmem:[%s4 + $0x160] sm:$0xff] %v1278
  %1343 = vst [vmem:[%s4 + $0x168] sm:$0xff] %v1279
  %1344 = vst [vmem:[%s4 + $0x170] sm:$0xff] %v1280
  %1345 = vst [vmem:[%s4 + $0x178] sm:$0xff] %v1281
  %1346 = vst [vmem:[%s4 + $0x180] sm:$0xff] %v1282
  %1347 = vst [vmem:[%s4 + $0x188] sm:$0xff] %v1283
  %1348 = vst [vmem:[%s4 + $0x190] sm:$0xff] %v1284
  %1349 = vst [vmem:[%s4 + $0x198] sm:$0xff] %v1285
  %1350 = vst [vmem:[%s4 + $0x1a0] sm:$0xff] %v1286
  %1351 = vst [vmem:[%s4 + $0x1a8] sm:$0xff] %v1287
  %1352 = vst [vmem:[%s4 + $0x1b0] sm:$0xff] %v1288
  %1353 = vst [vmem:[%s4 + $0x1b8] sm:$0xff] %v1289
  %1354 = vst [vmem:[%s4 + $0x1c0] sm:$0xff] %v1290
  %1355 = vst [vmem:[%s4 + $0x1c8] sm:$0xff] %v1291
  %1356 = vst [vmem:[%s4 + $0x1d0] sm:$0xff] %v1292
  %1357 = vst [vmem:[%s4 + $0x1d8] sm:$0xff] %v1293
  %1358 = vst [vmem:[%s4 + $0x1e0] sm:$0xff] %v1294
  %1359 = vst [vmem:[%s4 + $0x1e8] sm:$0xff] %v1295
  %1360 = vst [vmem:[%s4 + $0x1f0] sm:$0xff] %v1296
  %1361 = vst [vmem:[%s4 + $0x1f8] sm:$0xff] %v1297
  // Predicated region
  $region18: #{_lambda_.8} parent=0 // pred_check
    _
  $region19: #{_lambda_.8} parent=0 // pred_check_branch
    %1363 = sbr.rel (0) target = $region21
  $region20: #{_lambda_.8} parent=0 // pred_region
    _
  $region21: #{_lambda_.8} parent=0 // pred_fallthru
    _
  // Predicated region
  $region22: #{_lambda_.8} parent=0 // pred_check
    _
  $region23: #{_lambda_.8} parent=0 // pred_check_branch
    %1365 = sbr.rel (0) target = $region25
  $region24: #{_lambda_.8} parent=0 // pred_region
    _
  $region25: #{_lambda_.8} parent=0 // pred_fallthru
    _

// kernel: _lambda_.9
$region0: #{_lambda_.9}
  #allocation0 [shape = 'u32[]', space=smem, size = 0x4, offset = 0x4, fixed_abs, tag = 'smem constant byte address 0x4 - core index']
  #allocation1 [shape = 'u32[144,128]{1,0:T(1,128)}', space=vmem, size = 0x12000, scoped, tag = 'internal scratch']
  %s0 = inlined_call_operand.vmem [shape: bf16[128,128], index: 0, kind: input, shape index: {}]
  %s1 = inlined_call_operand.vmem [shape: bf16[128,128], index: 1, kind: input, shape index: {}]
  %s2 = inlined_call_operand.vmem [shape: f32[1,128], index: 2, kind: input, shape index: {}]
  %s3 = inlined_call_operand.vmem [shape: f32[1,128], index: 3, kind: input, shape index: {}]
  %s4 = inlined_call_operand.vmem [shape: f32[128,128], index: 4, kind: output, shape index: {}]
  %s5 = sld [smem:[#allocation0]]
  $region26: #{_lambda_.9} parent=0
    _
  %s7 = ssub.s32 1, %s5
  %s8 = scalar_select 0, %s7, %s5
  // Predicated region
  $region2: #{_lambda_.9} parent=0 // pred_check
    _
  $region3: #{_lambda_.9} parent=0 // pred_check_branch
    %10 = sbr.rel (0) target = $region5
  $region4: #{_lambda_.9} parent=0 // pred_region
    _
  $region5: #{_lambda_.9} parent=0 // pred_fallthru
    _
  // Predicated region
  $region6: #{_lambda_.9} parent=0 // pred_check
    _
  $region7: #{_lambda_.9} parent=0 // pred_check_branch
    %12 = sbr.rel (0) target = $region9
  $region8: #{_lambda_.9} parent=0 // pred_region
    _
  $region9: #{_lambda_.9} parent=0 // pred_fallthru
    _
  // Predicated region
  $region10: #{_lambda_.9} parent=0 // pred_check
    _
  $region11: #{_lambda_.9} parent=0 // pred_check_branch
    %14 = sbr.rel (0) target = $region13
  $region12: #{_lambda_.9} parent=0 // pred_region
    _
  $region13: #{_lambda_.9} parent=0 // pred_fallthru
    _
  // Predicated region
  $region14: #{_lambda_.9} parent=0 // pred_check
    _
  $region15: #{_lambda_.9} parent=0 // pred_check_branch
    %16 = sbr.rel (0) target = $region17
  $region16: #{_lambda_.9} parent=0 // pred_region
    _
  $region17: #{_lambda_.9} parent=0 // pred_fallthru
    _
  %v18 = vld [vmem:[%s0] sm:$0xf]
  %v19 = vld [vmem:[%s0 + $0x4] sm:$0xf]
  %v20 = vld [vmem:[%s0 + $0x8] sm:$0xf]
  %v21 = vld [vmem:[%s0 + $0xc] sm:$0xf]
  %v22 = vld [vmem:[%s0 + $0x10] sm:$0xf]
  %v23 = vld [vmem:[%s0 + $0x14] sm:$0xf]
  %v24 = vld [vmem:[%s0 + $0x18] sm:$0xf]
  %v25 = vld [vmem:[%s0 + $0x1c] sm:$0xf]
  %v26 = vld [vmem:[%s0 + $0x20] sm:$0xf]
  %v27 = vld [vmem:[%s0 + $0x24] sm:$0xf]
  %v28 = vld [vmem:[%s0 + $0x28] sm:$0xf]
  %v29 = vld [vmem:[%s0 + $0x2c] sm:$0xf]
  %v30 = vld [vmem:[%s0 + $0x30] sm:$0xf]
  %v31 = vld [vmem:[%s0 + $0x34] sm:$0xf]
  %v32 = vld [vmem:[%s0 + $0x38] sm:$0xf]
  %v33 = vld [vmem:[%s0 + $0x3c] sm:$0xf]
  %v34 = vld [vmem:[%s1] sm:$0xf]
  %v35 = vld [vmem:[%s1 + $0x4] sm:$0xf]
  %v36 = vld [vmem:[%s1 + $0x8] sm:$0xf]
  %v37 = vld [vmem:[%s1 + $0xc] sm:$0xf]
  %v38 = vld [vmem:[%s1 + $0x10] sm:$0xf]
  %v39 = vld [vmem:[%s1 + $0x14] sm:$0xf]
  %v40 = vld [vmem:[%s1 + $0x18] sm:$0xf]
  %v41 = vld [vmem:[%s1 + $0x1c] sm:$0xf]
  %v42 = vld [vmem:[%s1 + $0x20] sm:$0xf]
  %v43 = vld [vmem:[%s1 + $0x24] sm:$0xf]
  %v44 = vld [vmem:[%s1 + $0x28] sm:$0xf]
  %v45 = vld [vmem:[%s1 + $0x2c] sm:$0xf]
  %v46 = vld [vmem:[%s1 + $0x30] sm:$0xf]
  %v47 = vld [vmem:[%s1 + $0x34] sm:$0xf]
  %v48 = vld [vmem:[%s1 + $0x38] sm:$0xf]
  %v49 = vld [vmem:[%s1 + $0x3c] sm:$0xf]
  %v66 = vunpack.c.l.b16 %v18
  %v67 = vunpack.c.l.b16 %v19
  %v68 = vunpack.c.l.b16 %v20
  %v69 = vunpack.c.l.b16 %v21
  %v70 = vunpack.c.l.b16 %v22
  %v71 = vunpack.c.l.b16 %v23
  %v72 = vunpack.c.l.b16 %v24
  %v73 = vunpack.c.l.b16 %v25
  %v74 = vunpack.c.l.b16 %v26
  %v75 = vunpack.c.l.b16 %v27
  %v76 = vunpack.c.l.b16 %v28
  %v77 = vunpack.c.l.b16 %v29
  %v78 = vunpack.c.l.b16 %v30
  %v79 = vunpack.c.l.b16 %v31
  %v80 = vunpack.c.l.b16 %v32
  %v81 = vunpack.c.l.b16 %v33
  %v82 = vpack.c.b16 %v67, %v66
  %v83 = vpack.c.b16 %v69, %v68
  %v84 = vpack.c.b16 %v71, %v70
  %v85 = vpack.c.b16 %v73, %v72
  %v86 = vpack.c.b16 %v75, %v74
  %v87 = vpack.c.b16 %v77, %v76
  %v88 = vpack.c.b16 %v79, %v78
  %v89 = vpack.c.b16 %v81, %v80
  %v114 = vunpack.c.l.b16 %v34
  %v115 = vunpack.c.l.b16 %v35
  %v116 = vunpack.c.l.b16 %v36
  %v117 = vunpack.c.l.b16 %v37
  %v118 = vunpack.c.l.b16 %v38
  %v119 = vunpack.c.l.b16 %v39
  %v120 = vunpack.c.l.b16 %v40
  %v121 = vunpack.c.l.b16 %v41
  %v122 = vunpack.c.l.b16 %v42
  %v123 = vunpack.c.l.b16 %v43
  %v124 = vunpack.c.l.b16 %v44
  %v125 = vunpack.c.l.b16 %v45
  %v126 = vunpack.c.l.b16 %v46
  %v127 = vunpack.c.l.b16 %v47
  %v128 = vunpack.c.l.b16 %v48
  %v129 = vunpack.c.l.b16 %v49
  %v130 = vpack.c.b16 %v115, %v114
  %v131 = vpack.c.b16 %v117, %v116
  %v132 = vpack.c.b16 %v119, %v118
  %v133 = vpack.c.b16 %v121, %v120
  %v134 = vpack.c.b16 %v123, %v122
  %v135 = vpack.c.b16 %v125, %v124
  %v136 = vpack.c.b16 %v127, %v126
  %v137 = vpack.c.b16 %v129, %v128
  %146 = vmatprep.subr.bf16.mxu0 0
  %147 = vmatpush1.bf16.msra.mxu0 %v137
  %148 = vmatprep.subr.bf16.mxu0 0
  %149 = vmatpush1.bf16.msra.mxu0 %v136
  %150 = vmatprep.subr.bf16.mxu0 0
  %151 = vmatpush1.bf16.msra.mxu0 %v135
  %152 = vmatprep.subr.bf16.mxu0 0
  %153 = vmatpush1.bf16.msra.mxu0 %v134
  %154 = vmatprep.subr.bf16.mxu0 0
  %155 = vmatpush1.bf16.msra.mxu0 %v133
  %156 = vmatprep.subr.bf16.mxu0 0
  %157 = vmatpush1.bf16.msra.mxu0 %v132
  %158 = vmatprep.subr.bf16.mxu0 0
  %159 = vmatpush1.bf16.msra.mxu0 %v131
  %160 = vmatprep.subr.bf16.mxu0 0
  %161 = vmatpush1.bf16.msra.mxu0 %v130
  %162 = vmatprep.subr.bf16.mxu0 0
  %163 = vmatpush2.bf16.msra.mxu0 0
  %164 = vmatprep.subr.bf16.mxu0 0
  %165 = vmatpush2.bf16.msra.mxu0 0
  %166 = vmatprep.subr.bf16.mxu0 0
  %167 = vmatpush2.bf16.msra.mxu0 0
  %168 = vmatprep.subr.bf16.mxu0 0
  %169 = vmatpush2.bf16.msra.mxu0 0
  %170 = vmatprep.subr.bf16.mxu0 0
  %171 = vmatpush2.bf16.msra.mxu0 0
  %172 = vmatprep.subr.bf16.mxu0 0
  %173 = vmatpush2.bf16.msra.mxu0 0
  %174 = vmatprep.subr.bf16.mxu0 0
  %175 = vmatpush2.bf16.msra.mxu0 0
  %176 = vmatprep.subr.bf16.mxu0 0
  %177 = vmatpush2.bf16.msra.mxu0 0
  %178 = vmatprep.mubr.bf16.mxu0 0
  %179 = vmatmul.mubr.bf16.gmra.mxu0 %v82
  %v180 = vpop.f32.mrf.mxu0
  %v181 = vadd.f32 0.0, %v180
  %v182 = vpop.f32.mrf.mxu0
  %v183 = vpop.f32.mrf.mxu0
  %v184 = vadd.f32 0.0, %v183
  %v185 = vpop.f32.mrf.mxu0
  %186 = vmatprep.mubr.bf16.mxu0 0
  %187 = vmatmul.mubr.bf16.gmra.mxu0 %v83
  %v188 = vpop.f32.mrf.mxu0
  %v189 = vadd.f32 0.0, %v188
  %v190 = vpop.f32.mrf.mxu0
  %v191 = vpop.f32.mrf.mxu0
  %v192 = vadd.f32 0.0, %v191
  %v193 = vpop.f32.mrf.mxu0
  %194 = vmatprep.mubr.bf16.mxu0 0
  %195 = vmatmul.mubr.bf16.gmra.mxu0 %v84
  %v196 = vpop.f32.mrf.mxu0
  %v197 = vadd.f32 0.0, %v196
  %v198 = vpop.f32.mrf.mxu0
  %v199 = vpop.f32.mrf.mxu0
  %v200 = vadd.f32 0.0, %v199
  %v201 = vpop.f32.mrf.mxu0
  %202 = vmatprep.mubr.bf16.mxu0 0
  %203 = vmatmul.mubr.bf16.gmra.mxu0 %v85
  %v204 = vpop.f32.mrf.mxu0
  %v205 = vadd.f32 0.0, %v204
  %v206 = vpop.f32.mrf.mxu0
  %v207 = vpop.f32.mrf.mxu0
  %v208 = vadd.f32 0.0, %v207
  %v209 = vpop.f32.mrf.mxu0
  %210 = vmatprep.mubr.bf16.mxu0 0
  %211 = vmatmul.mubr.bf16.gmra.mxu0 %v86
  %v212 = vpop.f32.mrf.mxu0
  %v213 = vadd.f32 0.0, %v212
  %v214 = vpop.f32.mrf.mxu0
  %v215 = vpop.f32.mrf.mxu0
  %v216 = vadd.f32 0.0, %v215
  %v217 = vpop.f32.mrf.mxu0
  %218 = vmatprep.mubr.bf16.mxu0 0
  %219 = vmatmul.mubr.bf16.gmra.mxu0 %v87
  %v220 = vpop.f32.mrf.mxu0
  %v221 = vadd.f32 0.0, %v220
  %v222 = vpop.f32.mrf.mxu0
  %v223 = vpop.f32.mrf.mxu0
  %v224 = vadd.f32 0.0, %v223
  %v225 = vpop.f32.mrf.mxu0
  %226 = vmatprep.mubr.bf16.mxu0 0
  %227 = vmatmul.mubr.bf16.gmra.mxu0 %v88
  %v228 = vpop.f32.mrf.mxu0
  %v229 = vadd.f32 0.0, %v228
  %v230 = vpop.f32.mrf.mxu0
  %v231 = vpop.f32.mrf.mxu0
  %v232 = vadd.f32 0.0, %v231
  %v233 = vpop.f32.mrf.mxu0
  %234 = vmatprep.mubr.bf16.mxu0 0
  %235 = vmatmul.mubr.bf16.gmra.mxu0 %v89
  %v236 = vpop.f32.mrf.mxu0
  %v237 = vadd.f32 0.0, %v236
  %v238 = vpop.f32.mrf.mxu0
  %v239 = vpop.f32.mrf.mxu0
  %v240 = vadd.f32 0.0, %v239
  %v241 = vpop.f32.mrf.mxu0
  %242 = vdwg.mxu0
  %v243 = vld [vmem:[%s2] sm:$0x1]
  %v244 = vld [vmem:[%s3] sm:$0x1]
  %v245 = vadd.f32 %v181, %v184
  %v246 = vadd.f32 %v245, %v189
  %v247 = vadd.f32 %v246, %v192
  %v248 = vadd.f32 %v247, %v197
  %v249 = vadd.f32 %v248, %v200
  %v250 = vadd.f32 %v249, %v205
  %v251 = vadd.f32 %v250, %v208
  %v252 = vadd.f32 %v251, %v213
  %v253 = vadd.f32 %v252, %v216
  %v254 = vadd.f32 %v253, %v221
  %v255 = vadd.f32 %v254, %v224
  %v256 = vadd.f32 %v255, %v229
  %v257 = vadd.f32 %v256, %v232
  %v258 = vadd.f32 %v257, %v237
  %v259 = vadd.f32 %v258, %v240
  %v260 = vrot.slane %v259, 4
  %v261 = vadd.f32 %v259, %v260
  %v262 = vrot.slane %v261, 2
  %v263 = vadd.f32 %v261, %v262
  %v264 = vrot.slane %v263, 1
  %v265 = vadd.f32 %v263, %v264
  %v266 = vrcp.pop 128.0
  %v267 = vmul.f32 %v265, %v266
  %v268 = vmul.f32 %v181, %v181
  %v269 = vmul.f32 %v184, %v184
  %v270 = vmul.f32 %v189, %v189
  %v271 = vmul.f32 %v192, %v192
  %v272 = vmul.f32 %v197, %v197
  %v273 = vmul.f32 %v200, %v200
  %v274 = vmul.f32 %v205, %v205
  %v275 = vmul.f32 %v208, %v208
  %v276 = vmul.f32 %v213, %v213
  %v277 = vmul.f32 %v216, %v216
  %v278 = vmul.f32 %v221, %v221
  %v279 = vmul.f32 %v224, %v224
  %v280 = vmul.f32 %v229, %v229
  %v281 = vmul.f32 %v232, %v232
  %v282 = vmul.f32 %v237, %v237
  %v283 = vmul.f32 %v240, %v240
  %v284 = vadd.f32 %v268, %v269
  %v285 = vadd.f32 %v284, %v270
  %v286 = vadd.f32 %v285, %v271
  %v287 = vadd.f32 %v286, %v272
  %v288 = vadd.f32 %v287, %v273
  %v289 = vadd.f32 %v288, %v274
  %v290 = vadd.f32 %v289, %v275
  %v291 = vadd.f32 %v290, %v276
  %v292 = vadd.f32 %v291, %v277
  %v293 = vadd.f32 %v292, %v278
  %v294 = vadd.f32 %v293, %v279
  %v295 = vadd.f32 %v294, %v280
  %v296 = vadd.f32 %v295, %v281
  %v297 = vadd.f32 %v296, %v282
  %v298 = vadd.f32 %v297, %v283
  %v299 = vrot.slane %v298, 4
  %v300 = vadd.f32 %v298, %v299
  %v301 = vrot.slane %v300, 2
  %v302 = vadd.f32 %v300, %v301
  %v303 = vrot.slane %v302, 1
  %v304 = vadd.f32 %v302, %v303
  %v305 = vmul.f32 %v304, %v266
  %v306 = vmul.f32 %v267, %v267
  %v307 = vsub.f32 %v305, %v306
  %v308 = vsub.f32 %v181, %v267
  %v309 = vsub.f32 %v184, %v267
  %v310 = vsub.f32 %v189, %v267
  %v311 = vsub.f32 %v192, %v267
  %v312 = vsub.f32 %v197, %v267
  %v313 = vsub.f32 %v200, %v267
  %v314 = vsub.f32 %v205, %v267
  %v315 = vsub.f32 %v208, %v267
  %v316 = vsub.f32 %v213, %v267
  %v317 = vsub.f32 %v216, %v267
  %v318 = vsub.f32 %v221, %v267
  %v319 = vsub.f32 %v224, %v267
  %v320 = vsub.f32 %v229, %v267
  %v321 = vsub.f32 %v232, %v267
  %v322 = vsub.f32 %v237, %v267
  %v323 = vsub.f32 %v240, %v267
  %v324 = vadd.f32 %v307, 1e-05
  %v325 = vrsqrt.pop %v324
  %v326 = vmul.f32 %v308, %v325
  %v327 = vmul.f32 %v309, %v325
  %v328 = vmul.f32 %v310, %v325
  %v329 = vmul.f32 %v311, %v325
  %v330 = vmul.f32 %v312, %v325
  %v331 = vmul.f32 %v313, %v325
  %v332 = vmul.f32 %v314, %v325
  %v333 = vmul.f32 %v315, %v325
  %v334 = vmul.f32 %v316, %v325
  %v335 = vmul.f32 %v317, %v325
  %v336 = vmul.f32 %v318, %v325
  %v337 = vmul.f32 %v319, %v325
  %v338 = vmul.f32 %v320, %v325
  %v339 = vmul.f32 %v321, %v325
  %v340 = vmul.f32 %v322, %v325
  %v341 = vmul.f32 %v323, %v325
  %v343 = vlaneseq
  %v344 = vshrl.u32 %v343, 7
  %v345 = vsub.s32 0, %v344
  %v346 = vrot.slane %v243, %v345
  %v348 = vmul.f32 %v326, %v346
  %v349 = vmul.f32 %v327, %v346
  %v350 = vmul.f32 %v328, %v346
  %v351 = vmul.f32 %v329, %v346
  %v352 = vmul.f32 %v330, %v346
  %v353 = vmul.f32 %v331, %v346
  %v354 = vmul.f32 %v332, %v346
  %v355 = vmul.f32 %v333, %v346
  %v356 = vmul.f32 %v334, %v346
  %v357 = vmul.f32 %v335, %v346
  %v358 = vmul.f32 %v336, %v346
  %v359 = vmul.f32 %v337, %v346
  %v360 = vmul.f32 %v338, %v346
  %v361 = vmul.f32 %v339, %v346
  %v362 = vmul.f32 %v340, %v346
  %v363 = vmul.f32 %v341, %v346
  %v365 = vlaneseq
  %v366 = vshrl.u32 %v365, 7
  %v367 = vsub.s32 0, %v366
  %v368 = vrot.slane %v244, %v367
  %v370 = vadd.f32 %v348, %v368
  %v371 = vadd.f32 %v349, %v368
  %v372 = vadd.f32 %v350, %v368
  %v373 = vadd.f32 %v351, %v368
  %v374 = vadd.f32 %v352, %v368
  %v375 = vadd.f32 %v353, %v368
  %v376 = vadd.f32 %v354, %v368
  %v377 = vadd.f32 %v355, %v368
  %v378 = vadd.f32 %v356, %v368
  %v379 = vadd.f32 %v357, %v368
  %v380 = vadd.f32 %v358, %v368
  %v381 = vadd.f32 %v359, %v368
  %v382 = vadd.f32 %v360, %v368
  %v383 = vadd.f32 %v361, %v368
  %v384 = vadd.f32 %v362, %v368
  %v385 = vadd.f32 %v363, %v368
  %vm386 = vcmp.gt.f32.partialorder %v370, 0.0
  %vm387 = vcmp.gt.f32.partialorder %v371, 0.0
  %vm388 = vcmp.gt.f32.partialorder %v372, 0.0
  %vm389 = vcmp.gt.f32.partialorder %v373, 0.0
  %vm390 = vcmp.gt.f32.partialorder %v374, 0.0
  %vm391 = vcmp.gt.f32.partialorder %v375, 0.0
  %vm392 = vcmp.gt.f32.partialorder %v376, 0.0
  %vm393 = vcmp.gt.f32.partialorder %v377, 0.0
  %vm394 = vcmp.gt.f32.partialorder %v378, 0.0
  %vm395 = vcmp.gt.f32.partialorder %v379, 0.0
  %vm396 = vcmp.gt.f32.partialorder %v380, 0.0
  %vm397 = vcmp.gt.f32.partialorder %v381, 0.0
  %vm398 = vcmp.gt.f32.partialorder %v382, 0.0
  %vm399 = vcmp.gt.f32.partialorder %v383, 0.0
  %vm400 = vcmp.gt.f32.partialorder %v384, 0.0
  %vm401 = vcmp.gt.f32.partialorder %v385, 0.0
  %v402 = vmul.f32 %v370, 0.1
  %v403 = vmul.f32 %v371, 0.1
  %v404 = vmul.f32 %v372, 0.1
  %v405 = vmul.f32 %v373, 0.1
  %v406 = vmul.f32 %v374, 0.1
  %v407 = vmul.f32 %v375, 0.1
  %v408 = vmul.f32 %v376, 0.1
  %v409 = vmul.f32 %v377, 0.1
  %v410 = vmul.f32 %v378, 0.1
  %v411 = vmul.f32 %v379, 0.1
  %v412 = vmul.f32 %v380, 0.1
  %v413 = vmul.f32 %v381, 0.1
  %v414 = vmul.f32 %v382, 0.1
  %v415 = vmul.f32 %v383, 0.1
  %v416 = vmul.f32 %v384, 0.1
  %v417 = vmul.f32 %v385, 0.1
  %v418 = vsel %vm386, %v370, %v402
  %v419 = vsel %vm387, %v371, %v403
  %v420 = vsel %vm388, %v372, %v404
  %v421 = vsel %vm389, %v373, %v405
  %v422 = vsel %vm390, %v374, %v406
  %v423 = vsel %vm391, %v375, %v407
  %v424 = vsel %vm392, %v376, %v408
  %v425 = vsel %vm393, %v377, %v409
  %v426 = vsel %vm394, %v378, %v410
  %v427 = vsel %vm395, %v379, %v411
  %v428 = vsel %vm396, %v380, %v412
  %v429 = vsel %vm397, %v381, %v413
  %v430 = vsel %vm398, %v382, %v414
  %v431 = vsel %vm399, %v383, %v415
  %v432 = vsel %vm400, %v384, %v416
  %v433 = vsel %vm401, %v385, %v417
  %434 = vst [vmem:[%s4] sm:$0xff] %v418
  %435 = vst [vmem:[%s4 + $0x8] sm:$0xff] %v419
  %436 = vst [vmem:[%s4 + $0x10] sm:$0xff] %v420
  %437 = vst [vmem:[%s4 + $0x18] sm:$0xff] %v421
  %438 = vst [vmem:[%s4 + $0x20] sm:$0xff] %v422
  %439 = vst [vmem:[%s4 + $0x28] sm:$0xff] %v423
  %440 = vst [vmem:[%s4 + $0x30] sm:$0xff] %v424
  %441 = vst [vmem:[%s4 + $0x38] sm:$0xff] %v425
  %442 = vst [vmem:[%s4 + $0x40] sm:$0xff] %v426
  %443 = vst [vmem:[%s4 + $0x48] sm:$0xff] %v427
  %444 = vst [vmem:[%s4 + $0x50] sm:$0xff] %v428
  %445 = vst [vmem:[%s4 + $0x58] sm:$0xff] %v429
  %446 = vst [vmem:[%s4 + $0x60] sm:$0xff] %v430
  %447 = vst [vmem:[%s4 + $0x68] sm:$0xff] %v431
  %448 = vst [vmem:[%s4 + $0x70] sm:$0xff] %v432
  %449 = vst [vmem:[%s4 + $0x78] sm:$0xff] %v433
  // Predicated region
  $region18: #{_lambda_.9} parent=0 // pred_check
    _
  $region19: #{_lambda_.9} parent=0 // pred_check_branch
    %451 = sbr.rel (0) target = $region21
  $region20: #{_lambda_.9} parent=0 // pred_region
    _
  $region21: #{_lambda_.9} parent=0 // pred_fallthru
    _
  // Predicated region
  $region22: #{_lambda_.9} parent=0 // pred_check
    _
  $region23: #{_lambda_.9} parent=0 // pred_check_branch
    %453 = sbr.rel (0) target = $region25
  $region24: #{_lambda_.9} parent=0 // pred_region
    _
  $region25: #{_lambda_.9} parent=0 // pred_fallthru
    _

// kernel: _lambda_.11
$region0: #{_lambda_.11}
  #allocation0 [shape = 'u32[]', space=smem, size = 0x4, offset = 0x4, fixed_abs, tag = 'smem constant byte address 0x4 - core index']
  #allocation1 [shape = 'u32[144,128]{1,0:T(1,128)}', space=vmem, size = 0x12000, scoped, tag = 'internal scratch']
  %s0 = inlined_call_operand.vmem [shape: bf16[128,128], index: 0, kind: input, shape index: {}]
  %s1 = inlined_call_operand.vmem [shape: bf16[128,128], index: 1, kind: input, shape index: {}]
  %s2 = inlined_call_operand.vmem [shape: f32[1,128], index: 2, kind: input, shape index: {}]
  %s3 = inlined_call_operand.vmem [shape: f32[1,128], index: 3, kind: input, shape index: {}]
  %s4 = inlined_call_operand.vmem [shape: f32[128,128], index: 4, kind: input, shape index: {}]
  %s5 = inlined_call_operand.vmem [shape: f32[128,128], index: 5, kind: output, shape index: {}]
  %s6 = sld [smem:[#allocation0]]
  $region30: #{_lambda_.11} parent=0
    _
  %s8 = ssub.s32 1, %s6
  %s9 = scalar_select 0, %s8, %s6
  // Predicated region
  $region2: #{_lambda_.11} parent=0 // pred_check
    _
  $region3: #{_lambda_.11} parent=0 // pred_check_branch
    %11 = sbr.rel (0) target = $region5
  $region4: #{_lambda_.11} parent=0 // pred_region
    _
  $region5: #{_lambda_.11} parent=0 // pred_fallthru
    _
  // Predicated region
  $region6: #{_lambda_.11} parent=0 // pred_check
    _
  $region7: #{_lambda_.11} parent=0 // pred_check_branch
    %13 = sbr.rel (0) target = $region9
  $region8: #{_lambda_.11} parent=0 // pred_region
    _
  $region9: #{_lambda_.11} parent=0 // pred_fallthru
    _
  // Predicated region
  $region10: #{_lambda_.11} parent=0 // pred_check
    _
  $region11: #{_lambda_.11} parent=0 // pred_check_branch
    %15 = sbr.rel (0) target = $region13
  $region12: #{_lambda_.11} parent=0 // pred_region
    _
  $region13: #{_lambda_.11} parent=0 // pred_fallthru
    _
  // Predicated region
  $region14: #{_lambda_.11} parent=0 // pred_check
    _
  $region15: #{_lambda_.11} parent=0 // pred_check_branch
    %17 = sbr.rel (0) target = $region17
  $region16: #{_lambda_.11} parent=0 // pred_region
    _
  $region17: #{_lambda_.11} parent=0 // pred_fallthru
    _
  // Predicated region
  $region18: #{_lambda_.11} parent=0 // pred_check
    _
  $region19: #{_lambda_.11} parent=0 // pred_check_branch
    %19 = sbr.rel (0) target = $region21
  $region20: #{_lambda_.11} parent=0 // pred_region
    _
  $region21: #{_lambda_.11} parent=0 // pred_fallthru
    _
  %v21 = vld [vmem:[%s0] sm:$0xf]
  %v22 = vld [vmem:[%s0 + $0x4] sm:$0xf]
  %v23 = vld [vmem:[%s0 + $0x8] sm:$0xf]
  %v24 = vld [vmem:[%s0 + $0xc] sm:$0xf]
  %v25 = vld [vmem:[%s0 + $0x10] sm:$0xf]
  %v26 = vld [vmem:[%s0 + $0x14] sm:$0xf]
  %v27 = vld [vmem:[%s0 + $0x18] sm:$0xf]
  %v28 = vld [vmem:[%s0 + $0x1c] sm:$0xf]
  %v29 = vld [vmem:[%s0 + $0x20] sm:$0xf]
  %v30 = vld [vmem:[%s0 + $0x24] sm:$0xf]
  %v31 = vld [vmem:[%s0 + $0x28] sm:$0xf]
  %v32 = vld [vmem:[%s0 + $0x2c] sm:$0xf]
  %v33 = vld [vmem:[%s0 + $0x30] sm:$0xf]
  %v34 = vld [vmem:[%s0 + $0x34] sm:$0xf]
  %v35 = vld [vmem:[%s0 + $0x38] sm:$0xf]
  %v36 = vld [vmem:[%s0 + $0x3c] sm:$0xf]
  %v37 = vld [vmem:[%s1] sm:$0xf]
  %v38 = vld [vmem:[%s1 + $0x4] sm:$0xf]
  %v39 = vld [vmem:[%s1 + $0x8] sm:$0xf]
  %v40 = vld [vmem:[%s1 + $0xc] sm:$0xf]
  %v41 = vld [vmem:[%s1 + $0x10] sm:$0xf]
  %v42 = vld [vmem:[%s1 + $0x14] sm:$0xf]
  %v43 = vld [vmem:[%s1 + $0x18] sm:$0xf]
  %v44 = vld [vmem:[%s1 + $0x1c] sm:$0xf]
  %v45 = vld [vmem:[%s1 + $0x20] sm:$0xf]
  %v46 = vld [vmem:[%s1 + $0x24] sm:$0xf]
  %v47 = vld [vmem:[%s1 + $0x28] sm:$0xf]
  %v48 = vld [vmem:[%s1 + $0x2c] sm:$0xf]
  %v49 = vld [vmem:[%s1 + $0x30] sm:$0xf]
  %v50 = vld [vmem:[%s1 + $0x34] sm:$0xf]
  %v51 = vld [vmem:[%s1 + $0x38] sm:$0xf]
  %v52 = vld [vmem:[%s1 + $0x3c] sm:$0xf]
  %v69 = vunpack.c.l.b16 %v21
  %v70 = vunpack.c.l.b16 %v22
  %v71 = vunpack.c.l.b16 %v23
  %v72 = vunpack.c.l.b16 %v24
  %v73 = vunpack.c.l.b16 %v25
  %v74 = vunpack.c.l.b16 %v26
  %v75 = vunpack.c.l.b16 %v27
  %v76 = vunpack.c.l.b16 %v28
  %v77 = vunpack.c.l.b16 %v29
  %v78 = vunpack.c.l.b16 %v30
  %v79 = vunpack.c.l.b16 %v31
  %v80 = vunpack.c.l.b16 %v32
  %v81 = vunpack.c.l.b16 %v33
  %v82 = vunpack.c.l.b16 %v34
  %v83 = vunpack.c.l.b16 %v35
  %v84 = vunpack.c.l.b16 %v36
  %v85 = vpack.c.b16 %v70, %v69
  %v86 = vpack.c.b16 %v72, %v71
  %v87 = vpack.c.b16 %v74, %v73
  %v88 = vpack.c.b16 %v76, %v75
  %v89 = vpack.c.b16 %v78, %v77
  %v90 = vpack.c.b16 %v80, %v79
  %v91 = vpack.c.b16 %v82, %v81
  %v92 = vpack.c.b16 %v84, %v83
  %v117 = vunpack.c.l.b16 %v37
  %v118 = vunpack.c.l.b16 %v38
  %v119 = vunpack.c.l.b16 %v39
  %v120 = vunpack.c.l.b16 %v40
  %v121 = vunpack.c.l.b16 %v41
  %v122 = vunpack.c.l.b16 %v42
  %v123 = vunpack.c.l.b16 %v43
  %v124 = vunpack.c.l.b16 %v44
  %v125 = vunpack.c.l.b16 %v45
  %v126 = vunpack.c.l.b16 %v46
  %v127 = vunpack.c.l.b16 %v47
  %v128 = vunpack.c.l.b16 %v48
  %v129 = vunpack.c.l.b16 %v49
  %v130 = vunpack.c.l.b16 %v50
  %v131 = vunpack.c.l.b16 %v51
  %v132 = vunpack.c.l.b16 %v52
  %v133 = vpack.c.b16 %v118, %v117
  %v134 = vpack.c.b16 %v120, %v119
  %v135 = vpack.c.b16 %v122, %v121
  %v136 = vpack.c.b16 %v124, %v123
  %v137 = vpack.c.b16 %v126, %v125
  %v138 = vpack.c.b16 %v128, %v127
  %v139 = vpack.c.b16 %v130, %v129
  %v140 = vpack.c.b16 %v132, %v131
  %149 = vmatprep.subr.bf16.mxu0 0
  %150 = vmatpush1.bf16.msra.mxu0 %v140
  %151 = vmatprep.subr.bf16.mxu0 0
  %152 = vmatpush1.bf16.msra.mxu0 %v139
  %153 = vmatprep.subr.bf16.mxu0 0
  %154 = vmatpush1.bf16.msra.mxu0 %v138
  %155 = vmatprep.subr.bf16.mxu0 0
  %156 = vmatpush1.bf16.msra.mxu0 %v137
  %157 = vmatprep.subr.bf16.mxu0 0
  %158 = vmatpush1.bf16.msra.mxu0 %v136
  %159 = vmatprep.subr.bf16.mxu0 0
  %160 = vmatpush1.bf16.msra.mxu0 %v135
  %161 = vmatprep.subr.bf16.mxu0 0
  %162 = vmatpush1.bf16.msra.mxu0 %v134
  %163 = vmatprep.subr.bf16.mxu0 0
  %164 = vmatpush1.bf16.msra.mxu0 %v133
  %165 = vmatprep.subr.bf16.mxu0 0
  %166 = vmatpush2.bf16.msra.mxu0 0
  %167 = vmatprep.subr.bf16.mxu0 0
  %168 = vmatpush2.bf16.msra.mxu0 0
  %169 = vmatprep.subr.bf16.mxu0 0
  %170 = vmatpush2.bf16.msra.mxu0 0
  %171 = vmatprep.subr.bf16.mxu0 0
  %172 = vmatpush2.bf16.msra.mxu0 0
  %173 = vmatprep.subr.bf16.mxu0 0
  %174 = vmatpush2.bf16.msra.mxu0 0
  %175 = vmatprep.subr.bf16.mxu0 0
  %176 = vmatpush2.bf16.msra.mxu0 0
  %177 = vmatprep.subr.bf16.mxu0 0
  %178 = vmatpush2.bf16.msra.mxu0 0
  %179 = vmatprep.subr.bf16.mxu0 0
  %180 = vmatpush2.bf16.msra.mxu0 0
  %181 = vmatprep.mubr.bf16.mxu0 0
  %182 = vmatmul.mubr.bf16.gmra.mxu0 %v85
  %v183 = vpop.f32.mrf.mxu0
  %v184 = vadd.f32 0.0, %v183
  %v185 = vpop.f32.mrf.mxu0
  %v186 = vpop.f32.mrf.mxu0
  %v187 = vadd.f32 0.0, %v186
  %v188 = vpop.f32.mrf.mxu0
  %189 = vmatprep.mubr.bf16.mxu0 0
  %190 = vmatmul.mubr.bf16.gmra.mxu0 %v86
  %v191 = vpop.f32.mrf.mxu0
  %v192 = vadd.f32 0.0, %v191
  %v193 = vpop.f32.mrf.mxu0
  %v194 = vpop.f32.mrf.mxu0
  %v195 = vadd.f32 0.0, %v194
  %v196 = vpop.f32.mrf.mxu0
  %197 = vmatprep.mubr.bf16.mxu0 0
  %198 = vmatmul.mubr.bf16.gmra.mxu0 %v87
  %v199 = vpop.f32.mrf.mxu0
  %v200 = vadd.f32 0.0, %v199
  %v201 = vpop.f32.mrf.mxu0
  %v202 = vpop.f32.mrf.mxu0
  %v203 = vadd.f32 0.0, %v202
  %v204 = vpop.f32.mrf.mxu0
  %205 = vmatprep.mubr.bf16.mxu0 0
  %206 = vmatmul.mubr.bf16.gmra.mxu0 %v88
  %v207 = vpop.f32.mrf.mxu0
  %v208 = vadd.f32 0.0, %v207
  %v209 = vpop.f32.mrf.mxu0
  %v210 = vpop.f32.mrf.mxu0
  %v211 = vadd.f32 0.0, %v210
  %v212 = vpop.f32.mrf.mxu0
  %213 = vmatprep.mubr.bf16.mxu0 0
  %214 = vmatmul.mubr.bf16.gmra.mxu0 %v89
  %v215 = vpop.f32.mrf.mxu0
  %v216 = vadd.f32 0.0, %v215
  %v217 = vpop.f32.mrf.mxu0
  %v218 = vpop.f32.mrf.mxu0
  %v219 = vadd.f32 0.0, %v218
  %v220 = vpop.f32.mrf.mxu0
  %221 = vmatprep.mubr.bf16.mxu0 0
  %222 = vmatmul.mubr.bf16.gmra.mxu0 %v90
  %v223 = vpop.f32.mrf.mxu0
  %v224 = vadd.f32 0.0, %v223
  %v225 = vpop.f32.mrf.mxu0
  %v226 = vpop.f32.mrf.mxu0
  %v227 = vadd.f32 0.0, %v226
  %v228 = vpop.f32.mrf.mxu0
  %229 = vmatprep.mubr.bf16.mxu0 0
  %230 = vmatmul.mubr.bf16.gmra.mxu0 %v91
  %v231 = vpop.f32.mrf.mxu0
  %v232 = vadd.f32 0.0, %v231
  %v233 = vpop.f32.mrf.mxu0
  %v234 = vpop.f32.mrf.mxu0
  %v235 = vadd.f32 0.0, %v234
  %v236 = vpop.f32.mrf.mxu0
  %237 = vmatprep.mubr.bf16.mxu0 0
  %238 = vmatmul.mubr.bf16.gmra.mxu0 %v92
  %v239 = vpop.f32.mrf.mxu0
  %v240 = vadd.f32 0.0, %v239
  %v241 = vpop.f32.mrf.mxu0
  %v242 = vpop.f32.mrf.mxu0
  %v243 = vadd.f32 0.0, %v242
  %v244 = vpop.f32.mrf.mxu0
  %245 = vdwg.mxu0
  %v246 = vld [vmem:[%s2] sm:$0x1]
  %v247 = vld [vmem:[%s3] sm:$0x1]
  %v248 = vadd.f32 %v184, %v187
  %v249 = vadd.f32 %v248, %v192
  %v250 = vadd.f32 %v249, %v195
  %v251 = vadd.f32 %v250, %v200
  %v252 = vadd.f32 %v251, %v203
  %v253 = vadd.f32 %v252, %v208
  %v254 = vadd.f32 %v253, %v211
  %v255 = vadd.f32 %v254, %v216
  %v256 = vadd.f32 %v255, %v219
  %v257 = vadd.f32 %v256, %v224
  %v258 = vadd.f32 %v257, %v227
  %v259 = vadd.f32 %v258, %v232
  %v260 = vadd.f32 %v259, %v235
  %v261 = vadd.f32 %v260, %v240
  %v262 = vadd.f32 %v261, %v243
  %v263 = vrot.slane %v262, 4
  %v264 = vadd.f32 %v262, %v263
  %v265 = vrot.slane %v264, 2
  %v266 = vadd.f32 %v264, %v265
  %v267 = vrot.slane %v266, 1
  %v268 = vadd.f32 %v266, %v267
  %v269 = vrcp.pop 128.0
  %v270 = vmul.f32 %v268, %v269
  %v271 = vmul.f32 %v184, %v184
  %v272 = vmul.f32 %v187, %v187
  %v273 = vmul.f32 %v192, %v192
  %v274 = vmul.f32 %v195, %v195
  %v275 = vmul.f32 %v200, %v200
  %v276 = vmul.f32 %v203, %v203
  %v277 = vmul.f32 %v208, %v208
  %v278 = vmul.f32 %v211, %v211
  %v279 = vmul.f32 %v216, %v216
  %v280 = vmul.f32 %v219, %v219
  %v281 = vmul.f32 %v224, %v224
  %v282 = vmul.f32 %v227, %v227
  %v283 = vmul.f32 %v232, %v232
  %v284 = vmul.f32 %v235, %v235
  %v285 = vmul.f32 %v240, %v240
  %v286 = vmul.f32 %v243, %v243
  %v287 = vadd.f32 %v271, %v272
  %v288 = vadd.f32 %v287, %v273
  %v289 = vadd.f32 %v288, %v274
  %v290 = vadd.f32 %v289, %v275
  %v291 = vadd.f32 %v290, %v276
  %v292 = vadd.f32 %v291, %v277
  %v293 = vadd.f32 %v292, %v278
  %v294 = vadd.f32 %v293, %v279
  %v295 = vadd.f32 %v294, %v280
  %v296 = vadd.f32 %v295, %v281
  %v297 = vadd.f32 %v296, %v282
  %v298 = vadd.f32 %v297, %v283
  %v299 = vadd.f32 %v298, %v284
  %v300 = vadd.f32 %v299, %v285
  %v301 = vadd.f32 %v300, %v286
  %v302 = vrot.slane %v301, 4
  %v303 = vadd.f32 %v301, %v302
  %v304 = vrot.slane %v303, 2
  %v305 = vadd.f32 %v303, %v304
  %v306 = vrot.slane %v305, 1
  %v307 = vadd.f32 %v305, %v306
  %v308 = vmul.f32 %v307, %v269
  %v309 = vmul.f32 %v270, %v270
  %v310 = vsub.f32 %v308, %v309
  %v311 = vsub.f32 %v184, %v270
  %v312 = vsub.f32 %v187, %v270
  %v313 = vsub.f32 %v192, %v270
  %v314 = vsub.f32 %v195, %v270
  %v315 = vsub.f32 %v200, %v270
  %v316 = vsub.f32 %v203, %v270
  %v317 = vsub.f32 %v208, %v270
  %v318 = vsub.f32 %v211, %v270
  %v319 = vsub.f32 %v216, %v270
  %v320 = vsub.f32 %v219, %v270
  %v321 = vsub.f32 %v224, %v270
  %v322 = vsub.f32 %v227, %v270
  %v323 = vsub.f32 %v232, %v270
  %v324 = vsub.f32 %v235, %v270
  %v325 = vsub.f32 %v240, %v270
  %v326 = vsub.f32 %v243, %v270
  %v327 = vadd.f32 %v310, 1e-05
  %v328 = vrsqrt.pop %v327
  %v329 = vmul.f32 %v311, %v328
  %v330 = vmul.f32 %v312, %v328
  %v331 = vmul.f32 %v313, %v328
  %v332 = vmul.f32 %v314, %v328
  %v333 = vmul.f32 %v315, %v328
  %v334 = vmul.f32 %v316, %v328
  %v335 = vmul.f32 %v317, %v328
  %v336 = vmul.f32 %v318, %v328
  %v337 = vmul.f32 %v319, %v328
  %v338 = vmul.f32 %v320, %v328
  %v339 = vmul.f32 %v321, %v328
  %v340 = vmul.f32 %v322, %v328
  %v341 = vmul.f32 %v323, %v328
  %v342 = vmul.f32 %v324, %v328
  %v343 = vmul.f32 %v325, %v328
  %v344 = vmul.f32 %v326, %v328
  %v346 = vlaneseq
  %v347 = vshrl.u32 %v346, 7
  %v348 = vsub.s32 0, %v347
  %v349 = vrot.slane %v246, %v348
  %v351 = vmul.f32 %v329, %v349
  %v352 = vmul.f32 %v330, %v349
  %v353 = vmul.f32 %v331, %v349
  %v354 = vmul.f32 %v332, %v349
  %v355 = vmul.f32 %v333, %v349
  %v356 = vmul.f32 %v334, %v349
  %v357 = vmul.f32 %v335, %v349
  %v358 = vmul.f32 %v336, %v349
  %v359 = vmul.f32 %v337, %v349
  %v360 = vmul.f32 %v338, %v349
  %v361 = vmul.f32 %v339, %v349
  %v362 = vmul.f32 %v340, %v349
  %v363 = vmul.f32 %v341, %v349
  %v364 = vmul.f32 %v342, %v349
  %v365 = vmul.f32 %v343, %v349
  %v366 = vmul.f32 %v344, %v349
  %v368 = vlaneseq
  %v369 = vshrl.u32 %v368, 7
  %v370 = vsub.s32 0, %v369
  %v371 = vrot.slane %v247, %v370
  %v373 = vadd.f32 %v351, %v371
  %v374 = vadd.f32 %v352, %v371
  %v375 = vadd.f32 %v353, %v371
  %v376 = vadd.f32 %v354, %v371
  %v377 = vadd.f32 %v355, %v371
  %v378 = vadd.f32 %v356, %v371
  %v379 = vadd.f32 %v357, %v371
  %v380 = vadd.f32 %v358, %v371
  %v381 = vadd.f32 %v359, %v371
  %v382 = vadd.f32 %v360, %v371
  %v383 = vadd.f32 %v361, %v371
  %v384 = vadd.f32 %v362, %v371
  %v385 = vadd.f32 %v363, %v371
  %v386 = vadd.f32 %v364, %v371
  %v387 = vadd.f32 %v365, %v371
  %v388 = vadd.f32 %v366, %v371
  %vm389 = vcmp.gt.f32.partialorder %v373, 0.0
  %vm390 = vcmp.gt.f32.partialorder %v374, 0.0
  %vm391 = vcmp.gt.f32.partialorder %v375, 0.0
  %vm392 = vcmp.gt.f32.partialorder %v376, 0.0
  %vm393 = vcmp.gt.f32.partialorder %v377, 0.0
  %vm394 = vcmp.gt.f32.partialorder %v378, 0.0
  %vm395 = vcmp.gt.f32.partialorder %v379, 0.0
  %vm396 = vcmp.gt.f32.partialorder %v380, 0.0
  %vm397 = vcmp.gt.f32.partialorder %v381, 0.0
  %vm398 = vcmp.gt.f32.partialorder %v382, 0.0
  %vm399 = vcmp.gt.f32.partialorder %v383, 0.0
  %vm400 = vcmp.gt.f32.partialorder %v384, 0.0
  %vm401 = vcmp.gt.f32.partialorder %v385, 0.0
  %vm402 = vcmp.gt.f32.partialorder %v386, 0.0
  %vm403 = vcmp.gt.f32.partialorder %v387, 0.0
  %vm404 = vcmp.gt.f32.partialorder %v388, 0.0
  %v405 = vmul.f32 %v373, 0.1
  %v406 = vmul.f32 %v374, 0.1
  %v407 = vmul.f32 %v375, 0.1
  %v408 = vmul.f32 %v376, 0.1
  %v409 = vmul.f32 %v377, 0.1
  %v410 = vmul.f32 %v378, 0.1
  %v411 = vmul.f32 %v379, 0.1
  %v412 = vmul.f32 %v380, 0.1
  %v413 = vmul.f32 %v381, 0.1
  %v414 = vmul.f32 %v382, 0.1
  %v415 = vmul.f32 %v383, 0.1
  %v416 = vmul.f32 %v384, 0.1
  %v417 = vmul.f32 %v385, 0.1
  %v418 = vmul.f32 %v386, 0.1
  %v419 = vmul.f32 %v387, 0.1
  %v420 = vmul.f32 %v388, 0.1
  %v421 = vsel %vm389, %v373, %v405
  %v422 = vsel %vm390, %v374, %v406
  %v423 = vsel %vm391, %v375, %v407
  %v424 = vsel %vm392, %v376, %v408
  %v425 = vsel %vm393, %v377, %v409
  %v426 = vsel %vm394, %v378, %v410
  %v427 = vsel %vm395, %v379, %v411
  %v428 = vsel %vm396, %v380, %v412
  %v429 = vsel %vm397, %v381, %v413
  %v430 = vsel %vm398, %v382, %v414
  %v431 = vsel %vm399, %v383, %v415
  %v432 = vsel %vm400, %v384, %v416
  %v433 = vsel %vm401, %v385, %v417
  %v434 = vsel %vm402, %v386, %v418
  %v435 = vsel %vm403, %v387, %v419
  %v436 = vsel %vm404, %v388, %v420
  %v437 = vld [vmem:[%s4] sm:$0xff]
  %v438 = vld [vmem:[%s4 + $0x8] sm:$0xff]
  %v439 = vld [vmem:[%s4 + $0x10] sm:$0xff]
  %v440 = vld [vmem:[%s4 + $0x18] sm:$0xff]
  %v441 = vld [vmem:[%s4 + $0x20] sm:$0xff]
  %v442 = vld [vmem:[%s4 + $0x28] sm:$0xff]
  %v443 = vld [vmem:[%s4 + $0x30] sm:$0xff]
  %v444 = vld [vmem:[%s4 + $0x38] sm:$0xff]
  %v445 = vld [vmem:[%s4 + $0x40] sm:$0xff]
  %v446 = vld [vmem:[%s4 + $0x48] sm:$0xff]
  %v447 = vld [vmem:[%s4 + $0x50] sm:$0xff]
  %v448 = vld [vmem:[%s4 + $0x58] sm:$0xff]
  %v449 = vld [vmem:[%s4 + $0x60] sm:$0xff]
  %v450 = vld [vmem:[%s4 + $0x68] sm:$0xff]
  %v451 = vld [vmem:[%s4 + $0x70] sm:$0xff]
  %v452 = vld [vmem:[%s4 + $0x78] sm:$0xff]
  %v453 = vadd.f32 %v421, %v437
  %v454 = vadd.f32 %v422, %v438
  %v455 = vadd.f32 %v423, %v439
  %v456 = vadd.f32 %v424, %v440
  %v457 = vadd.f32 %v425, %v441
  %v458 = vadd.f32 %v426, %v442
  %v459 = vadd.f32 %v427, %v443
  %v460 = vadd.f32 %v428, %v444
  %v461 = vadd.f32 %v429, %v445
  %v462 = vadd.f32 %v430, %v446
  %v463 = vadd.f32 %v431, %v447
  %v464 = vadd.f32 %v432, %v448
  %v465 = vadd.f32 %v433, %v449
  %v466 = vadd.f32 %v434, %v450
  %v467 = vadd.f32 %v435, %v451
  %v468 = vadd.f32 %v436, %v452
  %469 = vst [vmem:[%s5] sm:$0xff] %v453
  %470 = vst [vmem:[%s5 + $0x8] sm:$0xff] %v454
  %471 = vst [vmem:[%s5 + $0x10] sm:$0xff] %v455
  %472 = vst [vmem:[%s5 + $0x18] sm:$0xff] %v456
  %473 = vst [vmem:[%s5 + $0x20] sm:$0xff] %v457
  %474 = vst [vmem:[%s5 + $0x28] sm:$0xff] %v458
  %475 = vst [vmem:[%s5 + $0x30] sm:$0xff] %v459
  %476 = vst [vmem:[%s5 + $0x38] sm:$0xff] %v460
  %477 = vst [vmem:[%s5 + $0x40] sm:$0xff] %v461
  %478 = vst [vmem:[%s5 + $0x48] sm:$0xff] %v462
  %479 = vst [vmem:[%s5 + $0x50] sm:$0xff] %v463
  %480 = vst [vmem:[%s5 + $0x58] sm:$0xff] %v464
  %481 = vst [vmem:[%s5 + $0x60] sm:$0xff] %v465
  %482 = vst [vmem:[%s5 + $0x68] sm:$0xff] %v466
  %483 = vst [vmem:[%s5 + $0x70] sm:$0xff] %v467
  %484 = vst [vmem:[%s5 + $0x78] sm:$0xff] %v468
  // Predicated region
  $region22: #{_lambda_.11} parent=0 // pred_check
    _
  $region23: #{_lambda_.11} parent=0 // pred_check_branch
    %486 = sbr.rel (0) target = $region25
  $region24: #{_lambda_.11} parent=0 // pred_region
    _
  $region25: #{_lambda_.11} parent=0 // pred_fallthru
    _
  // Predicated region
  $region26: #{_lambda_.11} parent=0 // pred_check
    _
  $region27: #{_lambda_.11} parent=0 // pred_check_branch
    %488 = sbr.rel (0) target = $region29
  $region28: #{_lambda_.11} parent=0 // pred_region
    _
  $region29: #{_lambda_.11} parent=0 // pred_fallthru
    _

// kernel: _lambda_.13
$region0: #{_lambda_.13}
  #allocation0 [shape = 'u32[]', space=smem, size = 0x4, offset = 0x4, fixed_abs, tag = 'smem constant byte address 0x4 - core index']
  #allocation1 [shape = 'u32[144,128]{1,0:T(1,128)}', space=vmem, size = 0x12000, scoped, tag = 'internal scratch']
  %s0 = inlined_call_operand.vmem [shape: bf16[32,128], index: 0, kind: input, shape index: {}]
  %s1 = inlined_call_operand.vmem [shape: bf16[128,128], index: 1, kind: input, shape index: {}]
  %s2 = inlined_call_operand.vmem [shape: f32[1,128], index: 2, kind: input, shape index: {}]
  %s3 = inlined_call_operand.vmem [shape: f32[32,128], index: 3, kind: input, shape index: {}]
  %s4 = inlined_call_operand.vmem [shape: f32[1,128], index: 4, kind: input, shape index: {}]
  %s5 = inlined_call_operand.vmem [shape: f32[1,128], index: 5, kind: input, shape index: {}]
  %s6 = inlined_call_operand.vmem [shape: f32[1,128], index: 6, kind: input, shape index: {}]
  %s7 = inlined_call_operand.vmem [shape: f32[32,128], index: 7, kind: output, shape index: {}]
  %s8 = sld [smem:[#allocation0]]
  $region38: #{_lambda_.13} parent=0
    _
  %s10 = ssub.s32 1, %s8
  %s11 = scalar_select 0, %s10, %s8
  // Predicated region
  $region2: #{_lambda_.13} parent=0 // pred_check
    _
  $region3: #{_lambda_.13} parent=0 // pred_check_branch
    %13 = sbr.rel (0) target = $region5
  $region4: #{_lambda_.13} parent=0 // pred_region
    _
  $region5: #{_lambda_.13} parent=0 // pred_fallthru
    _
  // Predicated region
  $region6: #{_lambda_.13} parent=0 // pred_check
    _
  $region7: #{_lambda_.13} parent=0 // pred_check_branch
    %15 = sbr.rel (0) target = $region9
  $region8: #{_lambda_.13} parent=0 // pred_region
    _
  $region9: #{_lambda_.13} parent=0 // pred_fallthru
    _
  // Predicated region
  $region10: #{_lambda_.13} parent=0 // pred_check
    _
  $region11: #{_lambda_.13} parent=0 // pred_check_branch
    %17 = sbr.rel (0) target = $region13
  $region12: #{_lambda_.13} parent=0 // pred_region
    _
  $region13: #{_lambda_.13} parent=0 // pred_fallthru
    _
  // Predicated region
  $region14: #{_lambda_.13} parent=0 // pred_check
    _
  $region15: #{_lambda_.13} parent=0 // pred_check_branch
    %19 = sbr.rel (0) target = $region17
  $region16: #{_lambda_.13} parent=0 // pred_region
    _
  $region17: #{_lambda_.13} parent=0 // pred_fallthru
    _
  // Predicated region
  $region18: #{_lambda_.13} parent=0 // pred_check
    _
  $region19: #{_lambda_.13} parent=0 // pred_check_branch
    %21 = sbr.rel (0) target = $region21
  $region20: #{_lambda_.13} parent=0 // pred_region
    _
  $region21: #{_lambda_.13} parent=0 // pred_fallthru
    _
  // Predicated region
  $region22: #{_lambda_.13} parent=0 // pred_check
    _
  $region23: #{_lambda_.13} parent=0 // pred_check_branch
    %23 = sbr.rel (0) target = $region25
  $region24: #{_lambda_.13} parent=0 // pred_region
    _
  $region25: #{_lambda_.13} parent=0 // pred_fallthru
    _
  // Predicated region
  $region26: #{_lambda_.13} parent=0 // pred_check
    _
  $region27: #{_lambda_.13} parent=0 // pred_check_branch
    %25 = sbr.rel (0) target = $region29
  $region28: #{_lambda_.13} parent=0 // pred_region
    _
  $region29: #{_lambda_.13} parent=0 // pred_fallthru
    _
  %v27 = vld [vmem:[%s0] sm:$0xf]
  %v28 = vld [vmem:[%s0 + $0x4] sm:$0xf]
  %v29 = vld [vmem:[%s0 + $0x8] sm:$0xf]
  %v30 = vld [vmem:[%s0 + $0xc] sm:$0xf]
  %v31 = vld [vmem:[%s1] sm:$0xf]
  %v32 = vld [vmem:[%s1 + $0x4] sm:$0xf]
  %v33 = vld [vmem:[%s1 + $0x8] sm:$0xf]
  %v34 = vld [vmem:[%s1 + $0xc] sm:$0xf]
  %v35 = vld [vmem:[%s1 + $0x10] sm:$0xf]
  %v36 = vld [vmem:[%s1 + $0x14] sm:$0xf]
  %v37 = vld [vmem:[%s1 + $0x18] sm:$0xf]
  %v38 = vld [vmem:[%s1 + $0x1c] sm:$0xf]
  %v39 = vld [vmem:[%s1 + $0x20] sm:$0xf]
  %v40 = vld [vmem:[%s1 + $0x24] sm:$0xf]
  %v41 = vld [vmem:[%s1 + $0x28] sm:$0xf]
  %v42 = vld [vmem:[%s1 + $0x2c] sm:$0xf]
  %v43 = vld [vmem:[%s1 + $0x30] sm:$0xf]
  %v44 = vld [vmem:[%s1 + $0x34] sm:$0xf]
  %v45 = vld [vmem:[%s1 + $0x38] sm:$0xf]
  %v46 = vld [vmem:[%s1 + $0x3c] sm:$0xf]
  %v47 = vld [vmem:[%s2] sm:$0x1]
  %v49 = vlaneseq
  %v50 = vshrl.u32 %v49, 7
  %v51 = vsub.s32 0, %v50
  %v52 = vrot.slane %v47, %v51
  %v58 = vunpack.c.l.b16 %v27
  %v59 = vunpack.c.l.b16 %v28
  %v60 = vunpack.c.l.b16 %v29
  %v61 = vunpack.c.l.b16 %v30
  %v62 = vpack.c.b16 %v59, %v58
  %v63 = vpack.c.b16 %v61, %v60
  %v82 = vunpack.c.l.b16 %v31
  %v83 = vunpack.c.l.b16 %v32
  %v84 = vunpack.c.l.b16 %v33
  %v85 = vunpack.c.l.b16 %v34
  %v86 = vunpack.c.l.b16 %v35
  %v87 = vunpack.c.l.b16 %v36
  %v88 = vunpack.c.l.b16 %v37
  %v89 = vunpack.c.l.b16 %v38
  %v90 = vunpack.c.l.b16 %v39
  %v91 = vunpack.c.l.b16 %v40
  %v92 = vunpack.c.l.b16 %v41
  %v93 = vunpack.c.l.b16 %v42
  %v94 = vunpack.c.l.b16 %v43
  %v95 = vunpack.c.l.b16 %v44
  %v96 = vunpack.c.l.b16 %v45
  %v97 = vunpack.c.l.b16 %v46
  %v98 = vpack.c.b16 %v83, %v82
  %v99 = vpack.c.b16 %v85, %v84
  %v100 = vpack.c.b16 %v87, %v86
  %v101 = vpack.c.b16 %v89, %v88
  %v102 = vpack.c.b16 %v91, %v90
  %v103 = vpack.c.b16 %v93, %v92
  %v104 = vpack.c.b16 %v95, %v94
  %v105 = vpack.c.b16 %v97, %v96
  %114 = vmatprep.subr.bf16.mxu0 0
  %115 = vmatpush1.bf16.msra.mxu0 %v105
  %116 = vmatprep.subr.bf16.mxu0 0
  %117 = vmatpush1.bf16.msra.mxu0 %v104
  %118 = vmatprep.subr.bf16.mxu0 0
  %119 = vmatpush1.bf16.msra.mxu0 %v103
  %120 = vmatprep.subr.bf16.mxu0 0
  %121 = vmatpush1.bf16.msra.mxu0 %v102
  %122 = vmatprep.subr.bf16.mxu0 0
  %123 = vmatpush1.bf16.msra.mxu0 %v101
  %124 = vmatprep.subr.bf16.mxu0 0
  %125 = vmatpush1.bf16.msra.mxu0 %v100
  %126 = vmatprep.subr.bf16.mxu0 0
  %127 = vmatpush1.bf16.msra.mxu0 %v99
  %128 = vmatprep.subr.bf16.mxu0 0
  %129 = vmatpush1.bf16.msra.mxu0 %v98
  %130 = vmatprep.subr.bf16.mxu0 0
  %131 = vmatpush2.bf16.msra.mxu0 0
  %132 = vmatprep.subr.bf16.mxu0 0
  %133 = vmatpush2.bf16.msra.mxu0 0
  %134 = vmatprep.subr.bf16.mxu0 0
  %135 = vmatpush2.bf16.msra.mxu0 0
  %136 = vmatprep.subr.bf16.mxu0 0
  %137 = vmatpush2.bf16.msra.mxu0 0
  %138 = vmatprep.subr.bf16.mxu0 0
  %139 = vmatpush2.bf16.msra.mxu0 0
  %140 = vmatprep.subr.bf16.mxu0 0
  %141 = vmatpush2.bf16.msra.mxu0 0
  %142 = vmatprep.subr.bf16.mxu0 0
  %143 = vmatpush2.bf16.msra.mxu0 0
  %144 = vmatprep.subr.bf16.mxu0 0
  %145 = vmatpush2.bf16.msra.mxu0 0
  %146 = vmatprep.mubr.bf16.mxu0 0
  %147 = vmatmul.mubr.bf16.gmra.mxu0 %v62
  %v148 = vpop.f32.mrf.mxu0
  %v149 = vadd.f32 %v52, %v148
  %v150 = vpop.f32.mrf.mxu0
  %v151 = vpop.f32.mrf.mxu0
  %v152 = vadd.f32 %v52, %v151
  %v153 = vpop.f32.mrf.mxu0
  %154 = vmatprep.mubr.bf16.mxu0 0
  %155 = vmatmul.mubr.bf16.gmra.mxu0 %v63
  %v156 = vpop.f32.mrf.mxu0
  %v157 = vadd.f32 %v52, %v156
  %v158 = vpop.f32.mrf.mxu0
  %v159 = vpop.f32.mrf.mxu0
  %v160 = vadd.f32 %v52, %v159
  %v161 = vpop.f32.mrf.mxu0
  %162 = vdwg.mxu0
  %v163 = vld [vmem:[%s3] sm:$0xff]
  %v164 = vld [vmem:[%s3 + $0x8] sm:$0xff]
  %v165 = vld [vmem:[%s3 + $0x10] sm:$0xff]
  %v166 = vld [vmem:[%s3 + $0x18] sm:$0xff]
  %v167 = vld [vmem:[%s4] sm:$0x1]
  %v168 = vld [vmem:[%s5] sm:$0x1]
  %v169 = vld [vmem:[%s6] sm:$0x1]
  %v170 = vxor.u32 %v149, 2147483648
  %v171 = vxor.u32 %v152, 2147483648
  %v172 = vxor.u32 %v157, 2147483648
  %v173 = vxor.u32 %v160, 2147483648
  %v174 = vmul.f32 %v170, 1.442695
  %v175 = vpow.pop %v174
  %v176 = vmul.f32 %v171, 1.442695
  %v177 = vpow.pop %v176
  %v178 = vmul.f32 %v172, 1.442695
  %v179 = vpow.pop %v178
  %v180 = vmul.f32 %v173, 1.442695
  %v181 = vpow.pop %v180
  %v182 = vadd.f32 %v175, 1.0
  %v183 = vadd.f32 %v177, 1.0
  %v184 = vadd.f32 %v179, 1.0
  %v185 = vadd.f32 %v181, 1.0
  %v186 = vrcp.pop %v182
  %v187 = vmul.f32 1.0, %v186
  %v188 = vrcp.pop %v183
  %v189 = vmul.f32 1.0, %v188
  %v190 = vrcp.pop %v184
  %v191 = vmul.f32 1.0, %v190
  %v192 = vrcp.pop %v185
  %v193 = vmul.f32 1.0, %v192
  %v194 = vadd.f32 %v187, %v163
  %v195 = vadd.f32 %v189, %v164
  %v196 = vadd.f32 %v191, %v165
  %v197 = vadd.f32 %v193, %v166
  %v199 = vlaneseq
  %v200 = vshrl.u32 %v199, 7
  %v201 = vsub.s32 0, %v200
  %v202 = vrot.slane %v168, %v201
  %v204 = vmul.f32 %v202, %v194
  %v205 = vmul.f32 %v202, %v195
  %v206 = vmul.f32 %v202, %v196
  %v207 = vmul.f32 %v202, %v197
  %v208 = vmul.f32 %v204, 4.0
  %v209 = vmul.f32 %v205, 4.0
  %v210 = vmul.f32 %v206, 4.0
  %v211 = vmul.f32 %v207, 4.0
  %v213 = vlaneseq
  %v214 = vshrl.u32 %v213, 7
  %v215 = vsub.s32 0, %v214
  %v216 = vrot.slane %v169, %v215
  %v218 = vmul.f32 %v149, %v216
  %v219 = vmul.f32 %v152, %v216
  %v220 = vmul.f32 %v157, %v216
  %v221 = vmul.f32 %v160, %v216
  %v222 = vmul.f32 %v218, 1.442695
  %v223 = vpow.pop %v222
  %v224 = vmul.f32 %v219, 1.442695
  %v225 = vpow.pop %v224
  %v226 = vmul.f32 %v220, 1.442695
  %v227 = vpow.pop %v226
  %v228 = vmul.f32 %v221, 1.442695
  %v229 = vpow.pop %v228
  %v231 = vlaneseq
  %v232 = vshrl.u32 %v231, 7
  %v233 = vsub.s32 0, %v232
  %v234 = vrot.slane %v167, %v233
  %v236 = vmul.f32 %v223, %v234
  %v237 = vmul.f32 %v225, %v234
  %v238 = vmul.f32 %v227, %v234
  %v239 = vmul.f32 %v229, %v234
  %v240 = vmul.f32 %v236, 4.0
  %v241 = vmul.f32 %v237, 4.0
  %v242 = vmul.f32 %v238, 4.0
  %v243 = vmul.f32 %v239, 4.0
  %v244 = vsub.f32 1.0, %v168
  %v245 = vsub.f32 %v244, %v169
  %v247 = vlaneseq
  %v248 = vshrl.u32 %v247, 7
  %v249 = vsub.s32 0, %v248
  %v250 = vrot.slane %v245, %v249
  %v252 = vmul.f32 %v250, %v187
  %v253 = vmul.f32 %v250, %v189
  %v254 = vmul.f32 %v250, %v191
  %v255 = vmul.f32 %v250, %v193
  %v256 = vadd.f32 %v208, %v240
  %v257 = vadd.f32 %v209, %v241
  %v258 = vadd.f32 %v210, %v242
  %v259 = vadd.f32 %v211, %v243
  %v260 = vadd.f32 %v256, %v252
  %v261 = vadd.f32 %v257, %v253
  %v262 = vadd.f32 %v258, %v254
  %v263 = vadd.f32 %v259, %v255
  %264 = vst [vmem:[%s7] sm:$0xff] %v260
  %265 = vst [vmem:[%s7 + $0x8] sm:$0xff] %v261
  %266 = vst [vmem:[%s7 + $0x10] sm:$0xff] %v262
  %267 = vst [vmem:[%s7 + $0x18] sm:$0xff] %v263
  // Predicated region
  $region30: #{_lambda_.13} parent=0 // pred_check
    _
  $region31: #{_lambda_.13} parent=0 // pred_check_branch
    %269 = sbr.rel (0) target = $region33
  $region32: #{_lambda_.13} parent=0 // pred_region
    _
  $region33: #{_lambda_.13} parent=0 // pred_fallthru
    _
  // Predicated region
  $region34: #{_lambda_.13} parent=0 // pred_check
    _
  $region35: #{_lambda_.13} parent=0 // pred_check_branch
    %271 = sbr.rel (0) target = $region37
  $region36: #{_lambda_.13} parent=0 // pred_region
    _
  $region37: #{_lambda_.13} parent=0 // pred_fallthru
    _

// kernel: _lambda_.12
$region0: #{_lambda_.12}
  #allocation0 [shape = 'u32[]', space=smem, size = 0x4, offset = 0x4, fixed_abs, tag = 'smem constant byte address 0x4 - core index']
  #allocation1 [shape = 'u32[144,128]{1,0:T(1,128)}', space=vmem, size = 0x12000, scoped, tag = 'internal scratch']
  %s0 = inlined_call_operand.vmem [shape: bf16[32,256], index: 0, kind: input, shape index: {}]
  %s1 = inlined_call_operand.vmem [shape: bf16[256,128], index: 1, kind: input, shape index: {}]
  %s2 = inlined_call_operand.vmem [shape: f32[1,128], index: 2, kind: input, shape index: {}]
  %s3 = inlined_call_operand.vmem [shape: f32[1,128], index: 3, kind: input, shape index: {}]
  %s4 = inlined_call_operand.vmem [shape: f32[32,128], index: 4, kind: output, shape index: {}]
  %s5 = sld [smem:[#allocation0]]
  $region26: #{_lambda_.12} parent=0
    _
  %s7 = ssub.s32 1, %s5
  %s8 = scalar_select 0, %s7, %s5
  // Predicated region
  $region2: #{_lambda_.12} parent=0 // pred_check
    _
  $region3: #{_lambda_.12} parent=0 // pred_check_branch
    %10 = sbr.rel (0) target = $region5
  $region4: #{_lambda_.12} parent=0 // pred_region
    _
  $region5: #{_lambda_.12} parent=0 // pred_fallthru
    _
  // Predicated region
  $region6: #{_lambda_.12} parent=0 // pred_check
    _
  $region7: #{_lambda_.12} parent=0 // pred_check_branch
    %12 = sbr.rel (0) target = $region9
  $region8: #{_lambda_.12} parent=0 // pred_region
    _
  $region9: #{_lambda_.12} parent=0 // pred_fallthru
    _
  // Predicated region
  $region10: #{_lambda_.12} parent=0 // pred_check
    _
  $region11: #{_lambda_.12} parent=0 // pred_check_branch
    %14 = sbr.rel (0) target = $region13
  $region12: #{_lambda_.12} parent=0 // pred_region
    _
  $region13: #{_lambda_.12} parent=0 // pred_fallthru
    _
  // Predicated region
  $region14: #{_lambda_.12} parent=0 // pred_check
    _
  $region15: #{_lambda_.12} parent=0 // pred_check_branch
    %16 = sbr.rel (0) target = $region17
  $region16: #{_lambda_.12} parent=0 // pred_region
    _
  $region17: #{_lambda_.12} parent=0 // pred_fallthru
    _
  %v18 = vld [vmem:[%s0] sm:$0xff]
  %v19 = vld [vmem:[%s0 + $0x8] sm:$0xff]
  %v20 = vld [vmem:[%s0 + $0x10] sm:$0xff]
  %v21 = vld [vmem:[%s0 + $0x18] sm:$0xff]
  %v22 = vld [vmem:[%s1] sm:$0xf]
  %v23 = vld [vmem:[%s1 + $0x4] sm:$0xf]
  %v24 = vld [vmem:[%s1 + $0x8] sm:$0xf]
  %v25 = vld [vmem:[%s1 + $0xc] sm:$0xf]
  %v26 = vld [vmem:[%s1 + $0x10] sm:$0xf]
  %v27 = vld [vmem:[%s1 + $0x14] sm:$0xf]
  %v28 = vld [vmem:[%s1 + $0x18] sm:$0xf]
  %v29 = vld [vmem:[%s1 + $0x1c] sm:$0xf]
  %v30 = vld [vmem:[%s1 + $0x20] sm:$0xf]
  %v31 = vld [vmem:[%s1 + $0x24] sm:$0xf]
  %v32 = vld [vmem:[%s1 + $0x28] sm:$0xf]
  %v33 = vld [vmem:[%s1 + $0x2c] sm:$0xf]
  %v34 = vld [vmem:[%s1 + $0x30] sm:$0xf]
  %v35 = vld [vmem:[%s1 + $0x34] sm:$0xf]
  %v36 = vld [vmem:[%s1 + $0x38] sm:$0xf]
  %v37 = vld [vmem:[%s1 + $0x3c] sm:$0xf]
  %v38 = vld [vmem:[%s1 + $0x40] sm:$0xf]
  %v39 = vld [vmem:[%s1 + $0x44] sm:$0xf]
  %v40 = vld [vmem:[%s1 + $0x48] sm:$0xf]
  %v41 = vld [vmem:[%s1 + $0x4c] sm:$0xf]
  %v42 = vld [vmem:[%s1 + $0x50] sm:$0xf]
  %v43 = vld [vmem:[%s1 + $0x54] sm:$0xf]
  %v44 = vld [vmem:[%s1 + $0x58] sm:$0xf]
  %v45 = vld [vmem:[%s1 + $0x5c] sm:$0xf]
  %v46 = vld [vmem:[%s1 + $0x60] sm:$0xf]
  %v47 = vld [vmem:[%s1 + $0x64] sm:$0xf]
  %v48 = vld [vmem:[%s1 + $0x68] sm:$0xf]
  %v49 = vld [vmem:[%s1 + $0x6c] sm:$0xf]
  %v50 = vld [vmem:[%s1 + $0x70] sm:$0xf]
  %v51 = vld [vmem:[%s1 + $0x74] sm:$0xf]
  %v52 = vld [vmem:[%s1 + $0x78] sm:$0xf]
  %v53 = vld [vmem:[%s1 + $0x7c] sm:$0xf]
  %v58 = vunpack.c.l.b16 %v18
  %v59 = vunpack.c.h.b16 %v18
  %v60 = vunpack.c.l.b16 %v19
  %v61 = vunpack.c.h.b16 %v19
  %v62 = vunpack.c.l.b16 %v20
  %v63 = vunpack.c.h.b16 %v20
  %v64 = vunpack.c.l.b16 %v21
  %v65 = vunpack.c.h.b16 %v21
  %v66 = vpack.c.b16 %v60, %v58
  %v67 = vpack.c.b16 %v61, %v59
  %v68 = vpack.c.b16 %v64, %v62
  %v69 = vpack.c.b16 %v65, %v63
  %v106 = vunpack.c.l.b16 %v22
  %v107 = vunpack.c.l.b16 %v23
  %v108 = vunpack.c.l.b16 %v24
  %v109 = vunpack.c.l.b16 %v25
  %v110 = vunpack.c.l.b16 %v26
  %v111 = vunpack.c.l.b16 %v27
  %v112 = vunpack.c.l.b16 %v28
  %v113 = vunpack.c.l.b16 %v29
  %v114 = vunpack.c.l.b16 %v30
  %v115 = vunpack.c.l.b16 %v31
  %v116 = vunpack.c.l.b16 %v32
  %v117 = vunpack.c.l.b16 %v33
  %v118 = vunpack.c.l.b16 %v34
  %v119 = vunpack.c.l.b16 %v35
  %v120 = vunpack.c.l.b16 %v36
  %v121 = vunpack.c.l.b16 %v37
  %v122 = vunpack.c.l.b16 %v38
  %v123 = vunpack.c.l.b16 %v39
  %v124 = vunpack.c.l.b16 %v40
  %v125 = vunpack.c.l.b16 %v41
  %v126 = vunpack.c.l.b16 %v42
  %v127 = vunpack.c.l.b16 %v43
  %v128 = vunpack.c.l.b16 %v44
  %v129 = vunpack.c.l.b16 %v45
  %v130 = vunpack.c.l.b16 %v46
  %v131 = vunpack.c.l.b16 %v47
  %v132 = vunpack.c.l.b16 %v48
  %v133 = vunpack.c.l.b16 %v49
  %v134 = vunpack.c.l.b16 %v50
  %v135 = vunpack.c.l.b16 %v51
  %v136 = vunpack.c.l.b16 %v52
  %v137 = vunpack.c.l.b16 %v53
  %v138 = vpack.c.b16 %v107, %v106
  %v139 = vpack.c.b16 %v109, %v108
  %v140 = vpack.c.b16 %v111, %v110
  %v141 = vpack.c.b16 %v113, %v112
  %v142 = vpack.c.b16 %v115, %v114
  %v143 = vpack.c.b16 %v117, %v116
  %v144 = vpack.c.b16 %v119, %v118
  %v145 = vpack.c.b16 %v121, %v120
  %v146 = vpack.c.b16 %v123, %v122
  %v147 = vpack.c.b16 %v125, %v124
  %v148 = vpack.c.b16 %v127, %v126
  %v149 = vpack.c.b16 %v129, %v128
  %v150 = vpack.c.b16 %v131, %v130
  %v151 = vpack.c.b16 %v133, %v132
  %v152 = vpack.c.b16 %v135, %v134
  %v153 = vpack.c.b16 %v137, %v136
  %170 = vmatprep.subr.bf16.mxu0 0
  %171 = vmatpush1.bf16.msra.mxu0 %v145
  %172 = vmatprep.subr.bf16.mxu0 0
  %173 = vmatpush1.bf16.msra.mxu0 %v144
  %174 = vmatprep.subr.bf16.mxu0 0
  %175 = vmatpush1.bf16.msra.mxu0 %v143
  %176 = vmatprep.subr.bf16.mxu0 0
  %177 = vmatpush1.bf16.msra.mxu0 %v142
  %178 = vmatprep.subr.bf16.mxu0 0
  %179 = vmatpush1.bf16.msra.mxu0 %v141
  %180 = vmatprep.subr.bf16.mxu0 0
  %181 = vmatpush1.bf16.msra.mxu0 %v140
  %182 = vmatprep.subr.bf16.mxu0 0
  %183 = vmatpush1.bf16.msra.mxu0 %v139
  %184 = vmatprep.subr.bf16.mxu0 0
  %185 = vmatpush1.bf16.msra.mxu0 %v138
  %186 = vmatprep.subr.bf16.mxu0 0
  %187 = vmatpush2.bf16.msra.mxu0 %v153
  %188 = vmatprep.subr.bf16.mxu0 0
  %189 = vmatpush2.bf16.msra.mxu0 %v152
  %190 = vmatprep.subr.bf16.mxu0 0
  %191 = vmatpush2.bf16.msra.mxu0 %v151
  %192 = vmatprep.subr.bf16.mxu0 0
  %193 = vmatpush2.bf16.msra.mxu0 %v150
  %194 = vmatprep.subr.bf16.mxu0 0
  %195 = vmatpush2.bf16.msra.mxu0 %v149
  %196 = vmatprep.subr.bf16.mxu0 0
  %197 = vmatpush2.bf16.msra.mxu0 %v148
  %198 = vmatprep.subr.bf16.mxu0 0
  %199 = vmatpush2.bf16.msra.mxu0 %v147
  %200 = vmatprep.subr.bf16.mxu0 0
  %201 = vmatpush2.bf16.msra.mxu0 %v146
  %202 = vmatprep.mubr.bf16.mxu0 %v67
  %203 = vmatmul.mubr.bf16.gmra.mxu0 %v66
  %v204 = vpop.f32.mrf.mxu0
  %v205 = vadd.f32 0.0, %v204
  %v206 = vpop.f32.mrf.mxu0
  %v207 = vpop.f32.mrf.mxu0
  %v208 = vadd.f32 0.0, %v207
  %v209 = vpop.f32.mrf.mxu0
  %210 = vmatprep.mubr.bf16.mxu0 %v69
  %211 = vmatmul.mubr.bf16.gmra.mxu0 %v68
  %v212 = vpop.f32.mrf.mxu0
  %v213 = vadd.f32 0.0, %v212
  %v214 = vpop.f32.mrf.mxu0
  %v215 = vpop.f32.mrf.mxu0
  %v216 = vadd.f32 0.0, %v215
  %v217 = vpop.f32.mrf.mxu0
  %218 = vdwg.mxu0
  %v219 = vld [vmem:[%s2] sm:$0x1]
  %v220 = vld [vmem:[%s3] sm:$0x1]
  %v221 = vadd.f32 %v205, %v208
  %v222 = vadd.f32 %v221, %v213
  %v223 = vadd.f32 %v222, %v216
  %v224 = vrot.slane %v223, 4
  %v225 = vadd.f32 %v223, %v224
  %v226 = vrot.slane %v225, 2
  %v227 = vadd.f32 %v225, %v226
  %v228 = vrot.slane %v227, 1
  %v229 = vadd.f32 %v227, %v228
  %v230 = vrcp.pop 32.0
  %v231 = vmul.f32 %v229, %v230
  %v232 = vmul.f32 %v205, %v205
  %v233 = vmul.f32 %v208, %v208
  %v234 = vmul.f32 %v213, %v213
  %v235 = vmul.f32 %v216, %v216
  %v236 = vadd.f32 %v232, %v233
  %v237 = vadd.f32 %v236, %v234
  %v238 = vadd.f32 %v237, %v235
  %v239 = vrot.slane %v238, 4
  %v240 = vadd.f32 %v238, %v239
  %v241 = vrot.slane %v240, 2
  %v242 = vadd.f32 %v240, %v241
  %v243 = vrot.slane %v242, 1
  %v244 = vadd.f32 %v242, %v243
  %v245 = vmul.f32 %v244, %v230
  %v246 = vmul.f32 %v231, %v231
  %v247 = vsub.f32 %v245, %v246
  %v248 = vsub.f32 %v205, %v231
  %v249 = vsub.f32 %v208, %v231
  %v250 = vsub.f32 %v213, %v231
  %v251 = vsub.f32 %v216, %v231
  %v252 = vadd.f32 %v247, 1e-05
  %v253 = vrsqrt.pop %v252
  %v254 = vmul.f32 %v248, %v253
  %v255 = vmul.f32 %v249, %v253
  %v256 = vmul.f32 %v250, %v253
  %v257 = vmul.f32 %v251, %v253
  %v259 = vlaneseq
  %v260 = vshrl.u32 %v259, 7
  %v261 = vsub.s32 0, %v260
  %v262 = vrot.slane %v219, %v261
  %v264 = vmul.f32 %v254, %v262
  %v265 = vmul.f32 %v255, %v262
  %v266 = vmul.f32 %v256, %v262
  %v267 = vmul.f32 %v257, %v262
  %v269 = vlaneseq
  %v270 = vshrl.u32 %v269, 7
  %v271 = vsub.s32 0, %v270
  %v272 = vrot.slane %v220, %v271
  %v274 = vadd.f32 %v264, %v272
  %v275 = vadd.f32 %v265, %v272
  %v276 = vadd.f32 %v266, %v272
  %v277 = vadd.f32 %v267, %v272
  %vm278 = vcmp.gt.f32.partialorder %v274, 0.0
  %vm279 = vcmp.gt.f32.partialorder %v275, 0.0
  %vm280 = vcmp.gt.f32.partialorder %v276, 0.0
  %vm281 = vcmp.gt.f32.partialorder %v277, 0.0
  %v282 = vmul.f32 %v274, 0.1
  %v283 = vmul.f32 %v275, 0.1
  %v284 = vmul.f32 %v276, 0.1
  %v285 = vmul.f32 %v277, 0.1
  %v286 = vsel %vm278, %v274, %v282
  %v287 = vsel %vm279, %v275, %v283
  %v288 = vsel %vm280, %v276, %v284
  %v289 = vsel %vm281, %v277, %v285
  %290 = vst [vmem:[%s4] sm:$0xff] %v286
  %291 = vst [vmem:[%s4 + $0x8] sm:$0xff] %v287
  %292 = vst [vmem:[%s4 + $0x10] sm:$0xff] %v288
  %293 = vst [vmem:[%s4 + $0x18] sm:$0xff] %v289
  // Predicated region
  $region18: #{_lambda_.12} parent=0 // pred_check
    _
  $region19: #{_lambda_.12} parent=0 // pred_check_branch
    %295 = sbr.rel (0) target = $region21
  $region20: #{_lambda_.12} parent=0 // pred_region
    _
  $region21: #{_lambda_.12} parent=0 // pred_fallthru
    _
  // Predicated region
  $region22: #{_lambda_.12} parent=0 // pred_check
    _
  $region23: #{_lambda_.12} parent=0 // pred_check_branch
    %297 = sbr.rel (0) target = $region25
  $region24: #{_lambda_.12} parent=0 // pred_region
    _
  $region25: #{_lambda_.12} parent=0 // pred_fallthru
    _

// kernel: _lambda_.15
$region0: #{_lambda_.15}
  #allocation0 [shape = 'u32[]', space=smem, size = 0x4, offset = 0x4, fixed_abs, tag = 'smem constant byte address 0x4 - core index']
  #allocation1 [shape = 'u32[144,128]{1,0:T(1,128)}', space=vmem, size = 0x12000, scoped, tag = 'internal scratch']
  %s0 = inlined_call_operand.vmem [shape: bf16[512,128], index: 0, kind: input, shape index: {}]
  %s1 = inlined_call_operand.vmem [shape: bf16[128,128], index: 1, kind: input, shape index: {}]
  %s2 = inlined_call_operand.vmem [shape: f32[1,128], index: 2, kind: input, shape index: {}]
  %s3 = inlined_call_operand.vmem [shape: f32[512,128], index: 3, kind: input, shape index: {}]
  %s4 = inlined_call_operand.vmem [shape: f32[1,128], index: 4, kind: input, shape index: {}]
  %s5 = inlined_call_operand.vmem [shape: f32[1,128], index: 5, kind: input, shape index: {}]
  %s6 = inlined_call_operand.vmem [shape: f32[1,128], index: 6, kind: input, shape index: {}]
  %s7 = inlined_call_operand.vmem [shape: f32[512,128], index: 7, kind: output, shape index: {}]
  %s8 = sld [smem:[#allocation0]]
  $region38: #{_lambda_.15} parent=0
    _
  %s10 = ssub.s32 1, %s8
  %s11 = scalar_select 0, %s10, %s8
  // Predicated region
  $region2: #{_lambda_.15} parent=0 // pred_check
    _
  $region3: #{_lambda_.15} parent=0 // pred_check_branch
    %13 = sbr.rel (0) target = $region5
  $region4: #{_lambda_.15} parent=0 // pred_region
    _
  $region5: #{_lambda_.15} parent=0 // pred_fallthru
    _
  // Predicated region
  $region6: #{_lambda_.15} parent=0 // pred_check
    _
  $region7: #{_lambda_.15} parent=0 // pred_check_branch
    %15 = sbr.rel (0) target = $region9
  $region8: #{_lambda_.15} parent=0 // pred_region
    _
  $region9: #{_lambda_.15} parent=0 // pred_fallthru
    _
  // Predicated region
  $region10: #{_lambda_.15} parent=0 // pred_check
    _
  $region11: #{_lambda_.15} parent=0 // pred_check_branch
    %17 = sbr.rel (0) target = $region13
  $region12: #{_lambda_.15} parent=0 // pred_region
    _
  $region13: #{_lambda_.15} parent=0 // pred_fallthru
    _
  // Predicated region
  $region14: #{_lambda_.15} parent=0 // pred_check
    _
  $region15: #{_lambda_.15} parent=0 // pred_check_branch
    %19 = sbr.rel (0) target = $region17
  $region16: #{_lambda_.15} parent=0 // pred_region
    _
  $region17: #{_lambda_.15} parent=0 // pred_fallthru
    _
  // Predicated region
  $region18: #{_lambda_.15} parent=0 // pred_check
    _
  $region19: #{_lambda_.15} parent=0 // pred_check_branch
    %21 = sbr.rel (0) target = $region21
  $region20: #{_lambda_.15} parent=0 // pred_region
    _
  $region21: #{_lambda_.15} parent=0 // pred_fallthru
    _
  // Predicated region
  $region22: #{_lambda_.15} parent=0 // pred_check
    _
  $region23: #{_lambda_.15} parent=0 // pred_check_branch
    %23 = sbr.rel (0) target = $region25
  $region24: #{_lambda_.15} parent=0 // pred_region
    _
  $region25: #{_lambda_.15} parent=0 // pred_fallthru
    _
  // Predicated region
  $region26: #{_lambda_.15} parent=0 // pred_check
    _
  $region27: #{_lambda_.15} parent=0 // pred_check_branch
    %25 = sbr.rel (0) target = $region29
  $region28: #{_lambda_.15} parent=0 // pred_region
    _
  $region29: #{_lambda_.15} parent=0 // pred_fallthru
    _
  %v27 = vld [vmem:[%s0] sm:$0xf]
  %v28 = vld [vmem:[%s0 + $0x4] sm:$0xf]
  %v29 = vld [vmem:[%s0 + $0x8] sm:$0xf]
  %v30 = vld [vmem:[%s0 + $0xc] sm:$0xf]
  %v31 = vld [vmem:[%s0 + $0x10] sm:$0xf]
  %v32 = vld [vmem:[%s0 + $0x14] sm:$0xf]
  %v33 = vld [vmem:[%s0 + $0x18] sm:$0xf]
  %v34 = vld [vmem:[%s0 + $0x1c] sm:$0xf]
  %v35 = vld [vmem:[%s0 + $0x20] sm:$0xf]
  %v36 = vld [vmem:[%s0 + $0x24] sm:$0xf]
  %v37 = vld [vmem:[%s0 + $0x28] sm:$0xf]
  %v38 = vld [vmem:[%s0 + $0x2c] sm:$0xf]
  %v39 = vld [vmem:[%s0 + $0x30] sm:$0xf]
  %v40 = vld [vmem:[%s0 + $0x34] sm:$0xf]
  %v41 = vld [vmem:[%s0 + $0x38] sm:$0xf]
  %v42 = vld [vmem:[%s0 + $0x3c] sm:$0xf]
  %v43 = vld [vmem:[%s0 + $0x40] sm:$0xf]
  %v44 = vld [vmem:[%s0 + $0x44] sm:$0xf]
  %v45 = vld [vmem:[%s0 + $0x48] sm:$0xf]
  %v46 = vld [vmem:[%s0 + $0x4c] sm:$0xf]
  %v47 = vld [vmem:[%s0 + $0x50] sm:$0xf]
  %v48 = vld [vmem:[%s0 + $0x54] sm:$0xf]
  %v49 = vld [vmem:[%s0 + $0x58] sm:$0xf]
  %v50 = vld [vmem:[%s0 + $0x5c] sm:$0xf]
  %v51 = vld [vmem:[%s0 + $0x60] sm:$0xf]
  %v52 = vld [vmem:[%s0 + $0x64] sm:$0xf]
  %v53 = vld [vmem:[%s0 + $0x68] sm:$0xf]
  %v54 = vld [vmem:[%s0 + $0x6c] sm:$0xf]
  %v55 = vld [vmem:[%s0 + $0x70] sm:$0xf]
  %v56 = vld [vmem:[%s0 + $0x74] sm:$0xf]
  %v57 = vld [vmem:[%s0 + $0x78] sm:$0xf]
  %v58 = vld [vmem:[%s0 + $0x7c] sm:$0xf]
  %v59 = vld [vmem:[%s0 + $0x80] sm:$0xf]
  %v60 = vld [vmem:[%s0 + $0x84] sm:$0xf]
  %v61 = vld [vmem:[%s0 + $0x88] sm:$0xf]
  %v62 = vld [vmem:[%s0 + $0x8c] sm:$0xf]
  %v63 = vld [vmem:[%s0 + $0x90] sm:$0xf]
  %v64 = vld [vmem:[%s0 + $0x94] sm:$0xf]
  %v65 = vld [vmem:[%s0 + $0x98] sm:$0xf]
  %v66 = vld [vmem:[%s0 + $0x9c] sm:$0xf]
  %v67 = vld [vmem:[%s0 + $0xa0] sm:$0xf]
  %v68 = vld [vmem:[%s0 + $0xa4] sm:$0xf]
  %v69 = vld [vmem:[%s0 + $0xa8] sm:$0xf]
  %v70 = vld [vmem:[%s0 + $0xac] sm:$0xf]
  %v71 = vld [vmem:[%s0 + $0xb0] sm:$0xf]
  %v72 = vld [vmem:[%s0 + $0xb4] sm:$0xf]
  %v73 = vld [vmem:[%s0 + $0xb8] sm:$0xf]
  %v74 = vld [vmem:[%s0 + $0xbc] sm:$0xf]
  %v75 = vld [vmem:[%s0 + $0xc0] sm:$0xf]
  %v76 = vld [vmem:[%s0 + $0xc4] sm:$0xf]
  %v77 = vld [vmem:[%s0 + $0xc8] sm:$0xf]
  %v78 = vld [vmem:[%s0 + $0xcc] sm:$0xf]
  %v79 = vld [vmem:[%s0 + $0xd0] sm:$0xf]
  %v80 = vld [vmem:[%s0 + $0xd4] sm:$0xf]
  %v81 = vld [vmem:[%s0 + $0xd8] sm:$0xf]
  %v82 = vld [vmem:[%s0 + $0xdc] sm:$0xf]
  %v83 = vld [vmem:[%s0 + $0xe0] sm:$0xf]
  %v84 = vld [vmem:[%s0 + $0xe4] sm:$0xf]
  %v85 = vld [vmem:[%s0 + $0xe8] sm:$0xf]
  %v86 = vld [vmem:[%s0 + $0xec] sm:$0xf]
  %v87 = vld [vmem:[%s0 + $0xf0] sm:$0xf]
  %v88 = vld [vmem:[%s0 + $0xf4] sm:$0xf]
  %v89 = vld [vmem:[%s0 + $0xf8] sm:$0xf]
  %v90 = vld [vmem:[%s0 + $0xfc] sm:$0xf]
  %v91 = vld [vmem:[%s1] sm:$0xf]
  %v92 = vld [vmem:[%s1 + $0x4] sm:$0xf]
  %v93 = vld [vmem:[%s1 + $0x8] sm:$0xf]
  %v94 = vld [vmem:[%s1 + $0xc] sm:$0xf]
  %v95 = vld [vmem:[%s1 + $0x10] sm:$0xf]
  %v96 = vld [vmem:[%s1 + $0x14] sm:$0xf]
  %v97 = vld [vmem:[%s1 + $0x18] sm:$0xf]
  %v98 = vld [vmem:[%s1 + $0x1c] sm:$0xf]
  %v99 = vld [vmem:[%s1 + $0x20] sm:$0xf]
  %v100 = vld [vmem:[%s1 + $0x24] sm:$0xf]
  %v101 = vld [vmem:[%s1 + $0x28] sm:$0xf]
  %v102 = vld [vmem:[%s1 + $0x2c] sm:$0xf]
  %v103 = vld [vmem:[%s1 + $0x30] sm:$0xf]
  %v104 = vld [vmem:[%s1 + $0x34] sm:$0xf]
  %v105 = vld [vmem:[%s1 + $0x38] sm:$0xf]
  %v106 = vld [vmem:[%s1 + $0x3c] sm:$0xf]
  %v107 = vld [vmem:[%s2] sm:$0x1]
  %v109 = vlaneseq
  %v110 = vshrl.u32 %v109, 7
  %v111 = vsub.s32 0, %v110
  %v112 = vrot.slane %v107, %v111
  %v178 = vunpack.c.l.b16 %v27
  %v179 = vunpack.c.l.b16 %v28
  %v180 = vunpack.c.l.b16 %v29
  %v181 = vunpack.c.l.b16 %v30
  %v182 = vunpack.c.l.b16 %v31
  %v183 = vunpack.c.l.b16 %v32
  %v184 = vunpack.c.l.b16 %v33
  %v185 = vunpack.c.l.b16 %v34
  %v186 = vunpack.c.l.b16 %v35
  %v187 = vunpack.c.l.b16 %v36
  %v188 = vunpack.c.l.b16 %v37
  %v189 = vunpack.c.l.b16 %v38
  %v190 = vunpack.c.l.b16 %v39
  %v191 = vunpack.c.l.b16 %v40
  %v192 = vunpack.c.l.b16 %v41
  %v193 = vunpack.c.l.b16 %v42
  %v194 = vunpack.c.l.b16 %v43
  %v195 = vunpack.c.l.b16 %v44
  %v196 = vunpack.c.l.b16 %v45
  %v197 = vunpack.c.l.b16 %v46
  %v198 = vunpack.c.l.b16 %v47
  %v199 = vunpack.c.l.b16 %v48
  %v200 = vunpack.c.l.b16 %v49
  %v201 = vunpack.c.l.b16 %v50
  %v202 = vunpack.c.l.b16 %v51
  %v203 = vunpack.c.l.b16 %v52
  %v204 = vunpack.c.l.b16 %v53
  %v205 = vunpack.c.l.b16 %v54
  %v206 = vunpack.c.l.b16 %v55
  %v207 = vunpack.c.l.b16 %v56
  %v208 = vunpack.c.l.b16 %v57
  %v209 = vunpack.c.l.b16 %v58
  %v210 = vunpack.c.l.b16 %v59
  %v211 = vunpack.c.l.b16 %v60
  %v212 = vunpack.c.l.b16 %v61
  %v213 = vunpack.c.l.b16 %v62
  %v214 = vunpack.c.l.b16 %v63
  %v215 = vunpack.c.l.b16 %v64
  %v216 = vunpack.c.l.b16 %v65
  %v217 = vunpack.c.l.b16 %v66
  %v218 = vunpack.c.l.b16 %v67
  %v219 = vunpack.c.l.b16 %v68
  %v220 = vunpack.c.l.b16 %v69
  %v221 = vunpack.c.l.b16 %v70
  %v222 = vunpack.c.l.b16 %v71
  %v223 = vunpack.c.l.b16 %v72
  %v224 = vunpack.c.l.b16 %v73
  %v225 = vunpack.c.l.b16 %v74
  %v226 = vunpack.c.l.b16 %v75
  %v227 = vunpack.c.l.b16 %v76
  %v228 = vunpack.c.l.b16 %v77
  %v229 = vunpack.c.l.b16 %v78
  %v230 = vunpack.c.l.b16 %v79
  %v231 = vunpack.c.l.b16 %v80
  %v232 = vunpack.c.l.b16 %v81
  %v233 = vunpack.c.l.b16 %v82
  %v234 = vunpack.c.l.b16 %v83
  %v235 = vunpack.c.l.b16 %v84
  %v236 = vunpack.c.l.b16 %v85
  %v237 = vunpack.c.l.b16 %v86
  %v238 = vunpack.c.l.b16 %v87
  %v239 = vunpack.c.l.b16 %v88
  %v240 = vunpack.c.l.b16 %v89
  %v241 = vunpack.c.l.b16 %v90
  %v242 = vpack.c.b16 %v179, %v178
  %v243 = vpack.c.b16 %v181, %v180
  %v244 = vpack.c.b16 %v183, %v182
  %v245 = vpack.c.b16 %v185, %v184
  %v246 = vpack.c.b16 %v187, %v186
  %v247 = vpack.c.b16 %v189, %v188
  %v248 = vpack.c.b16 %v191, %v190
  %v249 = vpack.c.b16 %v193, %v192
  %v250 = vpack.c.b16 %v195, %v194
  %v251 = vpack.c.b16 %v197, %v196
  %v252 = vpack.c.b16 %v199, %v198
  %v253 = vpack.c.b16 %v201, %v200
  %v254 = vpack.c.b16 %v203, %v202
  %v255 = vpack.c.b16 %v205, %v204
  %v256 = vpack.c.b16 %v207, %v206
  %v257 = vpack.c.b16 %v209, %v208
  %v258 = vpack.c.b16 %v211, %v210
  %v259 = vpack.c.b16 %v213, %v212
  %v260 = vpack.c.b16 %v215, %v214
  %v261 = vpack.c.b16 %v217, %v216
  %v262 = vpack.c.b16 %v219, %v218
  %v263 = vpack.c.b16 %v221, %v220
  %v264 = vpack.c.b16 %v223, %v222
  %v265 = vpack.c.b16 %v225, %v224
  %v266 = vpack.c.b16 %v227, %v226
  %v267 = vpack.c.b16 %v229, %v228
  %v268 = vpack.c.b16 %v231, %v230
  %v269 = vpack.c.b16 %v233, %v232
  %v270 = vpack.c.b16 %v235, %v234
  %v271 = vpack.c.b16 %v237, %v236
  %v272 = vpack.c.b16 %v239, %v238
  %v273 = vpack.c.b16 %v241, %v240
  %v322 = vunpack.c.l.b16 %v91
  %v323 = vunpack.c.l.b16 %v92
  %v324 = vunpack.c.l.b16 %v93
  %v325 = vunpack.c.l.b16 %v94
  %v326 = vunpack.c.l.b16 %v95
  %v327 = vunpack.c.l.b16 %v96
  %v328 = vunpack.c.l.b16 %v97
  %v329 = vunpack.c.l.b16 %v98
  %v330 = vunpack.c.l.b16 %v99
  %v331 = vunpack.c.l.b16 %v100
  %v332 = vunpack.c.l.b16 %v101
  %v333 = vunpack.c.l.b16 %v102
  %v334 = vunpack.c.l.b16 %v103
  %v335 = vunpack.c.l.b16 %v104
  %v336 = vunpack.c.l.b16 %v105
  %v337 = vunpack.c.l.b16 %v106
  %v338 = vpack.c.b16 %v323, %v322
  %v339 = vpack.c.b16 %v325, %v324
  %v340 = vpack.c.b16 %v327, %v326
  %v341 = vpack.c.b16 %v329, %v328
  %v342 = vpack.c.b16 %v331, %v330
  %v343 = vpack.c.b16 %v333, %v332
  %v344 = vpack.c.b16 %v335, %v334
  %v345 = vpack.c.b16 %v337, %v336
  %354 = vmatprep.subr.bf16.mxu0 0
  %355 = vmatpush1.bf16.msra.mxu0 %v345
  %356 = vmatprep.subr.bf16.mxu0 0
  %357 = vmatpush1.bf16.msra.mxu0 %v344
  %358 = vmatprep.subr.bf16.mxu0 0
  %359 = vmatpush1.bf16.msra.mxu0 %v343
  %360 = vmatprep.subr.bf16.mxu0 0
  %361 = vmatpush1.bf16.msra.mxu0 %v342
  %362 = vmatprep.subr.bf16.mxu0 0
  %363 = vmatpush1.bf16.msra.mxu0 %v341
  %364 = vmatprep.subr.bf16.mxu0 0
  %365 = vmatpush1.bf16.msra.mxu0 %v340
  %366 = vmatprep.subr.bf16.mxu0 0
  %367 = vmatpush1.bf16.msra.mxu0 %v339
  %368 = vmatprep.subr.bf16.mxu0 0
  %369 = vmatpush1.bf16.msra.mxu0 %v338
  %370 = vmatprep.subr.bf16.mxu0 0
  %371 = vmatpush2.bf16.msra.mxu0 0
  %372 = vmatprep.subr.bf16.mxu0 0
  %373 = vmatpush2.bf16.msra.mxu0 0
  %374 = vmatprep.subr.bf16.mxu0 0
  %375 = vmatpush2.bf16.msra.mxu0 0
  %376 = vmatprep.subr.bf16.mxu0 0
  %377 = vmatpush2.bf16.msra.mxu0 0
  %378 = vmatprep.subr.bf16.mxu0 0
  %379 = vmatpush2.bf16.msra.mxu0 0
  %380 = vmatprep.subr.bf16.mxu0 0
  %381 = vmatpush2.bf16.msra.mxu0 0
  %382 = vmatprep.subr.bf16.mxu0 0
  %383 = vmatpush2.bf16.msra.mxu0 0
  %384 = vmatprep.subr.bf16.mxu0 0
  %385 = vmatpush2.bf16.msra.mxu0 0
  %386 = vmatprep.mubr.bf16.mxu0 0
  %387 = vmatmul.mubr.bf16.gmra.mxu0 %v242
  %v388 = vpop.f32.mrf.mxu0
  %v389 = vadd.f32 %v112, %v388
  %v390 = vpop.f32.mrf.mxu0
  %v391 = vpop.f32.mrf.mxu0
  %v392 = vadd.f32 %v112, %v391
  %v393 = vpop.f32.mrf.mxu0
  %394 = vmatprep.mubr.bf16.mxu0 0
  %395 = vmatmul.mubr.bf16.gmra.mxu0 %v243
  %v396 = vpop.f32.mrf.mxu0
  %v397 = vadd.f32 %v112, %v396
  %v398 = vpop.f32.mrf.mxu0
  %v399 = vpop.f32.mrf.mxu0
  %v400 = vadd.f32 %v112, %v399
  %v401 = vpop.f32.mrf.mxu0
  %402 = vmatprep.mubr.bf16.mxu0 0
  %403 = vmatmul.mubr.bf16.gmra.mxu0 %v244
  %v404 = vpop.f32.mrf.mxu0
  %v405 = vadd.f32 %v112, %v404
  %v406 = vpop.f32.mrf.mxu0
  %v407 = vpop.f32.mrf.mxu0
  %v408 = vadd.f32 %v112, %v407
  %v409 = vpop.f32.mrf.mxu0
  %410 = vmatprep.mubr.bf16.mxu0 0
  %411 = vmatmul.mubr.bf16.gmra.mxu0 %v245
  %v412 = vpop.f32.mrf.mxu0
  %v413 = vadd.f32 %v112, %v412
  %v414 = vpop.f32.mrf.mxu0
  %v415 = vpop.f32.mrf.mxu0
  %v416 = vadd.f32 %v112, %v415
  %v417 = vpop.f32.mrf.mxu0
  %418 = vmatprep.mubr.bf16.mxu0 0
  %419 = vmatmul.mubr.bf16.gmra.mxu0 %v246
  %v420 = vpop.f32.mrf.mxu0
  %v421 = vadd.f32 %v112, %v420
  %v422 = vpop.f32.mrf.mxu0
  %v423 = vpop.f32.mrf.mxu0
  %v424 = vadd.f32 %v112, %v423
  %v425 = vpop.f32.mrf.mxu0
  %426 = vmatprep.mubr.bf16.mxu0 0
  %427 = vmatmul.mubr.bf16.gmra.mxu0 %v247
  %v428 = vpop.f32.mrf.mxu0
  %v429 = vadd.f32 %v112, %v428
  %v430 = vpop.f32.mrf.mxu0
  %v431 = vpop.f32.mrf.mxu0
  %v432 = vadd.f32 %v112, %v431
  %v433 = vpop.f32.mrf.mxu0
  %434 = vmatprep.mubr.bf16.mxu0 0
  %435 = vmatmul.mubr.bf16.gmra.mxu0 %v248
  %v436 = vpop.f32.mrf.mxu0
  %v437 = vadd.f32 %v112, %v436
  %v438 = vpop.f32.mrf.mxu0
  %v439 = vpop.f32.mrf.mxu0
  %v440 = vadd.f32 %v112, %v439
  %v441 = vpop.f32.mrf.mxu0
  %442 = vmatprep.mubr.bf16.mxu0 0
  %443 = vmatmul.mubr.bf16.gmra.mxu0 %v249
  %v444 = vpop.f32.mrf.mxu0
  %v445 = vadd.f32 %v112, %v444
  %v446 = vpop.f32.mrf.mxu0
  %v447 = vpop.f32.mrf.mxu0
  %v448 = vadd.f32 %v112, %v447
  %v449 = vpop.f32.mrf.mxu0
  %450 = vmatprep.mubr.bf16.mxu0 0
  %451 = vmatmul.mubr.bf16.gmra.mxu0 %v250
  %v452 = vpop.f32.mrf.mxu0
  %v453 = vadd.f32 %v112, %v452
  %v454 = vpop.f32.mrf.mxu0
  %v455 = vpop.f32.mrf.mxu0
  %v456 = vadd.f32 %v112, %v455
  %v457 = vpop.f32.mrf.mxu0
  %458 = vmatprep.mubr.bf16.mxu0 0
  %459 = vmatmul.mubr.bf16.gmra.mxu0 %v251
  %v460 = vpop.f32.mrf.mxu0
  %v461 = vadd.f32 %v112, %v460
  %v462 = vpop.f32.mrf.mxu0
  %v463 = vpop.f32.mrf.mxu0
  %v464 = vadd.f32 %v112, %v463
  %v465 = vpop.f32.mrf.mxu0
  %466 = vmatprep.mubr.bf16.mxu0 0
  %467 = vmatmul.mubr.bf16.gmra.mxu0 %v252
  %v468 = vpop.f32.mrf.mxu0
  %v469 = vadd.f32 %v112, %v468
  %v470 = vpop.f32.mrf.mxu0
  %v471 = vpop.f32.mrf.mxu0
  %v472 = vadd.f32 %v112, %v471
  %v473 = vpop.f32.mrf.mxu0
  %474 = vmatprep.mubr.bf16.mxu0 0
  %475 = vmatmul.mubr.bf16.gmra.mxu0 %v253
  %v476 = vpop.f32.mrf.mxu0
  %v477 = vadd.f32 %v112, %v476
  %v478 = vpop.f32.mrf.mxu0
  %v479 = vpop.f32.mrf.mxu0
  %v480 = vadd.f32 %v112, %v479
  %v481 = vpop.f32.mrf.mxu0
  %482 = vmatprep.mubr.bf16.mxu0 0
  %483 = vmatmul.mubr.bf16.gmra.mxu0 %v254
  %v484 = vpop.f32.mrf.mxu0
  %v485 = vadd.f32 %v112, %v484
  %v486 = vpop.f32.mrf.mxu0
  %v487 = vpop.f32.mrf.mxu0
  %v488 = vadd.f32 %v112, %v487
  %v489 = vpop.f32.mrf.mxu0
  %490 = vmatprep.mubr.bf16.mxu0 0
  %491 = vmatmul.mubr.bf16.gmra.mxu0 %v255
  %v492 = vpop.f32.mrf.mxu0
  %v493 = vadd.f32 %v112, %v492
  %v494 = vpop.f32.mrf.mxu0
  %v495 = vpop.f32.mrf.mxu0
  %v496 = vadd.f32 %v112, %v495
  %v497 = vpop.f32.mrf.mxu0
  %498 = vmatprep.mubr.bf16.mxu0 0
  %499 = vmatmul.mubr.bf16.gmra.mxu0 %v256
  %v500 = vpop.f32.mrf.mxu0
  %v501 = vadd.f32 %v112, %v500
  %v502 = vpop.f32.mrf.mxu0
  %v503 = vpop.f32.mrf.mxu0
  %v504 = vadd.f32 %v112, %v503
  %v505 = vpop.f32.mrf.mxu0
  %506 = vmatprep.mubr.bf16.mxu0 0
  %507 = vmatmul.mubr.bf16.gmra.mxu0 %v257
  %v508 = vpop.f32.mrf.mxu0
  %v509 = vadd.f32 %v112, %v508
  %v510 = vpop.f32.mrf.mxu0
  %v511 = vpop.f32.mrf.mxu0
  %v512 = vadd.f32 %v112, %v511
  %v513 = vpop.f32.mrf.mxu0
  %514 = vmatprep.mubr.bf16.mxu0 0
  %515 = vmatmul.mubr.bf16.gmra.mxu0 %v258
  %v516 = vpop.f32.mrf.mxu0
  %v517 = vadd.f32 %v112, %v516
  %v518 = vpop.f32.mrf.mxu0
  %v519 = vpop.f32.mrf.mxu0
  %v520 = vadd.f32 %v112, %v519
  %v521 = vpop.f32.mrf.mxu0
  %522 = vmatprep.mubr.bf16.mxu0 0
  %523 = vmatmul.mubr.bf16.gmra.mxu0 %v259
  %v524 = vpop.f32.mrf.mxu0
  %v525 = vadd.f32 %v112, %v524
  %v526 = vpop.f32.mrf.mxu0
  %v527 = vpop.f32.mrf.mxu0
  %v528 = vadd.f32 %v112, %v527
  %v529 = vpop.f32.mrf.mxu0
  %530 = vmatprep.mubr.bf16.mxu0 0
  %531 = vmatmul.mubr.bf16.gmra.mxu0 %v260
  %v532 = vpop.f32.mrf.mxu0
  %v533 = vadd.f32 %v112, %v532
  %v534 = vpop.f32.mrf.mxu0
  %v535 = vpop.f32.mrf.mxu0
  %v536 = vadd.f32 %v112, %v535
  %v537 = vpop.f32.mrf.mxu0
  %538 = vmatprep.mubr.bf16.mxu0 0
  %539 = vmatmul.mubr.bf16.gmra.mxu0 %v261
  %v540 = vpop.f32.mrf.mxu0
  %v541 = vadd.f32 %v112, %v540
  %v542 = vpop.f32.mrf.mxu0
  %v543 = vpop.f32.mrf.mxu0
  %v544 = vadd.f32 %v112, %v543
  %v545 = vpop.f32.mrf.mxu0
  %546 = vmatprep.mubr.bf16.mxu0 0
  %547 = vmatmul.mubr.bf16.gmra.mxu0 %v262
  %v548 = vpop.f32.mrf.mxu0
  %v549 = vadd.f32 %v112, %v548
  %v550 = vpop.f32.mrf.mxu0
  %v551 = vpop.f32.mrf.mxu0
  %v552 = vadd.f32 %v112, %v551
  %v553 = vpop.f32.mrf.mxu0
  %554 = vmatprep.mubr.bf16.mxu0 0
  %555 = vmatmul.mubr.bf16.gmra.mxu0 %v263
  %v556 = vpop.f32.mrf.mxu0
  %v557 = vadd.f32 %v112, %v556
  %v558 = vpop.f32.mrf.mxu0
  %v559 = vpop.f32.mrf.mxu0
  %v560 = vadd.f32 %v112, %v559
  %v561 = vpop.f32.mrf.mxu0
  %562 = vmatprep.mubr.bf16.mxu0 0
  %563 = vmatmul.mubr.bf16.gmra.mxu0 %v264
  %v564 = vpop.f32.mrf.mxu0
  %v565 = vadd.f32 %v112, %v564
  %v566 = vpop.f32.mrf.mxu0
  %v567 = vpop.f32.mrf.mxu0
  %v568 = vadd.f32 %v112, %v567
  %v569 = vpop.f32.mrf.mxu0
  %570 = vmatprep.mubr.bf16.mxu0 0
  %571 = vmatmul.mubr.bf16.gmra.mxu0 %v265
  %v572 = vpop.f32.mrf.mxu0
  %v573 = vadd.f32 %v112, %v572
  %v574 = vpop.f32.mrf.mxu0
  %v575 = vpop.f32.mrf.mxu0
  %v576 = vadd.f32 %v112, %v575
  %v577 = vpop.f32.mrf.mxu0
  %578 = vmatprep.mubr.bf16.mxu0 0
  %579 = vmatmul.mubr.bf16.gmra.mxu0 %v266
  %v580 = vpop.f32.mrf.mxu0
  %v581 = vadd.f32 %v112, %v580
  %v582 = vpop.f32.mrf.mxu0
  %v583 = vpop.f32.mrf.mxu0
  %v584 = vadd.f32 %v112, %v583
  %v585 = vpop.f32.mrf.mxu0
  %586 = vmatprep.mubr.bf16.mxu0 0
  %587 = vmatmul.mubr.bf16.gmra.mxu0 %v267
  %v588 = vpop.f32.mrf.mxu0
  %v589 = vadd.f32 %v112, %v588
  %v590 = vpop.f32.mrf.mxu0
  %v591 = vpop.f32.mrf.mxu0
  %v592 = vadd.f32 %v112, %v591
  %v593 = vpop.f32.mrf.mxu0
  %594 = vmatprep.mubr.bf16.mxu0 0
  %595 = vmatmul.mubr.bf16.gmra.mxu0 %v268
  %v596 = vpop.f32.mrf.mxu0
  %v597 = vadd.f32 %v112, %v596
  %v598 = vpop.f32.mrf.mxu0
  %v599 = vpop.f32.mrf.mxu0
  %v600 = vadd.f32 %v112, %v599
  %v601 = vpop.f32.mrf.mxu0
  %602 = vmatprep.mubr.bf16.mxu0 0
  %603 = vmatmul.mubr.bf16.gmra.mxu0 %v269
  %v604 = vpop.f32.mrf.mxu0
  %v605 = vadd.f32 %v112, %v604
  %v606 = vpop.f32.mrf.mxu0
  %v607 = vpop.f32.mrf.mxu0
  %v608 = vadd.f32 %v112, %v607
  %v609 = vpop.f32.mrf.mxu0
  %610 = vmatprep.mubr.bf16.mxu0 0
  %611 = vmatmul.mubr.bf16.gmra.mxu0 %v270
  %v612 = vpop.f32.mrf.mxu0
  %v613 = vadd.f32 %v112, %v612
  %v614 = vpop.f32.mrf.mxu0
  %v615 = vpop.f32.mrf.mxu0
  %v616 = vadd.f32 %v112, %v615
  %v617 = vpop.f32.mrf.mxu0
  %618 = vmatprep.mubr.bf16.mxu0 0
  %619 = vmatmul.mubr.bf16.gmra.mxu0 %v271
  %v620 = vpop.f32.mrf.mxu0
  %v621 = vadd.f32 %v112, %v620
  %v622 = vpop.f32.mrf.mxu0
  %v623 = vpop.f32.mrf.mxu0
  %v624 = vadd.f32 %v112, %v623
  %v625 = vpop.f32.mrf.mxu0
  %626 = vmatprep.mubr.bf16.mxu0 0
  %627 = vmatmul.mubr.bf16.gmra.mxu0 %v272
  %v628 = vpop.f32.mrf.mxu0
  %v629 = vadd.f32 %v112, %v628
  %v630 = vpop.f32.mrf.mxu0
  %v631 = vpop.f32.mrf.mxu0
  %v632 = vadd.f32 %v112, %v631
  %v633 = vpop.f32.mrf.mxu0
  %634 = vmatprep.mubr.bf16.mxu0 0
  %635 = vmatmul.mubr.bf16.gmra.mxu0 %v273
  %v636 = vpop.f32.mrf.mxu0
  %v637 = vadd.f32 %v112, %v636
  %v638 = vpop.f32.mrf.mxu0
  %v639 = vpop.f32.mrf.mxu0
  %v640 = vadd.f32 %v112, %v639
  %v641 = vpop.f32.mrf.mxu0
  %642 = vdwg.mxu0
  %v643 = vld [vmem:[%s3] sm:$0xff]
  %v644 = vld [vmem:[%s3 + $0x8] sm:$0xff]
  %v645 = vld [vmem:[%s3 + $0x10] sm:$0xff]
  %v646 = vld [vmem:[%s3 + $0x18] sm:$0xff]
  %v647 = vld [vmem:[%s3 + $0x20] sm:$0xff]
  %v648 = vld [vmem:[%s3 + $0x28] sm:$0xff]
  %v649 = vld [vmem:[%s3 + $0x30] sm:$0xff]
  %v650 = vld [vmem:[%s3 + $0x38] sm:$0xff]
  %v651 = vld [vmem:[%s3 + $0x40] sm:$0xff]
  %v652 = vld [vmem:[%s3 + $0x48] sm:$0xff]
  %v653 = vld [vmem:[%s3 + $0x50] sm:$0xff]
  %v654 = vld [vmem:[%s3 + $0x58] sm:$0xff]
  %v655 = vld [vmem:[%s3 + $0x60] sm:$0xff]
  %v656 = vld [vmem:[%s3 + $0x68] sm:$0xff]
  %v657 = vld [vmem:[%s3 + $0x70] sm:$0xff]
  %v658 = vld [vmem:[%s3 + $0x78] sm:$0xff]
  %v659 = vld [vmem:[%s3 + $0x80] sm:$0xff]
  %v660 = vld [vmem:[%s3 + $0x88] sm:$0xff]
  %v661 = vld [vmem:[%s3 + $0x90] sm:$0xff]
  %v662 = vld [vmem:[%s3 + $0x98] sm:$0xff]
  %v663 = vld [vmem:[%s3 + $0xa0] sm:$0xff]
  %v664 = vld [vmem:[%s3 + $0xa8] sm:$0xff]
  %v665 = vld [vmem:[%s3 + $0xb0] sm:$0xff]
  %v666 = vld [vmem:[%s3 + $0xb8] sm:$0xff]
  %v667 = vld [vmem:[%s3 + $0xc0] sm:$0xff]
  %v668 = vld [vmem:[%s3 + $0xc8] sm:$0xff]
  %v669 = vld [vmem:[%s3 + $0xd0] sm:$0xff]
  %v670 = vld [vmem:[%s3 + $0xd8] sm:$0xff]
  %v671 = vld [vmem:[%s3 + $0xe0] sm:$0xff]
  %v672 = vld [vmem:[%s3 + $0xe8] sm:$0xff]
  %v673 = vld [vmem:[%s3 + $0xf0] sm:$0xff]
  %v674 = vld [vmem:[%s3 + $0xf8] sm:$0xff]
  %v675 = vld [vmem:[%s3 + $0x100] sm:$0xff]
  %v676 = vld [vmem:[%s3 + $0x108] sm:$0xff]
  %v677 = vld [vmem:[%s3 + $0x110] sm:$0xff]
  %v678 = vld [vmem:[%s3 + $0x118] sm:$0xff]
  %v679 = vld [vmem:[%s3 + $0x120] sm:$0xff]
  %v680 = vld [vmem:[%s3 + $0x128] sm:$0xff]
  %v681 = vld [vmem:[%s3 + $0x130] sm:$0xff]
  %v682 = vld [vmem:[%s3 + $0x138] sm:$0xff]
  %v683 = vld [vmem:[%s3 + $0x140] sm:$0xff]
  %v684 = vld [vmem:[%s3 + $0x148] sm:$0xff]
  %v685 = vld [vmem:[%s3 + $0x150] sm:$0xff]
  %v686 = vld [vmem:[%s3 + $0x158] sm:$0xff]
  %v687 = vld [vmem:[%s3 + $0x160] sm:$0xff]
  %v688 = vld [vmem:[%s3 + $0x168] sm:$0xff]
  %v689 = vld [vmem:[%s3 + $0x170] sm:$0xff]
  %v690 = vld [vmem:[%s3 + $0x178] sm:$0xff]
  %v691 = vld [vmem:[%s3 + $0x180] sm:$0xff]
  %v692 = vld [vmem:[%s3 + $0x188] sm:$0xff]
  %v693 = vld [vmem:[%s3 + $0x190] sm:$0xff]
  %v694 = vld [vmem:[%s3 + $0x198] sm:$0xff]
  %v695 = vld [vmem:[%s3 + $0x1a0] sm:$0xff]
  %v696 = vld [vmem:[%s3 + $0x1a8] sm:$0xff]
  %v697 = vld [vmem:[%s3 + $0x1b0] sm:$0xff]
  %v698 = vld [vmem:[%s3 + $0x1b8] sm:$0xff]
  %v699 = vld [vmem:[%s3 + $0x1c0] sm:$0xff]
  %v700 = vld [vmem:[%s3 + $0x1c8] sm:$0xff]
  %v701 = vld [vmem:[%s3 + $0x1d0] sm:$0xff]
  %v702 = vld [vmem:[%s3 + $0x1d8] sm:$0xff]
  %v703 = vld [vmem:[%s3 + $0x1e0] sm:$0xff]
  %v704 = vld [vmem:[%s3 + $0x1e8] sm:$0xff]
  %v705 = vld [vmem:[%s3 + $0x1f0] sm:$0xff]
  %v706 = vld [vmem:[%s3 + $0x1f8] sm:$0xff]
  %v707 = vld [vmem:[%s4] sm:$0x1]
  %v708 = vld [vmem:[%s5] sm:$0x1]
  %v709 = vld [vmem:[%s6] sm:$0x1]
  %v710 = vxor.u32 %v389, 2147483648
  %v711 = vxor.u32 %v392, 2147483648
  %v712 = vxor.u32 %v397, 2147483648
  %v713 = vxor.u32 %v400, 2147483648
  %v714 = vxor.u32 %v405, 2147483648
  %v715 = vxor.u32 %v408, 2147483648
  %v716 = vxor.u32 %v413, 2147483648
  %v717 = vxor.u32 %v416, 2147483648
  %v718 = vxor.u32 %v421, 2147483648
  %v719 = vxor.u32 %v424, 2147483648
  %v720 = vxor.u32 %v429, 2147483648
  %v721 = vxor.u32 %v432, 2147483648
  %v722 = vxor.u32 %v437, 2147483648
  %v723 = vxor.u32 %v440, 2147483648
  %v724 = vxor.u32 %v445, 2147483648
  %v725 = vxor.u32 %v448, 2147483648
  %v726 = vxor.u32 %v453, 2147483648
  %v727 = vxor.u32 %v456, 2147483648
  %v728 = vxor.u32 %v461, 2147483648
  %v729 = vxor.u32 %v464, 2147483648
  %v730 = vxor.u32 %v469, 2147483648
  %v731 = vxor.u32 %v472, 2147483648
  %v732 = vxor.u32 %v477, 2147483648
  %v733 = vxor.u32 %v480, 2147483648
  %v734 = vxor.u32 %v485, 2147483648
  %v735 = vxor.u32 %v488, 2147483648
  %v736 = vxor.u32 %v493, 2147483648
  %v737 = vxor.u32 %v496, 2147483648
  %v738 = vxor.u32 %v501, 2147483648
  %v739 = vxor.u32 %v504, 2147483648
  %v740 = vxor.u32 %v509, 2147483648
  %v741 = vxor.u32 %v512, 2147483648
  %v742 = vxor.u32 %v517, 2147483648
  %v743 = vxor.u32 %v520, 2147483648
  %v744 = vxor.u32 %v525, 2147483648
  %v745 = vxor.u32 %v528, 2147483648
  %v746 = vxor.u32 %v533, 2147483648
  %v747 = vxor.u32 %v536, 2147483648
  %v748 = vxor.u32 %v541, 2147483648
  %v749 = vxor.u32 %v544, 2147483648
  %v750 = vxor.u32 %v549, 2147483648
  %v751 = vxor.u32 %v552, 2147483648
  %v752 = vxor.u32 %v557, 2147483648
  %v753 = vxor.u32 %v560, 2147483648
  %v754 = vxor.u32 %v565, 2147483648
  %v755 = vxor.u32 %v568, 2147483648
  %v756 = vxor.u32 %v573, 2147483648
  %v757 = vxor.u32 %v576, 2147483648
  %v758 = vxor.u32 %v581, 2147483648
  %v759 = vxor.u32 %v584, 2147483648
  %v760 = vxor.u32 %v589, 2147483648
  %v761 = vxor.u32 %v592, 2147483648
  %v762 = vxor.u32 %v597, 2147483648
  %v763 = vxor.u32 %v600, 2147483648
  %v764 = vxor.u32 %v605, 2147483648
  %v765 = vxor.u32 %v608, 2147483648
  %v766 = vxor.u32 %v613, 2147483648
  %v767 = vxor.u32 %v616, 2147483648
  %v768 = vxor.u32 %v621, 2147483648
  %v769 = vxor.u32 %v624, 2147483648
  %v770 = vxor.u32 %v629, 2147483648
  %v771 = vxor.u32 %v632, 2147483648
  %v772 = vxor.u32 %v637, 2147483648
  %v773 = vxor.u32 %v640, 2147483648
  %v774 = vmul.f32 %v710, 1.442695
  %v775 = vpow.pop %v774
  %v776 = vmul.f32 %v711, 1.442695
  %v777 = vpow.pop %v776
  %v778 = vmul.f32 %v712, 1.442695
  %v779 = vpow.pop %v778
  %v780 = vmul.f32 %v713, 1.442695
  %v781 = vpow.pop %v780
  %v782 = vmul.f32 %v714, 1.442695
  %v783 = vpow.pop %v782
  %v784 = vmul.f32 %v715, 1.442695
  %v785 = vpow.pop %v784
  %v786 = vmul.f32 %v716, 1.442695
  %v787 = vpow.pop %v786
  %v788 = vmul.f32 %v717, 1.442695
  %v789 = vpow.pop %v788
  %v790 = vmul.f32 %v718, 1.442695
  %v791 = vpow.pop %v790
  %v792 = vmul.f32 %v719, 1.442695
  %v793 = vpow.pop %v792
  %v794 = vmul.f32 %v720, 1.442695
  %v795 = vpow.pop %v794
  %v796 = vmul.f32 %v721, 1.442695
  %v797 = vpow.pop %v796
  %v798 = vmul.f32 %v722, 1.442695
  %v799 = vpow.pop %v798
  %v800 = vmul.f32 %v723, 1.442695
  %v801 = vpow.pop %v800
  %v802 = vmul.f32 %v724, 1.442695
  %v803 = vpow.pop %v802
  %v804 = vmul.f32 %v725, 1.442695
  %v805 = vpow.pop %v804
  %v806 = vmul.f32 %v726, 1.442695
  %v807 = vpow.pop %v806
  %v808 = vmul.f32 %v727, 1.442695
  %v809 = vpow.pop %v808
  %v810 = vmul.f32 %v728, 1.442695
  %v811 = vpow.pop %v810
  %v812 = vmul.f32 %v729, 1.442695
  %v813 = vpow.pop %v812
  %v814 = vmul.f32 %v730, 1.442695
  %v815 = vpow.pop %v814
  %v816 = vmul.f32 %v731, 1.442695
  %v817 = vpow.pop %v816
  %v818 = vmul.f32 %v732, 1.442695
  %v819 = vpow.pop %v818
  %v820 = vmul.f32 %v733, 1.442695
  %v821 = vpow.pop %v820
  %v822 = vmul.f32 %v734, 1.442695
  %v823 = vpow.pop %v822
  %v824 = vmul.f32 %v735, 1.442695
  %v825 = vpow.pop %v824
  %v826 = vmul.f32 %v736, 1.442695
  %v827 = vpow.pop %v826
  %v828 = vmul.f32 %v737, 1.442695
  %v829 = vpow.pop %v828
  %v830 = vmul.f32 %v738, 1.442695
  %v831 = vpow.pop %v830
  %v832 = vmul.f32 %v739, 1.442695
  %v833 = vpow.pop %v832
  %v834 = vmul.f32 %v740, 1.442695
  %v835 = vpow.pop %v834
  %v836 = vmul.f32 %v741, 1.442695
  %v837 = vpow.pop %v836
  %v838 = vmul.f32 %v742, 1.442695
  %v839 = vpow.pop %v838
  %v840 = vmul.f32 %v743, 1.442695
  %v841 = vpow.pop %v840
  %v842 = vmul.f32 %v744, 1.442695
  %v843 = vpow.pop %v842
  %v844 = vmul.f32 %v745, 1.442695
  %v845 = vpow.pop %v844
  %v846 = vmul.f32 %v746, 1.442695
  %v847 = vpow.pop %v846
  %v848 = vmul.f32 %v747, 1.442695
  %v849 = vpow.pop %v848
  %v850 = vmul.f32 %v748, 1.442695
  %v851 = vpow.pop %v850
  %v852 = vmul.f32 %v749, 1.442695
  %v853 = vpow.pop %v852
  %v854 = vmul.f32 %v750, 1.442695
  %v855 = vpow.pop %v854
  %v856 = vmul.f32 %v751, 1.442695
  %v857 = vpow.pop %v856
  %v858 = vmul.f32 %v752, 1.442695
  %v859 = vpow.pop %v858
  %v860 = vmul.f32 %v753, 1.442695
  %v861 = vpow.pop %v860
  %v862 = vmul.f32 %v754, 1.442695
  %v863 = vpow.pop %v862
  %v864 = vmul.f32 %v755, 1.442695
  %v865 = vpow.pop %v864
  %v866 = vmul.f32 %v756, 1.442695
  %v867 = vpow.pop %v866
  %v868 = vmul.f32 %v757, 1.442695
  %v869 = vpow.pop %v868
  %v870 = vmul.f32 %v758, 1.442695
  %v871 = vpow.pop %v870
  %v872 = vmul.f32 %v759, 1.442695
  %v873 = vpow.pop %v872
  %v874 = vmul.f32 %v760, 1.442695
  %v875 = vpow.pop %v874
  %v876 = vmul.f32 %v761, 1.442695
  %v877 = vpow.pop %v876
  %v878 = vmul.f32 %v762, 1.442695
  %v879 = vpow.pop %v878
  %v880 = vmul.f32 %v763, 1.442695
  %v881 = vpow.pop %v880
  %v882 = vmul.f32 %v764, 1.442695
  %v883 = vpow.pop %v882
  %v884 = vmul.f32 %v765, 1.442695
  %v885 = vpow.pop %v884
  %v886 = vmul.f32 %v766, 1.442695
  %v887 = vpow.pop %v886
  %v888 = vmul.f32 %v767, 1.442695
  %v889 = vpow.pop %v888
  %v890 = vmul.f32 %v768, 1.442695
  %v891 = vpow.pop %v890
  %v892 = vmul.f32 %v769, 1.442695
  %v893 = vpow.pop %v892
  %v894 = vmul.f32 %v770, 1.442695
  %v895 = vpow.pop %v894
  %v896 = vmul.f32 %v771, 1.442695
  %v897 = vpow.pop %v896
  %v898 = vmul.f32 %v772, 1.442695
  %v899 = vpow.pop %v898
  %v900 = vmul.f32 %v773, 1.442695
  %v901 = vpow.pop %v900
  %v902 = vadd.f32 %v775, 1.0
  %v903 = vadd.f32 %v777, 1.0
  %v904 = vadd.f32 %v779, 1.0
  %v905 = vadd.f32 %v781, 1.0
  %v906 = vadd.f32 %v783, 1.0
  %v907 = vadd.f32 %v785, 1.0
  %v908 = vadd.f32 %v787, 1.0
  %v909 = vadd.f32 %v789, 1.0
  %v910 = vadd.f32 %v791, 1.0
  %v911 = vadd.f32 %v793, 1.0
  %v912 = vadd.f32 %v795, 1.0
  %v913 = vadd.f32 %v797, 1.0
  %v914 = vadd.f32 %v799, 1.0
  %v915 = vadd.f32 %v801, 1.0
  %v916 = vadd.f32 %v803, 1.0
  %v917 = vadd.f32 %v805, 1.0
  %v918 = vadd.f32 %v807, 1.0
  %v919 = vadd.f32 %v809, 1.0
  %v920 = vadd.f32 %v811, 1.0
  %v921 = vadd.f32 %v813, 1.0
  %v922 = vadd.f32 %v815, 1.0
  %v923 = vadd.f32 %v817, 1.0
  %v924 = vadd.f32 %v819, 1.0
  %v925 = vadd.f32 %v821, 1.0
  %v926 = vadd.f32 %v823, 1.0
  %v927 = vadd.f32 %v825, 1.0
  %v928 = vadd.f32 %v827, 1.0
  %v929 = vadd.f32 %v829, 1.0
  %v930 = vadd.f32 %v831, 1.0
  %v931 = vadd.f32 %v833, 1.0
  %v932 = vadd.f32 %v835, 1.0
  %v933 = vadd.f32 %v837, 1.0
  %v934 = vadd.f32 %v839, 1.0
  %v935 = vadd.f32 %v841, 1.0
  %v936 = vadd.f32 %v843, 1.0
  %v937 = vadd.f32 %v845, 1.0
  %v938 = vadd.f32 %v847, 1.0
  %v939 = vadd.f32 %v849, 1.0
  %v940 = vadd.f32 %v851, 1.0
  %v941 = vadd.f32 %v853, 1.0
  %v942 = vadd.f32 %v855, 1.0
  %v943 = vadd.f32 %v857, 1.0
  %v944 = vadd.f32 %v859, 1.0
  %v945 = vadd.f32 %v861, 1.0
  %v946 = vadd.f32 %v863, 1.0
  %v947 = vadd.f32 %v865, 1.0
  %v948 = vadd.f32 %v867, 1.0
  %v949 = vadd.f32 %v869, 1.0
  %v950 = vadd.f32 %v871, 1.0
  %v951 = vadd.f32 %v873, 1.0
  %v952 = vadd.f32 %v875, 1.0
  %v953 = vadd.f32 %v877, 1.0
  %v954 = vadd.f32 %v879, 1.0
  %v955 = vadd.f32 %v881, 1.0
  %v956 = vadd.f32 %v883, 1.0
  %v957 = vadd.f32 %v885, 1.0
  %v958 = vadd.f32 %v887, 1.0
  %v959 = vadd.f32 %v889, 1.0
  %v960 = vadd.f32 %v891, 1.0
  %v961 = vadd.f32 %v893, 1.0
  %v962 = vadd.f32 %v895, 1.0
  %v963 = vadd.f32 %v897, 1.0
  %v964 = vadd.f32 %v899, 1.0
  %v965 = vadd.f32 %v901, 1.0
  %v966 = vrcp.pop %v902
  %v967 = vmul.f32 1.0, %v966
  %v968 = vrcp.pop %v903
  %v969 = vmul.f32 1.0, %v968
  %v970 = vrcp.pop %v904
  %v971 = vmul.f32 1.0, %v970
  %v972 = vrcp.pop %v905
  %v973 = vmul.f32 1.0, %v972
  %v974 = vrcp.pop %v906
  %v975 = vmul.f32 1.0, %v974
  %v976 = vrcp.pop %v907
  %v977 = vmul.f32 1.0, %v976
  %v978 = vrcp.pop %v908
  %v979 = vmul.f32 1.0, %v978
  %v980 = vrcp.pop %v909
  %v981 = vmul.f32 1.0, %v980
  %v982 = vrcp.pop %v910
  %v983 = vmul.f32 1.0, %v982
  %v984 = vrcp.pop %v911
  %v985 = vmul.f32 1.0, %v984
  %v986 = vrcp.pop %v912
  %v987 = vmul.f32 1.0, %v986
  %v988 = vrcp.pop %v913
  %v989 = vmul.f32 1.0, %v988
  %v990 = vrcp.pop %v914
  %v991 = vmul.f32 1.0, %v990
  %v992 = vrcp.pop %v915
  %v993 = vmul.f32 1.0, %v992
  %v994 = vrcp.pop %v916
  %v995 = vmul.f32 1.0, %v994
  %v996 = vrcp.pop %v917
  %v997 = vmul.f32 1.0, %v996
  %v998 = vrcp.pop %v918
  %v999 = vmul.f32 1.0, %v998
  %v1000 = vrcp.pop %v919
  %v1001 = vmul.f32 1.0, %v1000
  %v1002 = vrcp.pop %v920
  %v1003 = vmul.f32 1.0, %v1002
  %v1004 = vrcp.pop %v921
  %v1005 = vmul.f32 1.0, %v1004
  %v1006 = vrcp.pop %v922
  %v1007 = vmul.f32 1.0, %v1006
  %v1008 = vrcp.pop %v923
  %v1009 = vmul.f32 1.0, %v1008
  %v1010 = vrcp.pop %v924
  %v1011 = vmul.f32 1.0, %v1010
  %v1012 = vrcp.pop %v925
  %v1013 = vmul.f32 1.0, %v1012
  %v1014 = vrcp.pop %v926
  %v1015 = vmul.f32 1.0, %v1014
  %v1016 = vrcp.pop %v927
  %v1017 = vmul.f32 1.0, %v1016
  %v1018 = vrcp.pop %v928
  %v1019 = vmul.f32 1.0, %v1018
  %v1020 = vrcp.pop %v929
  %v1021 = vmul.f32 1.0, %v1020
  %v1022 = vrcp.pop %v930
  %v1023 = vmul.f32 1.0, %v1022
  %v1024 = vrcp.pop %v931
  %v1025 = vmul.f32 1.0, %v1024
  %v1026 = vrcp.pop %v932
  %v1027 = vmul.f32 1.0, %v1026
  %v1028 = vrcp.pop %v933
  %v1029 = vmul.f32 1.0, %v1028
  %v1030 = vrcp.pop %v934
  %v1031 = vmul.f32 1.0, %v1030
  %v1032 = vrcp.pop %v935
  %v1033 = vmul.f32 1.0, %v1032
  %v1034 = vrcp.pop %v936
  %v1035 = vmul.f32 1.0, %v1034
  %v1036 = vrcp.pop %v937
  %v1037 = vmul.f32 1.0, %v1036
  %v1038 = vrcp.pop %v938
  %v1039 = vmul.f32 1.0, %v1038
  %v1040 = vrcp.pop %v939
  %v1041 = vmul.f32 1.0, %v1040
  %v1042 = vrcp.pop %v940
  %v1043 = vmul.f32 1.0, %v1042
  %v1044 = vrcp.pop %v941
  %v1045 = vmul.f32 1.0, %v1044
  %v1046 = vrcp.pop %v942
  %v1047 = vmul.f32 1.0, %v1046
  %v1048 = vrcp.pop %v943
  %v1049 = vmul.f32 1.0, %v1048
  %v1050 = vrcp.pop %v944
  %v1051 = vmul.f32 1.0, %v1050
  %v1052 = vrcp.pop %v945
  %v1053 = vmul.f32 1.0, %v1052
  %v1054 = vrcp.pop %v946
  %v1055 = vmul.f32 1.0, %v1054
  %v1056 = vrcp.pop %v947
  %v1057 = vmul.f32 1.0, %v1056
  %v1058 = vrcp.pop %v948
  %v1059 = vmul.f32 1.0, %v1058
  %v1060 = vrcp.pop %v949
  %v1061 = vmul.f32 1.0, %v1060
  %v1062 = vrcp.pop %v950
  %v1063 = vmul.f32 1.0, %v1062
  %v1064 = vrcp.pop %v951
  %v1065 = vmul.f32 1.0, %v1064
  %v1066 = vrcp.pop %v952
  %v1067 = vmul.f32 1.0, %v1066
  %v1068 = vrcp.pop %v953
  %v1069 = vmul.f32 1.0, %v1068
  %v1070 = vrcp.pop %v954
  %v1071 = vmul.f32 1.0, %v1070
  %v1072 = vrcp.pop %v955
  %v1073 = vmul.f32 1.0, %v1072
  %v1074 = vrcp.pop %v956
  %v1075 = vmul.f32 1.0, %v1074
  %v1076 = vrcp.pop %v957
  %v1077 = vmul.f32 1.0, %v1076
  %v1078 = vrcp.pop %v958
  %v1079 = vmul.f32 1.0, %v1078
  %v1080 = vrcp.pop %v959
  %v1081 = vmul.f32 1.0, %v1080
  %v1082 = vrcp.pop %v960
  %v1083 = vmul.f32 1.0, %v1082
  %v1084 = vrcp.pop %v961
  %v1085 = vmul.f32 1.0, %v1084
  %v1086 = vrcp.pop %v962
  %v1087 = vmul.f32 1.0, %v1086
  %v1088 = vrcp.pop %v963
  %v1089 = vmul.f32 1.0, %v1088
  %v1090 = vrcp.pop %v964
  %v1091 = vmul.f32 1.0, %v1090
  %v1092 = vrcp.pop %v965
  %v1093 = vmul.f32 1.0, %v1092
  %v1094 = vadd.f32 %v967, %v643
  %v1095 = vadd.f32 %v969, %v644
  %v1096 = vadd.f32 %v971, %v645
  %v1097 = vadd.f32 %v973, %v646
  %v1098 = vadd.f32 %v975, %v647
  %v1099 = vadd.f32 %v977, %v648
  %v1100 = vadd.f32 %v979, %v649
  %v1101 = vadd.f32 %v981, %v650
  %v1102 = vadd.f32 %v983, %v651
  %v1103 = vadd.f32 %v985, %v652
  %v1104 = vadd.f32 %v987, %v653
  %v1105 = vadd.f32 %v989, %v654
  %v1106 = vadd.f32 %v991, %v655
  %v1107 = vadd.f32 %v993, %v656
  %v1108 = vadd.f32 %v995, %v657
  %v1109 = vadd.f32 %v997, %v658
  %v1110 = vadd.f32 %v999, %v659
  %v1111 = vadd.f32 %v1001, %v660
  %v1112 = vadd.f32 %v1003, %v661
  %v1113 = vadd.f32 %v1005, %v662
  %v1114 = vadd.f32 %v1007, %v663
  %v1115 = vadd.f32 %v1009, %v664
  %v1116 = vadd.f32 %v1011, %v665
  %v1117 = vadd.f32 %v1013, %v666
  %v1118 = vadd.f32 %v1015, %v667
  %v1119 = vadd.f32 %v1017, %v668
  %v1120 = vadd.f32 %v1019, %v669
  %v1121 = vadd.f32 %v1021, %v670
  %v1122 = vadd.f32 %v1023, %v671
  %v1123 = vadd.f32 %v1025, %v672
  %v1124 = vadd.f32 %v1027, %v673
  %v1125 = vadd.f32 %v1029, %v674
  %v1126 = vadd.f32 %v1031, %v675
  %v1127 = vadd.f32 %v1033, %v676
  %v1128 = vadd.f32 %v1035, %v677
  %v1129 = vadd.f32 %v1037, %v678
  %v1130 = vadd.f32 %v1039, %v679
  %v1131 = vadd.f32 %v1041, %v680
  %v1132 = vadd.f32 %v1043, %v681
  %v1133 = vadd.f32 %v1045, %v682
  %v1134 = vadd.f32 %v1047, %v683
  %v1135 = vadd.f32 %v1049, %v684
  %v1136 = vadd.f32 %v1051, %v685
  %v1137 = vadd.f32 %v1053, %v686
  %v1138 = vadd.f32 %v1055, %v687
  %v1139 = vadd.f32 %v1057, %v688
  %v1140 = vadd.f32 %v1059, %v689
  %v1141 = vadd.f32 %v1061, %v690
  %v1142 = vadd.f32 %v1063, %v691
  %v1143 = vadd.f32 %v1065, %v692
  %v1144 = vadd.f32 %v1067, %v693
  %v1145 = vadd.f32 %v1069, %v694
  %v1146 = vadd.f32 %v1071, %v695
  %v1147 = vadd.f32 %v1073, %v696
  %v1148 = vadd.f32 %v1075, %v697
  %v1149 = vadd.f32 %v1077, %v698
  %v1150 = vadd.f32 %v1079, %v699
  %v1151 = vadd.f32 %v1081, %v700
  %v1152 = vadd.f32 %v1083, %v701
  %v1153 = vadd.f32 %v1085, %v702
  %v1154 = vadd.f32 %v1087, %v703
  %v1155 = vadd.f32 %v1089, %v704
  %v1156 = vadd.f32 %v1091, %v705
  %v1157 = vadd.f32 %v1093, %v706
  %v1159 = vlaneseq
  %v1160 = vshrl.u32 %v1159, 7
  %v1161 = vsub.s32 0, %v1160
  %v1162 = vrot.slane %v708, %v1161
  %v1164 = vmul.f32 %v1162, %v1094
  %v1165 = vmul.f32 %v1162, %v1095
  %v1166 = vmul.f32 %v1162, %v1096
  %v1167 = vmul.f32 %v1162, %v1097
  %v1168 = vmul.f32 %v1162, %v1098
  %v1169 = vmul.f32 %v1162, %v1099
  %v1170 = vmul.f32 %v1162, %v1100
  %v1171 = vmul.f32 %v1162, %v1101
  %v1172 = vmul.f32 %v1162, %v1102
  %v1173 = vmul.f32 %v1162, %v1103
  %v1174 = vmul.f32 %v1162, %v1104
  %v1175 = vmul.f32 %v1162, %v1105
  %v1176 = vmul.f32 %v1162, %v1106
  %v1177 = vmul.f32 %v1162, %v1107
  %v1178 = vmul.f32 %v1162, %v1108
  %v1179 = vmul.f32 %v1162, %v1109
  %v1180 = vmul.f32 %v1162, %v1110
  %v1181 = vmul.f32 %v1162, %v1111
  %v1182 = vmul.f32 %v1162, %v1112
  %v1183 = vmul.f32 %v1162, %v1113
  %v1184 = vmul.f32 %v1162, %v1114
  %v1185 = vmul.f32 %v1162, %v1115
  %v1186 = vmul.f32 %v1162, %v1116
  %v1187 = vmul.f32 %v1162, %v1117
  %v1188 = vmul.f32 %v1162, %v1118
  %v1189 = vmul.f32 %v1162, %v1119
  %v1190 = vmul.f32 %v1162, %v1120
  %v1191 = vmul.f32 %v1162, %v1121
  %v1192 = vmul.f32 %v1162, %v1122
  %v1193 = vmul.f32 %v1162, %v1123
  %v1194 = vmul.f32 %v1162, %v1124
  %v1195 = vmul.f32 %v1162, %v1125
  %v1196 = vmul.f32 %v1162, %v1126
  %v1197 = vmul.f32 %v1162, %v1127
  %v1198 = vmul.f32 %v1162, %v1128
  %v1199 = vmul.f32 %v1162, %v1129
  %v1200 = vmul.f32 %v1162, %v1130
  %v1201 = vmul.f32 %v1162, %v1131
  %v1202 = vmul.f32 %v1162, %v1132
  %v1203 = vmul.f32 %v1162, %v1133
  %v1204 = vmul.f32 %v1162, %v1134
  %v1205 = vmul.f32 %v1162, %v1135
  %v1206 = vmul.f32 %v1162, %v1136
  %v1207 = vmul.f32 %v1162, %v1137
  %v1208 = vmul.f32 %v1162, %v1138
  %v1209 = vmul.f32 %v1162, %v1139
  %v1210 = vmul.f32 %v1162, %v1140
  %v1211 = vmul.f32 %v1162, %v1141
  %v1212 = vmul.f32 %v1162, %v1142
  %v1213 = vmul.f32 %v1162, %v1143
  %v1214 = vmul.f32 %v1162, %v1144
  %v1215 = vmul.f32 %v1162, %v1145
  %v1216 = vmul.f32 %v1162, %v1146
  %v1217 = vmul.f32 %v1162, %v1147
  %v1218 = vmul.f32 %v1162, %v1148
  %v1219 = vmul.f32 %v1162, %v1149
  %v1220 = vmul.f32 %v1162, %v1150
  %v1221 = vmul.f32 %v1162, %v1151
  %v1222 = vmul.f32 %v1162, %v1152
  %v1223 = vmul.f32 %v1162, %v1153
  %v1224 = vmul.f32 %v1162, %v1154
  %v1225 = vmul.f32 %v1162, %v1155
  %v1226 = vmul.f32 %v1162, %v1156
  %v1227 = vmul.f32 %v1162, %v1157
  %v1229 = vlaneseq
  %v1230 = vshrl.u32 %v1229, 7
  %v1231 = vsub.s32 0, %v1230
  %v1232 = vrot.slane %v709, %v1231
  %v1234 = vmul.f32 %v389, %v1232
  %v1235 = vmul.f32 %v392, %v1232
  %v1236 = vmul.f32 %v397, %v1232
  %v1237 = vmul.f32 %v400, %v1232
  %v1238 = vmul.f32 %v405, %v1232
  %v1239 = vmul.f32 %v408, %v1232
  %v1240 = vmul.f32 %v413, %v1232
  %v1241 = vmul.f32 %v416, %v1232
  %v1242 = vmul.f32 %v421, %v1232
  %v1243 = vmul.f32 %v424, %v1232
  %v1244 = vmul.f32 %v429, %v1232
  %v1245 = vmul.f32 %v432, %v1232
  %v1246 = vmul.f32 %v437, %v1232
  %v1247 = vmul.f32 %v440, %v1232
  %v1248 = vmul.f32 %v445, %v1232
  %v1249 = vmul.f32 %v448, %v1232
  %v1250 = vmul.f32 %v453, %v1232
  %v1251 = vmul.f32 %v456, %v1232
  %v1252 = vmul.f32 %v461, %v1232
  %v1253 = vmul.f32 %v464, %v1232
  %v1254 = vmul.f32 %v469, %v1232
  %v1255 = vmul.f32 %v472, %v1232
  %v1256 = vmul.f32 %v477, %v1232
  %v1257 = vmul.f32 %v480, %v1232
  %v1258 = vmul.f32 %v485, %v1232
  %v1259 = vmul.f32 %v488, %v1232
  %v1260 = vmul.f32 %v493, %v1232
  %v1261 = vmul.f32 %v496, %v1232
  %v1262 = vmul.f32 %v501, %v1232
  %v1263 = vmul.f32 %v504, %v1232
  %v1264 = vmul.f32 %v509, %v1232
  %v1265 = vmul.f32 %v512, %v1232
  %v1266 = vmul.f32 %v517, %v1232
  %v1267 = vmul.f32 %v520, %v1232
  %v1268 = vmul.f32 %v525, %v1232
  %v1269 = vmul.f32 %v528, %v1232
  %v1270 = vmul.f32 %v533, %v1232
  %v1271 = vmul.f32 %v536, %v1232
  %v1272 = vmul.f32 %v541, %v1232
  %v1273 = vmul.f32 %v544, %v1232
  %v1274 = vmul.f32 %v549, %v1232
  %v1275 = vmul.f32 %v552, %v1232
  %v1276 = vmul.f32 %v557, %v1232
  %v1277 = vmul.f32 %v560, %v1232
  %v1278 = vmul.f32 %v565, %v1232
  %v1279 = vmul.f32 %v568, %v1232
  %v1280 = vmul.f32 %v573, %v1232
  %v1281 = vmul.f32 %v576, %v1232
  %v1282 = vmul.f32 %v581, %v1232
  %v1283 = vmul.f32 %v584, %v1232
  %v1284 = vmul.f32 %v589, %v1232
  %v1285 = vmul.f32 %v592, %v1232
  %v1286 = vmul.f32 %v597, %v1232
  %v1287 = vmul.f32 %v600, %v1232
  %v1288 = vmul.f32 %v605, %v1232
  %v1289 = vmul.f32 %v608, %v1232
  %v1290 = vmul.f32 %v613, %v1232
  %v1291 = vmul.f32 %v616, %v1232
  %v1292 = vmul.f32 %v621, %v1232
  %v1293 = vmul.f32 %v624, %v1232
  %v1294 = vmul.f32 %v629, %v1232
  %v1295 = vmul.f32 %v632, %v1232
  %v1296 = vmul.f32 %v637, %v1232
  %v1297 = vmul.f32 %v640, %v1232
  %v1298 = vmul.f32 %v1234, 1.442695
  %v1299 = vpow.pop %v1298
  %v1300 = vmul.f32 %v1235, 1.442695
  %v1301 = vpow.pop %v1300
  %v1302 = vmul.f32 %v1236, 1.442695
  %v1303 = vpow.pop %v1302
  %v1304 = vmul.f32 %v1237, 1.442695
  %v1305 = vpow.pop %v1304
  %v1306 = vmul.f32 %v1238, 1.442695
  %v1307 = vpow.pop %v1306
  %v1308 = vmul.f32 %v1239, 1.442695
  %v1309 = vpow.pop %v1308
  %v1310 = vmul.f32 %v1240, 1.442695
  %v1311 = vpow.pop %v1310
  %v1312 = vmul.f32 %v1241, 1.442695
  %v1313 = vpow.pop %v1312
  %v1314 = vmul.f32 %v1242, 1.442695
  %v1315 = vpow.pop %v1314
  %v1316 = vmul.f32 %v1243, 1.442695
  %v1317 = vpow.pop %v1316
  %v1318 = vmul.f32 %v1244, 1.442695
  %v1319 = vpow.pop %v1318
  %v1320 = vmul.f32 %v1245, 1.442695
  %v1321 = vpow.pop %v1320
  %v1322 = vmul.f32 %v1246, 1.442695
  %v1323 = vpow.pop %v1322
  %v1324 = vmul.f32 %v1247, 1.442695
  %v1325 = vpow.pop %v1324
  %v1326 = vmul.f32 %v1248, 1.442695
  %v1327 = vpow.pop %v1326
  %v1328 = vmul.f32 %v1249, 1.442695
  %v1329 = vpow.pop %v1328
  %v1330 = vmul.f32 %v1250, 1.442695
  %v1331 = vpow.pop %v1330
  %v1332 = vmul.f32 %v1251, 1.442695
  %v1333 = vpow.pop %v1332
  %v1334 = vmul.f32 %v1252, 1.442695
  %v1335 = vpow.pop %v1334
  %v1336 = vmul.f32 %v1253, 1.442695
  %v1337 = vpow.pop %v1336
  %v1338 = vmul.f32 %v1254, 1.442695
  %v1339 = vpow.pop %v1338
  %v1340 = vmul.f32 %v1255, 1.442695
  %v1341 = vpow.pop %v1340
  %v1342 = vmul.f32 %v1256, 1.442695
  %v1343 = vpow.pop %v1342
  %v1344 = vmul.f32 %v1257, 1.442695
  %v1345 = vpow.pop %v1344
  %v1346 = vmul.f32 %v1258, 1.442695
  %v1347 = vpow.pop %v1346
  %v1348 = vmul.f32 %v1259, 1.442695
  %v1349 = vpow.pop %v1348
  %v1350 = vmul.f32 %v1260, 1.442695
  %v1351 = vpow.pop %v1350
  %v1352 = vmul.f32 %v1261, 1.442695
  %v1353 = vpow.pop %v1352
  %v1354 = vmul.f32 %v1262, 1.442695
  %v1355 = vpow.pop %v1354
  %v1356 = vmul.f32 %v1263, 1.442695
  %v1357 = vpow.pop %v1356
  %v1358 = vmul.f32 %v1264, 1.442695
  %v1359 = vpow.pop %v1358
  %v1360 = vmul.f32 %v1265, 1.442695
  %v1361 = vpow.pop %v1360
  %v1362 = vmul.f32 %v1266, 1.442695
  %v1363 = vpow.pop %v1362
  %v1364 = vmul.f32 %v1267, 1.442695
  %v1365 = vpow.pop %v1364
  %v1366 = vmul.f32 %v1268, 1.442695
  %v1367 = vpow.pop %v1366
  %v1368 = vmul.f32 %v1269, 1.442695
  %v1369 = vpow.pop %v1368
  %v1370 = vmul.f32 %v1270, 1.442695
  %v1371 = vpow.pop %v1370
  %v1372 = vmul.f32 %v1271, 1.442695
  %v1373 = vpow.pop %v1372
  %v1374 = vmul.f32 %v1272, 1.442695
  %v1375 = vpow.pop %v1374
  %v1376 = vmul.f32 %v1273, 1.442695
  %v1377 = vpow.pop %v1376
  %v1378 = vmul.f32 %v1274, 1.442695
  %v1379 = vpow.pop %v1378
  %v1380 = vmul.f32 %v1275, 1.442695
  %v1381 = vpow.pop %v1380
  %v1382 = vmul.f32 %v1276, 1.442695
  %v1383 = vpow.pop %v1382
  %v1384 = vmul.f32 %v1277, 1.442695
  %v1385 = vpow.pop %v1384
  %v1386 = vmul.f32 %v1278, 1.442695
  %v1387 = vpow.pop %v1386
  %v1388 = vmul.f32 %v1279, 1.442695
  %v1389 = vpow.pop %v1388
  %v1390 = vmul.f32 %v1280, 1.442695
  %v1391 = vpow.pop %v1390
  %v1392 = vmul.f32 %v1281, 1.442695
  %v1393 = vpow.pop %v1392
  %v1394 = vmul.f32 %v1282, 1.442695
  %v1395 = vpow.pop %v1394
  %v1396 = vmul.f32 %v1283, 1.442695
  %v1397 = vpow.pop %v1396
  %v1398 = vmul.f32 %v1284, 1.442695
  %v1399 = vpow.pop %v1398
  %v1400 = vmul.f32 %v1285, 1.442695
  %v1401 = vpow.pop %v1400
  %v1402 = vmul.f32 %v1286, 1.442695
  %v1403 = vpow.pop %v1402
  %v1404 = vmul.f32 %v1287, 1.442695
  %v1405 = vpow.pop %v1404
  %v1406 = vmul.f32 %v1288, 1.442695
  %v1407 = vpow.pop %v1406
  %v1408 = vmul.f32 %v1289, 1.442695
  %v1409 = vpow.pop %v1408
  %v1410 = vmul.f32 %v1290, 1.442695
  %v1411 = vpow.pop %v1410
  %v1412 = vmul.f32 %v1291, 1.442695
  %v1413 = vpow.pop %v1412
  %v1414 = vmul.f32 %v1292, 1.442695
  %v1415 = vpow.pop %v1414
  %v1416 = vmul.f32 %v1293, 1.442695
  %v1417 = vpow.pop %v1416
  %v1418 = vmul.f32 %v1294, 1.442695
  %v1419 = vpow.pop %v1418
  %v1420 = vmul.f32 %v1295, 1.442695
  %v1421 = vpow.pop %v1420
  %v1422 = vmul.f32 %v1296, 1.442695
  %v1423 = vpow.pop %v1422
  %v1424 = vmul.f32 %v1297, 1.442695
  %v1425 = vpow.pop %v1424
  %v1427 = vlaneseq
  %v1428 = vshrl.u32 %v1427, 7
  %v1429 = vsub.s32 0, %v1428
  %v1430 = vrot.slane %v707, %v1429
  %v1432 = vmul.f32 %v1299, %v1430
  %v1433 = vmul.f32 %v1301, %v1430
  %v1434 = vmul.f32 %v1303, %v1430
  %v1435 = vmul.f32 %v1305, %v1430
  %v1436 = vmul.f32 %v1307, %v1430
  %v1437 = vmul.f32 %v1309, %v1430
  %v1438 = vmul.f32 %v1311, %v1430
  %v1439 = vmul.f32 %v1313, %v1430
  %v1440 = vmul.f32 %v1315, %v1430
  %v1441 = vmul.f32 %v1317, %v1430
  %v1442 = vmul.f32 %v1319, %v1430
  %v1443 = vmul.f32 %v1321, %v1430
  %v1444 = vmul.f32 %v1323, %v1430
  %v1445 = vmul.f32 %v1325, %v1430
  %v1446 = vmul.f32 %v1327, %v1430
  %v1447 = vmul.f32 %v1329, %v1430
  %v1448 = vmul.f32 %v1331, %v1430
  %v1449 = vmul.f32 %v1333, %v1430
  %v1450 = vmul.f32 %v1335, %v1430
  %v1451 = vmul.f32 %v1337, %v1430
  %v1452 = vmul.f32 %v1339, %v1430
  %v1453 = vmul.f32 %v1341, %v1430
  %v1454 = vmul.f32 %v1343, %v1430
  %v1455 = vmul.f32 %v1345, %v1430
  %v1456 = vmul.f32 %v1347, %v1430
  %v1457 = vmul.f32 %v1349, %v1430
  %v1458 = vmul.f32 %v1351, %v1430
  %v1459 = vmul.f32 %v1353, %v1430
  %v1460 = vmul.f32 %v1355, %v1430
  %v1461 = vmul.f32 %v1357, %v1430
  %v1462 = vmul.f32 %v1359, %v1430
  %v1463 = vmul.f32 %v1361, %v1430
  %v1464 = vmul.f32 %v1363, %v1430
  %v1465 = vmul.f32 %v1365, %v1430
  %v1466 = vmul.f32 %v1367, %v1430
  %v1467 = vmul.f32 %v1369, %v1430
  %v1468 = vmul.f32 %v1371, %v1430
  %v1469 = vmul.f32 %v1373, %v1430
  %v1470 = vmul.f32 %v1375, %v1430
  %v1471 = vmul.f32 %v1377, %v1430
  %v1472 = vmul.f32 %v1379, %v1430
  %v1473 = vmul.f32 %v1381, %v1430
  %v1474 = vmul.f32 %v1383, %v1430
  %v1475 = vmul.f32 %v1385, %v1430
  %v1476 = vmul.f32 %v1387, %v1430
  %v1477 = vmul.f32 %v1389, %v1430
  %v1478 = vmul.f32 %v1391, %v1430
  %v1479 = vmul.f32 %v1393, %v1430
  %v1480 = vmul.f32 %v1395, %v1430
  %v1481 = vmul.f32 %v1397, %v1430
  %v1482 = vmul.f32 %v1399, %v1430
  %v1483 = vmul.f32 %v1401, %v1430
  %v1484 = vmul.f32 %v1403, %v1430
  %v1485 = vmul.f32 %v1405, %v1430
  %v1486 = vmul.f32 %v1407, %v1430
  %v1487 = vmul.f32 %v1409, %v1430
  %v1488 = vmul.f32 %v1411, %v1430
  %v1489 = vmul.f32 %v1413, %v1430
  %v1490 = vmul.f32 %v1415, %v1430
  %v1491 = vmul.f32 %v1417, %v1430
  %v1492 = vmul.f32 %v1419, %v1430
  %v1493 = vmul.f32 %v1421, %v1430
  %v1494 = vmul.f32 %v1423, %v1430
  %v1495 = vmul.f32 %v1425, %v1430
  %v1496 = vsub.f32 1.0, %v708
  %v1497 = vsub.f32 %v1496, %v709
  %v1499 = vlaneseq
  %v1500 = vshrl.u32 %v1499, 7
  %v1501 = vsub.s32 0, %v1500
  %v1502 = vrot.slane %v1497, %v1501
  %v1504 = vmul.f32 %v1502, %v967
  %v1505 = vmul.f32 %v1502, %v969
  %v1506 = vmul.f32 %v1502, %v971
  %v1507 = vmul.f32 %v1502, %v973
  %v1508 = vmul.f32 %v1502, %v975
  %v1509 = vmul.f32 %v1502, %v977
  %v1510 = vmul.f32 %v1502, %v979
  %v1511 = vmul.f32 %v1502, %v981
  %v1512 = vmul.f32 %v1502, %v983
  %v1513 = vmul.f32 %v1502, %v985
  %v1514 = vmul.f32 %v1502, %v987
  %v1515 = vmul.f32 %v1502, %v989
  %v1516 = vmul.f32 %v1502, %v991
  %v1517 = vmul.f32 %v1502, %v993
  %v1518 = vmul.f32 %v1502, %v995
  %v1519 = vmul.f32 %v1502, %v997
  %v1520 = vmul.f32 %v1502, %v999
  %v1521 = vmul.f32 %v1502, %v1001
  %v1522 = vmul.f32 %v1502, %v1003
  %v1523 = vmul.f32 %v1502, %v1005
  %v1524 = vmul.f32 %v1502, %v1007
  %v1525 = vmul.f32 %v1502, %v1009
  %v1526 = vmul.f32 %v1502, %v1011
  %v1527 = vmul.f32 %v1502, %v1013
  %v1528 = vmul.f32 %v1502, %v1015
  %v1529 = vmul.f32 %v1502, %v1017
  %v1530 = vmul.f32 %v1502, %v1019
  %v1531 = vmul.f32 %v1502, %v1021
  %v1532 = vmul.f32 %v1502, %v1023
  %v1533 = vmul.f32 %v1502, %v1025
  %v1534 = vmul.f32 %v1502, %v1027
  %v1535 = vmul.f32 %v1502, %v1029
  %v1536 = vmul.f32 %v1502, %v1031
  %v1537 = vmul.f32 %v1502, %v1033
  %v1538 = vmul.f32 %v1502, %v1035
  %v1539 = vmul.f32 %v1502, %v1037
  %v1540 = vmul.f32 %v1502, %v1039
  %v1541 = vmul.f32 %v1502, %v1041
  %v1542 = vmul.f32 %v1502, %v1043
  %v1543 = vmul.f32 %v1502, %v1045
  %v1544 = vmul.f32 %v1502, %v1047
  %v1545 = vmul.f32 %v1502, %v1049
  %v1546 = vmul.f32 %v1502, %v1051
  %v1547 = vmul.f32 %v1502, %v1053
  %v1548 = vmul.f32 %v1502, %v1055
  %v1549 = vmul.f32 %v1502, %v1057
  %v1550 = vmul.f32 %v1502, %v1059
  %v1551 = vmul.f32 %v1502, %v1061
  %v1552 = vmul.f32 %v1502, %v1063
  %v1553 = vmul.f32 %v1502, %v1065
  %v1554 = vmul.f32 %v1502, %v1067
  %v1555 = vmul.f32 %v1502, %v1069
  %v1556 = vmul.f32 %v1502, %v1071
  %v1557 = vmul.f32 %v1502, %v1073
  %v1558 = vmul.f32 %v1502, %v1075
  %v1559 = vmul.f32 %v1502, %v1077
  %v1560 = vmul.f32 %v1502, %v1079
  %v1561 = vmul.f32 %v1502, %v1081
  %v1562 = vmul.f32 %v1502, %v1083
  %v1563 = vmul.f32 %v1502, %v1085
  %v1564 = vmul.f32 %v1502, %v1087
  %v1565 = vmul.f32 %v1502, %v1089
  %v1566 = vmul.f32 %v1502, %v1091
  %v1567 = vmul.f32 %v1502, %v1093
  %v1568 = vadd.f32 %v1164, %v1432
  %v1569 = vadd.f32 %v1165, %v1433
  %v1570 = vadd.f32 %v1166, %v1434
  %v1571 = vadd.f32 %v1167, %v1435
  %v1572 = vadd.f32 %v1168, %v1436
  %v1573 = vadd.f32 %v1169, %v1437
  %v1574 = vadd.f32 %v1170, %v1438
  %v1575 = vadd.f32 %v1171, %v1439
  %v1576 = vadd.f32 %v1172, %v1440
  %v1577 = vadd.f32 %v1173, %v1441
  %v1578 = vadd.f32 %v1174, %v1442
  %v1579 = vadd.f32 %v1175, %v1443
  %v1580 = vadd.f32 %v1176, %v1444
  %v1581 = vadd.f32 %v1177, %v1445
  %v1582 = vadd.f32 %v1178, %v1446
  %v1583 = vadd.f32 %v1179, %v1447
  %v1584 = vadd.f32 %v1180, %v1448
  %v1585 = vadd.f32 %v1181, %v1449
  %v1586 = vadd.f32 %v1182, %v1450
  %v1587 = vadd.f32 %v1183, %v1451
  %v1588 = vadd.f32 %v1184, %v1452
  %v1589 = vadd.f32 %v1185, %v1453
  %v1590 = vadd.f32 %v1186, %v1454
  %v1591 = vadd.f32 %v1187, %v1455
  %v1592 = vadd.f32 %v1188, %v1456
  %v1593 = vadd.f32 %v1189, %v1457
  %v1594 = vadd.f32 %v1190, %v1458
  %v1595 = vadd.f32 %v1191, %v1459
  %v1596 = vadd.f32 %v1192, %v1460
  %v1597 = vadd.f32 %v1193, %v1461
  %v1598 = vadd.f32 %v1194, %v1462
  %v1599 = vadd.f32 %v1195, %v1463
  %v1600 = vadd.f32 %v1196, %v1464
  %v1601 = vadd.f32 %v1197, %v1465
  %v1602 = vadd.f32 %v1198, %v1466
  %v1603 = vadd.f32 %v1199, %v1467
  %v1604 = vadd.f32 %v1200, %v1468
  %v1605 = vadd.f32 %v1201, %v1469
  %v1606 = vadd.f32 %v1202, %v1470
  %v1607 = vadd.f32 %v1203, %v1471
  %v1608 = vadd.f32 %v1204, %v1472
  %v1609 = vadd.f32 %v1205, %v1473
  %v1610 = vadd.f32 %v1206, %v1474
  %v1611 = vadd.f32 %v1207, %v1475
  %v1612 = vadd.f32 %v1208, %v1476
  %v1613 = vadd.f32 %v1209, %v1477
  %v1614 = vadd.f32 %v1210, %v1478
  %v1615 = vadd.f32 %v1211, %v1479
  %v1616 = vadd.f32 %v1212, %v1480
  %v1617 = vadd.f32 %v1213, %v1481
  %v1618 = vadd.f32 %v1214, %v1482
  %v1619 = vadd.f32 %v1215, %v1483
  %v1620 = vadd.f32 %v1216, %v1484
  %v1621 = vadd.f32 %v1217, %v1485
  %v1622 = vadd.f32 %v1218, %v1486
  %v1623 = vadd.f32 %v1219, %v1487
  %v1624 = vadd.f32 %v1220, %v1488
  %v1625 = vadd.f32 %v1221, %v1489
  %v1626 = vadd.f32 %v1222, %v1490
  %v1627 = vadd.f32 %v1223, %v1491
  %v1628 = vadd.f32 %v1224, %v1492
  %v1629 = vadd.f32 %v1225, %v1493
  %v1630 = vadd.f32 %v1226, %v1494
  %v1631 = vadd.f32 %v1227, %v1495
  %v1632 = vadd.f32 %v1568, %v1504
  %v1633 = vadd.f32 %v1569, %v1505
  %v1634 = vadd.f32 %v1570, %v1506
  %v1635 = vadd.f32 %v1571, %v1507
  %v1636 = vadd.f32 %v1572, %v1508
  %v1637 = vadd.f32 %v1573, %v1509
  %v1638 = vadd.f32 %v1574, %v1510
  %v1639 = vadd.f32 %v1575, %v1511
  %v1640 = vadd.f32 %v1576, %v1512
  %v1641 = vadd.f32 %v1577, %v1513
  %v1642 = vadd.f32 %v1578, %v1514
  %v1643 = vadd.f32 %v1579, %v1515
  %v1644 = vadd.f32 %v1580, %v1516
  %v1645 = vadd.f32 %v1581, %v1517
  %v1646 = vadd.f32 %v1582, %v1518
  %v1647 = vadd.f32 %v1583, %v1519
  %v1648 = vadd.f32 %v1584, %v1520
  %v1649 = vadd.f32 %v1585, %v1521
  %v1650 = vadd.f32 %v1586, %v1522
  %v1651 = vadd.f32 %v1587, %v1523
  %v1652 = vadd.f32 %v1588, %v1524
  %v1653 = vadd.f32 %v1589, %v1525
  %v1654 = vadd.f32 %v1590, %v1526
  %v1655 = vadd.f32 %v1591, %v1527
  %v1656 = vadd.f32 %v1592, %v1528
  %v1657 = vadd.f32 %v1593, %v1529
  %v1658 = vadd.f32 %v1594, %v1530
  %v1659 = vadd.f32 %v1595, %v1531
  %v1660 = vadd.f32 %v1596, %v1532
  %v1661 = vadd.f32 %v1597, %v1533
  %v1662 = vadd.f32 %v1598, %v1534
  %v1663 = vadd.f32 %v1599, %v1535
  %v1664 = vadd.f32 %v1600, %v1536
  %v1665 = vadd.f32 %v1601, %v1537
  %v1666 = vadd.f32 %v1602, %v1538
  %v1667 = vadd.f32 %v1603, %v1539
  %v1668 = vadd.f32 %v1604, %v1540
  %v1669 = vadd.f32 %v1605, %v1541
  %v1670 = vadd.f32 %v1606, %v1542
  %v1671 = vadd.f32 %v1607, %v1543
  %v1672 = vadd.f32 %v1608, %v1544
  %v1673 = vadd.f32 %v1609, %v1545
  %v1674 = vadd.f32 %v1610, %v1546
  %v1675 = vadd.f32 %v1611, %v1547
  %v1676 = vadd.f32 %v1612, %v1548
  %v1677 = vadd.f32 %v1613, %v1549
  %v1678 = vadd.f32 %v1614, %v1550
  %v1679 = vadd.f32 %v1615, %v1551
  %v1680 = vadd.f32 %v1616, %v1552
  %v1681 = vadd.f32 %v1617, %v1553
  %v1682 = vadd.f32 %v1618, %v1554
  %v1683 = vadd.f32 %v1619, %v1555
  %v1684 = vadd.f32 %v1620, %v1556
  %v1685 = vadd.f32 %v1621, %v1557
  %v1686 = vadd.f32 %v1622, %v1558
  %v1687 = vadd.f32 %v1623, %v1559
  %v1688 = vadd.f32 %v1624, %v1560
  %v1689 = vadd.f32 %v1625, %v1561
  %v1690 = vadd.f32 %v1626, %v1562
  %v1691 = vadd.f32 %v1627, %v1563
  %v1692 = vadd.f32 %v1628, %v1564
  %v1693 = vadd.f32 %v1629, %v1565
  %v1694 = vadd.f32 %v1630, %v1566
  %v1695 = vadd.f32 %v1631, %v1567
  %1696 = vst [vmem:[%s7] sm:$0xff] %v1632
  %1697 = vst [vmem:[%s7 + $0x8] sm:$0xff] %v1633
  %1698 = vst [vmem:[%s7 + $0x10] sm:$0xff] %v1634
  %1699 = vst [vmem:[%s7 + $0x18] sm:$0xff] %v1635
  %1700 = vst [vmem:[%s7 + $0x20] sm:$0xff] %v1636
  %1701 = vst [vmem:[%s7 + $0x28] sm:$0xff] %v1637
  %1702 = vst [vmem:[%s7 + $0x30] sm:$0xff] %v1638
  %1703 = vst [vmem:[%s7 + $0x38] sm:$0xff] %v1639
  %1704 = vst [vmem:[%s7 + $0x40] sm:$0xff] %v1640
  %1705 = vst [vmem:[%s7 + $0x48] sm:$0xff] %v1641
  %1706 = vst [vmem:[%s7 + $0x50] sm:$0xff] %v1642
  %1707 = vst [vmem:[%s7 + $0x58] sm:$0xff] %v1643
  %1708 = vst [vmem:[%s7 + $0x60] sm:$0xff] %v1644
  %1709 = vst [vmem:[%s7 + $0x68] sm:$0xff] %v1645
  %1710 = vst [vmem:[%s7 + $0x70] sm:$0xff] %v1646
  %1711 = vst [vmem:[%s7 + $0x78] sm:$0xff] %v1647
  %1712 = vst [vmem:[%s7 + $0x80] sm:$0xff] %v1648
  %1713 = vst [vmem:[%s7 + $0x88] sm:$0xff] %v1649
  %1714 = vst [vmem:[%s7 + $0x90] sm:$0xff] %v1650
  %1715 = vst [vmem:[%s7 + $0x98] sm:$0xff] %v1651
  %1716 = vst [vmem:[%s7 + $0xa0] sm:$0xff] %v1652
  %1717 = vst [vmem:[%s7 + $0xa8] sm:$0xff] %v1653
  %1718 = vst [vmem:[%s7 + $0xb0] sm:$0xff] %v1654
  %1719 = vst [vmem:[%s7 + $0xb8] sm:$0xff] %v1655
  %1720 = vst [vmem:[%s7 + $0xc0] sm:$0xff] %v1656
  %1721 = vst [vmem:[%s7 + $0xc8] sm:$0xff] %v1657
  %1722 = vst [vmem:[%s7 + $0xd0] sm:$0xff] %v1658
  %1723 = vst [vmem:[%s7 + $0xd8] sm:$0xff] %v1659
  %1724 = vst [vmem:[%s7 + $0xe0] sm:$0xff] %v1660
  %1725 = vst [vmem:[%s7 + $0xe8] sm:$0xff] %v1661
  %1726 = vst [vmem:[%s7 + $0xf0] sm:$0xff] %v1662
  %1727 = vst [vmem:[%s7 + $0xf8] sm:$0xff] %v1663
  %1728 = vst [vmem:[%s7 + $0x100] sm:$0xff] %v1664
  %1729 = vst [vmem:[%s7 + $0x108] sm:$0xff] %v1665
  %1730 = vst [vmem:[%s7 + $0x110] sm:$0xff] %v1666
  %1731 = vst [vmem:[%s7 + $0x118] sm:$0xff] %v1667
  %1732 = vst [vmem:[%s7 + $0x120] sm:$0xff] %v1668
  %1733 = vst [vmem:[%s7 + $0x128] sm:$0xff] %v1669
  %1734 = vst [vmem:[%s7 + $0x130] sm:$0xff] %v1670
  %1735 = vst [vmem:[%s7 + $0x138] sm:$0xff] %v1671
  %1736 = vst [vmem:[%s7 + $0x140] sm:$0xff] %v1672
  %1737 = vst [vmem:[%s7 + $0x148] sm:$0xff] %v1673
  %1738 = vst [vmem:[%s7 + $0x150] sm:$0xff] %v1674
  %1739 = vst [vmem:[%s7 + $0x158] sm:$0xff] %v1675
  %1740 = vst [vmem:[%s7 + $0x160] sm:$0xff] %v1676
  %1741 = vst [vmem:[%s7 + $0x168] sm:$0xff] %v1677
  %1742 = vst [vmem:[%s7 + $0x170] sm:$0xff] %v1678
  %1743 = vst [vmem:[%s7 + $0x178] sm:$0xff] %v1679
  %1744 = vst [vmem:[%s7 + $0x180] sm:$0xff] %v1680
  %1745 = vst [vmem:[%s7 + $0x188] sm:$0xff] %v1681
  %1746 = vst [vmem:[%s7 + $0x190] sm:$0xff] %v1682
  %1747 = vst [vmem:[%s7 + $0x198] sm:$0xff] %v1683
  %1748 = vst [vmem:[%s7 + $0x1a0] sm:$0xff] %v1684
  %1749 = vst [vmem:[%s7 + $0x1a8] sm:$0xff] %v1685
  %1750 = vst [vmem:[%s7 + $0x1b0] sm:$0xff] %v1686
  %1751 = vst [vmem:[%s7 + $0x1b8] sm:$0xff] %v1687
  %1752 = vst [vmem:[%s7 + $0x1c0] sm:$0xff] %v1688
  %1753 = vst [vmem:[%s7 + $0x1c8] sm:$0xff] %v1689
  %1754 = vst [vmem:[%s7 + $0x1d0] sm:$0xff] %v1690
  %1755 = vst [vmem:[%s7 + $0x1d8] sm:$0xff] %v1691
  %1756 = vst [vmem:[%s7 + $0x1e0] sm:$0xff] %v1692
  %1757 = vst [vmem:[%s7 + $0x1e8] sm:$0xff] %v1693
  %1758 = vst [vmem:[%s7 + $0x1f0] sm:$0xff] %v1694
  %1759 = vst [vmem:[%s7 + $0x1f8] sm:$0xff] %v1695
  // Predicated region
  $region30: #{_lambda_.15} parent=0 // pred_check
    _
  $region31: #{_lambda_.15} parent=0 // pred_check_branch
    %1761 = sbr.rel (0) target = $region33
  $region32: #{_lambda_.15} parent=0 // pred_region
    _
  $region33: #{_lambda_.15} parent=0 // pred_fallthru
    _
  // Predicated region
  $region34: #{_lambda_.15} parent=0 // pred_check
    _
  $region35: #{_lambda_.15} parent=0 // pred_check_branch
    %1763 = sbr.rel (0) target = $region37
  $region36: #{_lambda_.15} parent=0 // pred_region
    _
  $region37: #{_lambda_.15} parent=0 // pred_fallthru
    _

</llo_original>
